<compile_context>
chip_gen: v6e
topology: v6e:2x2x1
jax: 0.10.0
libtpu: 0.0.40
codegen_flags: <defaults>
</compile_context>

<pallas_src>
import math

import jax
import jax.numpy as jnp
from jax import lax
from jax.experimental import pallas as pl
from jax.experimental.pallas import tpu as pltpu

EPS = 1e-5


# ----------------------- tiling / compiler-param helpers -----------------------

def _lane_tile(hw, cap=2048):
    """Largest multiple-of-128 divisor of hw, capped (full-extent block if hw % 128 != 0)."""
    if hw % 128 != 0:
        return hw
    t = 128
    while t * 2 <= cap and hw % (t * 2) == 0:
        t *= 2
    return min(t, hw)


def _vmem_cap_bytes():
    try:
        return int(pltpu.get_tpu_info().vmem_capacity_bytes)
    except Exception:           # fall back to the smallest per-core VMEM (v7x)
        return 64 * 2 ** 20


def _mosaic_params(dim_semantics, block_shapes, scratch_shapes=()):
    """dimension_semantics + a chip-aware VMEM limit from the per-step working set."""
    blocks = sum(4 * math.prod(s) for s in block_shapes)        # f32 upper bound per buffer
    scratch = sum(4 * math.prod(s) for s in scratch_shapes)
    work = 2 * blocks + scratch                                  # blocks are double-buffered
    cap = _vmem_cap_bytes()
    limit = int(min(int(0.75 * cap), max(16 * 2 ** 20, 2 * work)))
    return pltpu.CompilerParams(dimension_semantics=dim_semantics,
                                vmem_limit_bytes=limit)


# ----------------------- kernels 1 & 3: 1x1 conv (+ fused BN-apply/ReLU) + stats ---------------

def _make_pointwise_kernel(apply_bn_relu):
    """1x1 conv as (Cout,Cin)@(Cin,tile) MXU matmul with f32 accumulation.  Optional fused
    f32 scale*x+bias+ReLU prologue.  Per-channel sum / sum-of-squares (f32) are accumulated
    across the lane-tile ('arbitrary') grid axis with the pl.when init/accumulate pattern."""

    def _body(z, w_ref, y_ref, ps_ref, pq_ref):
        j = pl.program_id(1)
        y = jnp.dot(w_ref[...], z.astype(w_ref.dtype),
                    preferred_element_type=jnp.float32)          # (Cout, tile) f32
        y_ref[0] = y.astype(y_ref.dtype)
        ps = jnp.sum(y, axis=-1, keepdims=True)                  # (Cout, 1) f32
        pq = jnp.sum(y * y, axis=-1, keepdims=True)

        @pl.when(j == 0)
        def _():
            ps_ref[0] = ps
            pq_ref[0] = pq

        @pl.when(j > 0)
        def _():
            ps_ref[0] += ps
            pq_ref[0] += pq

    if apply_bn_relu:
        def kernel(x_ref, s_ref, b_ref, w_ref, y_ref, ps_ref, pq_ref):
            z = jnp.maximum(x_ref[0].astype(jnp.float32) * s_ref[...] + b_ref[...], 0.0)
            _body(z, w_ref, y_ref, ps_ref, pq_ref)
    else:
        def kernel(x_ref, w_ref, y_ref, ps_ref, pq_ref):
            _body(x_ref[0].astype(jnp.float32), w_ref, y_ref, ps_ref, pq_ref)
    return kernel


def pointwise_conv_stats(x3, w, scale=None, bias=None):
    """x3: (N, Cin, HW), w: (Cout, Cin).  Returns (y, per-batch channel sums, sums of squares)."""
    N, Cin, HW = x3.shape
    Cout = w.shape[0]
    tl = _lane_tile(HW)
    nj = HW // tl
    fused = scale is not None

    in_specs = [pl.BlockSpec((1, Cin, tl), lambda n, j: (n, 0, j))]
    args = [x3]
    if fused:
        in_specs += [pl.BlockSpec((Cin, 1), lambda n, j: (0, 0)),
                     pl.BlockSpec((Cin, 1), lambda n, j: (0, 0))]
        args += [scale.reshape(Cin, 1).astype(jnp.float32),
                 bias.reshape(Cin, 1).astype(jnp.float32)]
    in_specs.append(pl.BlockSpec((Cout, Cin), lambda n, j: (0, 0)))
    args.append(w)

    y, ps, pq = pl.pallas_call(
        _make_pointwise_kernel(fused),
        out_shape=(jax.ShapeDtypeStruct((N, Cout, HW), x3.dtype),
                   jax.ShapeDtypeStruct((N, Cout, 1), jnp.float32),
                   jax.ShapeDtypeStruct((N, Cout, 1), jnp.float32)),
        grid=(N, nj),
        in_specs=in_specs,
        out_specs=(pl.BlockSpec((1, Cout, tl), lambda n, j: (n, 0, j)),
                   pl.BlockSpec((1, Cout, 1), lambda n, j: (n, 0, 0)),
                   pl.BlockSpec((1, Cout, 1), lambda n, j: (n, 0, 0))),
        compiler_params=_mosaic_params(("parallel", "arbitrary"),
                                       [(Cin, tl), (Cout, tl), (Cout, Cin)]),
    )(*args)
    return y, ps, pq


# ----------------------- kernel 2: fused BN+ReLU -> 3x3 conv (9 accumulated dots) + stats ------

def _make_conv3x3_kernel(H, W, Cin, Cout, pad_lanes):
    """bn+relu prologue, then 3x3/pad=1/stride=1 conv as 9 K=Cin MXU dots accumulated in f32.

    The zero halo is handled with a lane-padded flat scratch (no HBM jnp.pad, no im2col slab):
    each tap is a statically lane-shifted slice of the padded row-major image, with a column
    mask killing the horizontal wrap-around."""
    HW = H * W

    def kernel(x_ref, s_ref, b_ref, ml_ref, mr_ref, w_ref,
               y_ref, ps_ref, pq_ref, zp_ref):
        # Zero only the halo lanes (interior is fully overwritten below).  Done every step so
        # it stays correct when the batch axis is split across TensorCores.
        zp_ref[:, :pad_lanes] = jnp.zeros((Cin, pad_lanes), zp_ref.dtype)
        zp_ref[:, pad_lanes + HW:] = jnp.zeros((Cin, pad_lanes), zp_ref.dtype)

        # bn1-apply + relu prologue in f32 (per input channel scale/bias broadcast over lanes)
        z = jnp.maximum(x_ref[0].astype(jnp.float32) * s_ref[...] + b_ref[...], 0.0)
        zp_ref[:, pad_lanes:pad_lanes + HW] = z.astype(zp_ref.dtype)   # aligned interior store

        acc = jnp.zeros((Cout, HW), jnp.float32)
        for di in range(3):
            for dj in range(3):
                off = pad_lanes + (di - 1) * W + (dj - 1)              # static lane offset
                tap = zp_ref[:, off:off + HW]                          # (Cin, HW) shifted load
                if dj == 0:
                    tap = tap * ml_ref[...]                            # mask wrapped left column
                elif dj == 2:
                    tap = tap * mr_ref[...]                            # mask wrapped right column
                acc = acc + jnp.dot(w_ref[di * 3 + dj], tap,
                                    preferred_element_type=jnp.float32)

        y_ref[0] = acc.astype(y_ref.dtype)
        ps_ref[0] = jnp.sum(acc, axis=-1, keepdims=True)
        pq_ref[0] = jnp.sum(acc * acc, axis=-1, keepdims=True)

    return kernel


def conv3x3_fused(x3, scale, bias, w2taps, H, W):
    """relu(bn(x)) then 3x3 conv in channels-first flat layout.  Returns (y, sums, sumsqs)."""
    N, Cin, HW = x3.shape
    _, Cout, _ = w2taps.shape
    pad_lanes = ((W + 1 + 127) // 128) * 128                           # 128-aligned halo

    lane = jnp.arange(HW, dtype=jnp.int32) % W
    mask_l = (lane != 0).astype(x3.dtype).reshape(1, HW)
    mask_r = (lane != W - 1).astype(x3.dtype).reshape(1, HW)

    y, ps, pq = pl.pallas_call(
        _make_conv3x3_kernel(H, W, Cin, Cout, pad_lanes),
        out_shape=(jax.ShapeDtypeStruct((N, Cout, HW), x3.dtype),
                   jax.ShapeDtypeStruct((N, Cout, 1), jnp.float32),
                   jax.ShapeDtypeStruct((N, Cout, 1), jnp.float32)),
        grid=(N,),
        in_specs=[pl.BlockSpec((1, Cin, HW), lambda n: (n, 0, 0)),
                  pl.BlockSpec((Cin, 1), lambda n: (0, 0)),
                  pl.BlockSpec((Cin, 1), lambda n: (0, 0)),
                  pl.BlockSpec((1, HW), lambda n: (0, 0)),
                  pl.BlockSpec((1, HW), lambda n: (0, 0)),
                  pl.BlockSpec((9, Cout, Cin), lambda n: (0, 0, 0))],
        out_specs=(pl.BlockSpec((1, Cout, HW), lambda n: (n, 0, 0)),
                   pl.BlockSpec((1, Cout, 1), lambda n: (n, 0, 0)),
                   pl.BlockSpec((1, Cout, 1), lambda n: (n, 0, 0))),
        scratch_shapes=[pltpu.VMEM((Cin, HW + 2 * pad_lanes), x3.dtype)],
        compiler_params=_mosaic_params(
            ("parallel",),
            [(Cin, HW), (Cout, HW), (9, Cout, Cin), (1, HW), (1, HW)],
            scratch_shapes=[(Cin, HW + 2 * pad_lanes), (Cout, HW)]),
    )(x3, scale.reshape(Cin, 1).astype(jnp.float32),
      bias.reshape(Cin, 1).astype(jnp.float32), mask_l, mask_r, w2taps)
    return y, ps, pq


# ----------------------- kernel 4: BN + residual add + ReLU (in-place into y3) -----------------

def _bn_add_relu_kernel(y_ref, s_ref, b_ref, r_ref, o_ref):
    v = y_ref[0].astype(jnp.float32) * s_ref[...] + b_ref[...] + r_ref[0].astype(jnp.float32)
    o_ref[0] = jnp.maximum(v, 0.0).astype(o_ref.dtype)


def bn_add_relu(y3, res3, scale, bias):
    N, C, HW = y3.shape
    tl = _lane_tile(HW)
    return pl.pallas_call(
        _bn_add_relu_kernel,
        out_shape=jax.ShapeDtypeStruct((N, C, HW), y3.dtype),
        grid=(N, HW // tl),
        in_specs=[pl.BlockSpec((1, C, tl), lambda n, j: (n, 0, j)),
                  pl.BlockSpec((C, 1), lambda n, j: (0, 0)),
                  pl.BlockSpec((C, 1), lambda n, j: (0, 0)),
                  pl.BlockSpec((1, C, tl), lambda n, j: (n, 0, j))],
        out_specs=pl.BlockSpec((1, C, tl), lambda n, j: (n, 0, j)),
        input_output_aliases={0: 0},                    # write in place into y3
        compiler_params=_mosaic_params(("parallel", "parallel"),
                                       [(1, C, tl), (1, C, tl), (1, C, tl)]),
    )(y3, scale.reshape(C, 1).astype(jnp.float32),
      bias.reshape(C, 1).astype(jnp.float32), res3)


# ----------------------- glue (tiny C-length vector math only) -----------------------

def _fold_bn(psum, psumsq, gamma, beta, count, eps=EPS):
    """Training-mode BatchNorm folded to per-channel scale/bias from f32 sum & sum-of-squares."""
    s = jnp.sum(psum, axis=(0, 2))                       # (C,)
    q = jnp.sum(psumsq, axis=(0, 2))
    mean = s / count
    var = jnp.maximum(q / count - mean * mean, 0.0)      # biased variance, clamped
    scale = gamma / jnp.sqrt(var + eps)
    bias = beta - mean * scale
    return scale, bias


def bottleneck_ifd_forward(x_nchw, params, stride=1, use_info_dropout=False,
                           act_dtype=jnp.bfloat16):
    assert stride == 1, "stride>1 / downsample not implemented"
    assert not use_info_dropout  # Info_Dropout is an exact no-op when disabled (see TODO above)
    N, Cin, H, W = x_nchw.shape
    HW = H * W
    # Channels-first, spatial on lanes; activations stored in act_dtype (bf16 by default).
    x3 = x_nchw.reshape(N, Cin, HW).astype(act_dtype)

    w1 = params["w1"].astype(act_dtype)                  # (width, Cin)
    w3 = params["w3"].astype(act_dtype)                  # (Cout, width)
    width = w1.shape[0]
    Cout = w3.shape[0]
    assert Cout == Cin, "identity residual requires Cout == Cin (downsample=None)"

    # conv2 weight OIHW (width, width, 3, 3) -> tap-major (9, Cout2, Cin2)
    w2taps = jnp.transpose(params["w2"].astype(act_dtype), (2, 3, 0, 1)).reshape(9, width, width)

    count = N * H * W

    # K1: conv1 (1x1) + bn1 batch statistics
    y1, ps1, pq1 = pointwise_conv_stats(x3, w1)
    s1, b1 = _fold_bn(ps1, pq1, params["g1"], params["b1"], count)

    # K2: bn1+relu fused into conv2 (3x3, pad=1) + bn2 statistics
    y2, ps2, pq2 = conv3x3_fused(y1, s1, b1, w2taps, H, W)
    s2, b2 = _fold_bn(ps2, pq2, params["g2"], params["b2"], count)

    # K3: bn2+relu fused into conv3 (1x1) + bn3 statistics
    y3, ps3, pq3 = pointwise_conv_stats(y2, w3, scale=s2, bias=b2)
    s3, b3 = _fold_bn(ps3, pq3, params["g3"], params["b3"], count)

    # K4: bn3 + identity add + relu (in place into y3)
    out = bn_add_relu(y3, x3, s3, b3)
    return out.reshape(N, Cout, H, W)                    # NCHW, no transposes


# ----------------------- pure-JAX reference (exact f32) -----------------------

def _ref_forward(x_nchw, params):
    x = x_nchw.astype(jnp.float32)

    def conv(inp, w, pad):
        return lax.conv_general_dilated(inp, w, (1, 1), pad,
                                        dimension_numbers=("NCHW", "OIHW", "NCHW"),
                                        precision=lax.Precision.HIGHEST)

    def bn(y, g, b):
        mean = jnp.mean(y, axis=(0, 2, 3), keepdims=True)
        var = jnp.mean((y - mean) ** 2, axis=(0, 2, 3), keepdims=True)
        return (y - mean) / jnp.sqrt(var + EPS) * g.reshape(1, -1, 1, 1) + b.reshape(1, -1, 1, 1)

    w1 = params["w1"][:, :, None, None]
    w3 = params["w3"][:, :, None, None]
    out = jax.nn.relu(bn(conv(x, w1, ((0, 0), (0, 0))), params["g1"], params["b1"]))
    out = jax.nn.relu(bn(conv(out, params["w2"], ((1, 1), (1, 1))), params["g2"], params["b2"]))
    out = bn(conv(out, w3, ((0, 0), (0, 0))), params["g3"], params["b3"])
    return jax.nn.relu(out + x)


# ----------------------- demo -----------------------

if __name__ == "__main__":
    key = jax.random.PRNGKey(0)
    k1, k2w, k3, kg, kx = jax.random.split(key, 5)

    # BottleneckIFD(inplanes=16, planes=4): width=4, out channels = planes*4 = 16 = inplanes,
    # so the identity add works with downsample=None (stride=1).
    inplanes, planes, expansion = 16, 4, 4
    width = planes                      # base_width=64, groups=1
    cout = planes * expansion

    g1, g2, g3, b1, b2, b3 = jax.random.split(kg, 6)
    params = {
        "w1": 0.1 * jax.random.normal(k1, (width, inplanes), jnp.float32),     # conv1 (O, I)
        "g1": 1.0 + 0.1 * jax.random.normal(g1, (width,), jnp.float32),
        "b1": 0.1 * jax.random.normal(b1, (width,), jnp.float32),
        "w2": 0.1 * jax.random.normal(k2w, (width, width, 3, 3), jnp.float32),  # conv2 OIHW
        "g2": 1.0 + 0.1 * jax.random.normal(g2, (width,), jnp.float32),
        "b2": 0.1 * jax.random.normal(b2, (width,), jnp.float32),
        "w3": 0.1 * jax.random.normal(k3, (cout, width), jnp.float32),          # conv3 (O, I)
        "g3": 1.0 + 0.1 * jax.random.normal(g3, (cout,), jnp.float32),
        "b3": 0.1 * jax.random.normal(b3, (cout,), jnp.float32),
    }

    x = jax.random.normal(kx, (2, inplanes, 16, 16), jnp.float32)   # NCHW, like PyTorch

    fwd = jax.jit(lambda xx, pp: bottleneck_ifd_forward(xx, pp, stride=1,
                                                        use_info_dropout=False,
                                                        act_dtype=jnp.bfloat16))
    out = jax.block_until_ready(fwd(x, params))

    ref = _ref_forward(x, params)
    assert out.shape == ref.shape == (2, cout, 16, 16)
    assert out.dtype == jnp.bfloat16

    out_f = out.astype(jnp.float32)
    assert bool(jnp.all(jnp.isfinite(out_f)))
    max_err = float(jnp.max(jnp.abs(out_f - ref)))
    rel_err = float(jnp.linalg.norm(out_f - ref) / (jnp.linalg.norm(ref) + 1e-12))
    # bf16 activation/weight storage through 3 convs + 3 BNs -> ~0.5-1% typical error;
    # tolerances are set accordingly (accumulation and statistics stay in f32).
    assert rel_err < 3e-2, (rel_err, max_err)
    assert jnp.allclose(out_f, ref, rtol=1e-1, atol=1e-1), (rel_err, max_err)

    print("KERNEL_OK")
</pallas_src>

<mosaic_0001>
module attributes {stable_mosaic.version = 11 : i64} {
  func.func @kernel(%arg0: i32, %arg1: i32, %arg2: memref<1x16x256xbf16, #tpu.memory_space<vmem>>, %arg3: memref<4x16xbf16, #tpu.memory_space<vmem>>, %arg4: memref<1x4x256xbf16, #tpu.memory_space<vmem>>, %arg5: memref<1x4x1xf32, #tpu.memory_space<vmem>>, %arg6: memref<1x4x1xf32, #tpu.memory_space<vmem>>) attributes {dimension_semantics = [#tpu.dimension_semantics<parallel>, #tpu.dimension_semantics<arbitrary>], iteration_bounds = array<i64: 2, 1>, scalar_prefetch = 0 : i64, scratch_operands = 0 : i64, tpu.core_type = #tpu.core_type<tc>, window_params = [{transform_indices = @transform_0, window_bounds = array<i64: 1, 16, 256>}, {pipeline_mode = #tpu.pipeline_mode<synchronous>, transform_indices = @transform_1, window_bounds = array<i64: 4, 16>}, {transform_indices = @transform_2, window_bounds = array<i64: 1, 4, 256>}, {transform_indices = @transform_3, window_bounds = array<i64: 1, 4, 1>}, {transform_indices = @transform_4, window_bounds = array<i64: 1, 4, 1>}]} {
    %c0 = arith.constant 0 : index
    %c0_0 = arith.constant 0 : index
    %c0_1 = arith.constant 0 : index
    %0 = vector.load %arg2[%c0, %c0_0, %c0_1] : memref<1x16x256xbf16, #tpu.memory_space<vmem>>, vector<1x16x256xbf16>
    %1 = vector.shape_cast %0 : vector<1x16x256xbf16> to vector<16x256xbf16>
    %2 = arith.extf %1 : vector<16x256xbf16> to vector<16x256xf32>
    %c0_2 = arith.constant 0 : index
    %c0_3 = arith.constant 0 : index
    %3 = vector.load %arg3[%c0_2, %c0_3] : memref<4x16xbf16, #tpu.memory_space<vmem>>, vector<4x16xbf16>
    %4 = arith.truncf %2 : vector<16x256xf32> to vector<16x256xbf16>
    %cst = arith.constant dense<0.000000e+00> : vector<4x256xf32>
    %5 = tpu.matmul %3, %4, %cst {dimension_numbers = #tpu.dot_dimension_numbers<[1], [0], [0], [1], [0, 0, 1, 1], [], []>} : vector<4x16xbf16>, vector<16x256xbf16>, vector<4x256xf32> -> vector<4x256xf32>
    %6 = arith.truncf %5 : vector<4x256xf32> to vector<4x256xbf16>
    %c0_4 = arith.constant 0 : index
    %c0_5 = arith.constant 0 : index
    %c0_6 = arith.constant 0 : index
    %7 = vector.load %arg4[%c0_4, %c0_5, %c0_6] : memref<1x4x256xbf16, #tpu.memory_space<vmem>>, vector<1x4x256xbf16>
    %8 = vector.shape_cast %7 : vector<1x4x256xbf16> to vector<4x256xbf16>
    %9 = vector.shape_cast %6 : vector<4x256xbf16> to vector<1x4x256xbf16>
    tpu.vector_store %arg4[%c0_4, %c0_5, %c0_6], %9 {strides = array<i32>} : memref<1x4x256xbf16, #tpu.memory_space<vmem>>, vector<1x4x256xbf16>,
    %cst_7 = arith.constant dense<0.000000e+00> : vector<4xf32>
    %10 = vector.multi_reduction <add>, %5, %cst_7 [1] : vector<4x256xf32> to vector<4xf32>
    %11 = vector.shape_cast %10 : vector<4xf32> to vector<4x1xf32>
    %12 = arith.mulf %5, %5 : vector<4x256xf32>
    %cst_8 = arith.constant dense<0.000000e+00> : vector<4xf32>
    %13 = vector.multi_reduction <add>, %12, %cst_8 [1] : vector<4x256xf32> to vector<4xf32>
    %14 = vector.shape_cast %13 : vector<4xf32> to vector<4x1xf32>
    %c0_i32 = arith.constant 0 : i32
    %15 = arith.cmpi eq, %arg1, %c0_i32 : i32
    %16 = arith.extui %15 : i1 to i32
    %c0_i32_9 = arith.constant 0 : i32
    %17 = arith.cmpi ne, %16, %c0_i32_9 : i32
    scf.if %17 {
      %c0_12 = arith.constant 0 : index
      %c0_13 = arith.constant 0 : index
      %c0_14 = arith.constant 0 : index
      %21 = vector.load %arg5[%c0_12, %c0_13, %c0_14] : memref<1x4x1xf32, #tpu.memory_space<vmem>>, vector<1x4x1xf32>
      %22 = vector.shape_cast %21 : vector<1x4x1xf32> to vector<4x1xf32>
      %23 = vector.shape_cast %11 : vector<4x1xf32> to vector<1x4x1xf32>
      tpu.vector_store %arg5[%c0_12, %c0_13, %c0_14], %23 {strides = array<i32>} : memref<1x4x1xf32, #tpu.memory_space<vmem>>, vector<1x4x1xf32>,
      %c0_15 = arith.constant 0 : index
      %c0_16 = arith.constant 0 : index
      %c0_17 = arith.constant 0 : index
      %24 = vector.load %arg6[%c0_15, %c0_16, %c0_17] : memref<1x4x1xf32, #tpu.memory_space<vmem>>, vector<1x4x1xf32>
      %25 = vector.shape_cast %24 : vector<1x4x1xf32> to vector<4x1xf32>
      %26 = vector.shape_cast %14 : vector<4x1xf32> to vector<1x4x1xf32>
      tpu.vector_store %arg6[%c0_15, %c0_16, %c0_17], %26 {strides = array<i32>} : memref<1x4x1xf32, #tpu.memory_space<vmem>>, vector<1x4x1xf32>,
    } else {
    }
    %c0_i32_10 = arith.constant 0 : i32
    %18 = arith.cmpi sgt, %arg1, %c0_i32_10 : i32
    %19 = arith.extui %18 : i1 to i32
    %c0_i32_11 = arith.constant 0 : i32
    %20 = arith.cmpi ne, %19, %c0_i32_11 : i32
    scf.if %20 {
      %c0_12 = arith.constant 0 : index
      %c0_13 = arith.constant 0 : index
      %c0_14 = arith.constant 0 : index
      %21 = vector.load %arg5[%c0_12, %c0_13, %c0_14] : memref<1x4x1xf32, #tpu.memory_space<vmem>>, vector<1x4x1xf32>
      %22 = vector.shape_cast %21 : vector<1x4x1xf32> to vector<4x1xf32>
      %23 = arith.addf %22, %11 : vector<4x1xf32>
      %c0_15 = arith.constant 0 : index
      %c0_16 = arith.constant 0 : index
      %c0_17 = arith.constant 0 : index
      %24 = vector.load %arg5[%c0_15, %c0_16, %c0_17] : memref<1x4x1xf32, #tpu.memory_space<vmem>>, vector<1x4x1xf32>
      %25 = vector.shape_cast %24 : vector<1x4x1xf32> to vector<4x1xf32>
      %26 = vector.shape_cast %23 : vector<4x1xf32> to vector<1x4x1xf32>
      tpu.vector_store %arg5[%c0_15, %c0_16, %c0_17], %26 {strides = array<i32>} : memref<1x4x1xf32, #tpu.memory_space<vmem>>, vector<1x4x1xf32>,
      %c0_18 = arith.constant 0 : index
      %c0_19 = arith.constant 0 : index
      %c0_20 = arith.constant 0 : index
      %27 = vector.load %arg6[%c0_18, %c0_19, %c0_20] : memref<1x4x1xf32, #tpu.memory_space<vmem>>, vector<1x4x1xf32>
      %28 = vector.shape_cast %27 : vector<1x4x1xf32> to vector<4x1xf32>
      %29 = arith.addf %28, %14 : vector<4x1xf32>
      %c0_21 = arith.constant 0 : index
      %c0_22 = arith.constant 0 : index
      %c0_23 = arith.constant 0 : index
      %30 = vector.load %arg6[%c0_21, %c0_22, %c0_23] : memref<1x4x1xf32, #tpu.memory_space<vmem>>, vector<1x4x1xf32>
      %31 = vector.shape_cast %30 : vector<1x4x1xf32> to vector<4x1xf32>
      %32 = vector.shape_cast %29 : vector<4x1xf32> to vector<1x4x1xf32>
      tpu.vector_store %arg6[%c0_21, %c0_22, %c0_23], %32 {strides = array<i32>} : memref<1x4x1xf32, #tpu.memory_space<vmem>>, vector<1x4x1xf32>,
    } else {
    }
    return
  }
  func.func @transform_0(%arg0: i32, %arg1: i32) -> (i32, i32, i32) {
    %c0_i32 = arith.constant 0 : i32
    %c0_i32_0 = arith.constant 0 : i32
    return %arg0, %c0_i32, %arg1 : i32, i32, i32
  }
  func.func @transform_1(%arg0: i32, %arg1: i32) -> (i32, i32) {
    %c0_i32 = arith.constant 0 : i32
    %c0_i32_0 = arith.constant 0 : i32
    %c0_i32_1 = arith.constant 0 : i32
    return %c0_i32, %c0_i32_0 : i32, i32
  }
  func.func @transform_2(%arg0: i32, %arg1: i32) -> (i32, i32, i32) {
    %c0_i32 = arith.constant 0 : i32
    %c0_i32_0 = arith.constant 0 : i32
    return %arg0, %c0_i32, %arg1 : i32, i32, i32
  }
  func.func @transform_3(%arg0: i32, %arg1: i32) -> (i32, i32, i32) {
    %c0_i32 = arith.constant 0 : i32
    %c0_i32_0 = arith.constant 0 : i32
    %c0_i32_1 = arith.constant 0 : i32
    return %arg0, %c0_i32, %c0_i32_0 : i32, i32, i32
  }
  func.func @transform_4(%arg0: i32, %arg1: i32) -> (i32, i32, i32) {
    %c0_i32 = arith.constant 0 : i32
    %c0_i32_0 = arith.constant 0 : i32
    %c0_i32_1 = arith.constant 0 : i32
    return %arg0, %c0_i32, %c0_i32_0 : i32, i32, i32
  }
}

module attributes {stable_mosaic.version = 11 : i64} {
  func.func @kernel(%arg0: i32, %arg1: memref<1x4x256xbf16, #tpu.memory_space<vmem>>, %arg2: memref<4x1xf32, #tpu.memory_space<vmem>>, %arg3: memref<4x1xf32, #tpu.memory_space<vmem>>, %arg4: memref<1x256xbf16, #tpu.memory_space<vmem>>, %arg5: memref<1x256xbf16, #tpu.memory_space<vmem>>, %arg6: memref<9x4x4xbf16, #tpu.memory_space<vmem>>, %arg7: memref<1x4x256xbf16, #tpu.memory_space<vmem>>, %arg8: memref<1x4x1xf32, #tpu.memory_space<vmem>>, %arg9: memref<1x4x1xf32, #tpu.memory_space<vmem>>, %arg10: memref<4x512xbf16, #tpu.memory_space<vmem>>) attributes {dimension_semantics = [#tpu.dimension_semantics<parallel>], iteration_bounds = array<i64: 2>, scalar_prefetch = 0 : i64, scratch_operands = 1 : i64, tpu.core_type = #tpu.core_type<tc>, window_params = [{transform_indices = @transform_0, window_bounds = array<i64: 1, 4, 256>}, {pipeline_mode = #tpu.pipeline_mode<synchronous>, transform_indices = @transform_1, window_bounds = array<i64: 4, 1>}, {pipeline_mode = #tpu.pipeline_mode<synchronous>, transform_indices = @transform_2, window_bounds = array<i64: 4, 1>}, {pipeline_mode = #tpu.pipeline_mode<synchronous>, transform_indices = @transform_3, window_bounds = array<i64: 1, 256>}, {pipeline_mode = #tpu.pipeline_mode<synchronous>, transform_indices = @transform_4, window_bounds = array<i64: 1, 256>}, {pipeline_mode = #tpu.pipeline_mode<synchronous>, transform_indices = @transform_5, window_bounds = array<i64: 9, 4, 4>}, {transform_indices = @transform_6, window_bounds = array<i64: 1, 4, 256>}, {transform_indices = @transform_7, window_bounds = array<i64: 1, 4, 1>}, {transform_indices = @transform_8, window_bounds = array<i64: 1, 4, 1>}]} {
    %cst = arith.constant 0.000000e+00 : bf16
    %0 = vector.broadcast %cst : bf16 to vector<4x128xbf16>
    %c0 = arith.constant 0 : index
    %c0_0 = arith.constant 0 : index
    %1 = vector.load %arg10[%c0, %c0_0] : memref<4x512xbf16, #tpu.memory_space<vmem>>, vector<4x128xbf16>
    tpu.vector_store %arg10[%c0, %c0_0], %0 {strides = array<i32>} : memref<4x512xbf16, #tpu.memory_space<vmem>>, vector<4x128xbf16>,
    %cst_1 = arith.constant 0.000000e+00 : bf16
    %2 = vector.broadcast %cst_1 : bf16 to vector<4x128xbf16>
    %c0_2 = arith.constant 0 : index
    %c384 = arith.constant 384 : index
    %3 = vector.load %arg10[%c0_2, %c384] : memref<4x512xbf16, #tpu.memory_space<vmem>>, vector<4x128xbf16>
    tpu.vector_store %arg10[%c0_2, %c384], %2 {strides = array<i32>} : memref<4x512xbf16, #tpu.memory_space<vmem>>, vector<4x128xbf16>,
    %c0_3 = arith.constant 0 : index
    %c0_4 = arith.constant 0 : index
    %c0_5 = arith.constant 0 : index
    %4 = vector.load %arg1[%c0_3, %c0_4, %c0_5] : memref<1x4x256xbf16, #tpu.memory_space<vmem>>, vector<1x4x256xbf16>
    %5 = vector.shape_cast %4 : vector<1x4x256xbf16> to vector<4x256xbf16>
    %6 = arith.extf %5 : vector<4x256xbf16> to vector<4x256xf32>
    %c0_6 = arith.constant 0 : index
    %c0_7 = arith.constant 0 : index
    %7 = vector.load %arg2[%c0_6, %c0_7] : memref<4x1xf32, #tpu.memory_space<vmem>>, vector<4x1xf32>
    %8 = vector.broadcast %7 : vector<4x1xf32> to vector<4x256xf32>
    %9 = arith.mulf %6, %8 : vector<4x256xf32>
    %c0_8 = arith.constant 0 : index
    %c0_9 = arith.constant 0 : index
    %10 = vector.load %arg3[%c0_8, %c0_9] : memref<4x1xf32, #tpu.memory_space<vmem>>, vector<4x1xf32>
    %11 = vector.broadcast %10 : vector<4x1xf32> to vector<4x256xf32>
    %12 = arith.addf %9, %11 : vector<4x256xf32>
    %cst_10 = arith.constant 0.000000e+00 : f32
    %13 = vector.broadcast %cst_10 : f32 to vector<4x256xf32>
    %14 = arith.maximumf %12, %13 : vector<4x256xf32>
    %15 = arith.truncf %14 : vector<4x256xf32> to vector<4x256xbf16>
    %c0_11 = arith.constant 0 : index
    %c128 = arith.constant 128 : index
    %16 = vector.load %arg10[%c0_11, %c128] : memref<4x512xbf16, #tpu.memory_space<vmem>>, vector<4x256xbf16>
    tpu.vector_store %arg10[%c0_11, %c128], %15 {strides = array<i32>} : memref<4x512xbf16, #tpu.memory_space<vmem>>, vector<4x256xbf16>,
    %cst_12 = arith.constant 0.000000e+00 : f32
    %17 = vector.broadcast %cst_12 : f32 to vector<4x256xf32>
    %c0_13 = arith.constant 0 : index
    %c111 = arith.constant 111 : index
    %18 = vector.load %arg10[%c0_13, %c111] : memref<4x512xbf16, #tpu.memory_space<vmem>>, vector<4x256xbf16>
    %c0_14 = arith.constant 0 : index
    %c0_15 = arith.constant 0 : index
    %19 = vector.load %arg4[%c0_14, %c0_15] : memref<1x256xbf16, #tpu.memory_space<vmem>>, vector<1x256xbf16>
    %20 = vector.broadcast %19 : vector<1x256xbf16> to vector<4x256xbf16>
    %21 = arith.mulf %18, %20 : vector<4x256xbf16>
    %c0_16 = arith.constant 0 : index
    %c0_17 = arith.constant 0 : index
    %c0_18 = arith.constant 0 : index
    %22 = vector.load %arg6[%c0_16, %c0_17, %c0_18] : memref<9x4x4xbf16, #tpu.memory_space<vmem>>, vector<1x4x4xbf16>
    %23 = vector.shape_cast %22 : vector<1x4x4xbf16> to vector<4x4xbf16>
    %cst_19 = arith.constant dense<0.000000e+00> : vector<4x256xf32>
    %24 = tpu.matmul %23, %21, %cst_19 {dimension_numbers = #tpu.dot_dimension_numbers<[1], [0], [0], [1], [0, 0, 1, 1], [], []>} : vector<4x4xbf16>, vector<4x256xbf16>, vector<4x256xf32> -> vector<4x256xf32>
    %25 = arith.addf %17, %24 : vector<4x256xf32>
    %c0_20 = arith.constant 0 : index
    %c112 = arith.constant 112 : index
    %26 = vector.load %arg10[%c0_20, %c112] : memref<4x512xbf16, #tpu.memory_space<vmem>>, vector<4x256xbf16>
    %c1 = arith.constant 1 : index
    %c0_21 = arith.constant 0 : index
    %c0_22 = arith.constant 0 : index
    %27 = vector.load %arg6[%c1, %c0_21, %c0_22] : memref<9x4x4xbf16, #tpu.memory_space<vmem>>, vector<1x4x4xbf16>
    %28 = vector.shape_cast %27 : vector<1x4x4xbf16> to vector<4x4xbf16>
    %cst_23 = arith.constant dense<0.000000e+00> : vector<4x256xf32>
    %29 = tpu.matmul %28, %26, %cst_23 {dimension_numbers = #tpu.dot_dimension_numbers<[1], [0], [0], [1], [0, 0, 1, 1], [], []>} : vector<4x4xbf16>, vector<4x256xbf16>, vector<4x256xf32> -> vector<4x256xf32>
    %30 = arith.addf %25, %29 : vector<4x256xf32>
    %c0_24 = arith.constant 0 : index
    %c113 = arith.constant 113 : index
    %31 = vector.load %arg10[%c0_24, %c113] : memref<4x512xbf16, #tpu.memory_space<vmem>>, vector<4x256xbf16>
    %c0_25 = arith.constant 0 : index
    %c0_26 = arith.constant 0 : index
    %32 = vector.load %arg5[%c0_25, %c0_26] : memref<1x256xbf16, #tpu.memory_space<vmem>>, vector<1x256xbf16>
    %33 = vector.broadcast %32 : vector<1x256xbf16> to vector<4x256xbf16>
    %34 = arith.mulf %31, %33 : vector<4x256xbf16>
    %c2 = arith.constant 2 : index
    %c0_27 = arith.constant 0 : index
    %c0_28 = arith.constant 0 : index
    %35 = vector.load %arg6[%c2, %c0_27, %c0_28] : memref<9x4x4xbf16, #tpu.memory_space<vmem>>, vector<1x4x4xbf16>
    %36 = vector.shape_cast %35 : vector<1x4x4xbf16> to vector<4x4xbf16>
    %cst_29 = arith.constant dense<0.000000e+00> : vector<4x256xf32>
    %37 = tpu.matmul %36, %34, %cst_29 {dimension_numbers = #tpu.dot_dimension_numbers<[1], [0], [0], [1], [0, 0, 1, 1], [], []>} : vector<4x4xbf16>, vector<4x256xbf16>, vector<4x256xf32> -> vector<4x256xf32>
    %38 = arith.addf %30, %37 : vector<4x256xf32>
    %c0_30 = arith.constant 0 : index
    %c127 = arith.constant 127 : index
    %39 = vector.load %arg10[%c0_30, %c127] : memref<4x512xbf16, #tpu.memory_space<vmem>>, vector<4x256xbf16>
    %c0_31 = arith.constant 0 : index
    %c0_32 = arith.constant 0 : index
    %40 = vector.load %arg4[%c0_31, %c0_32] : memref<1x256xbf16, #tpu.memory_space<vmem>>, vector<1x256xbf16>
    %41 = vector.broadcast %40 : vector<1x256xbf16> to vector<4x256xbf16>
    %42 = arith.mulf %39, %41 : vector<4x256xbf16>
    %c3 = arith.constant 3 : index
    %c0_33 = arith.constant 0 : index
    %c0_34 = arith.constant 0 : index
    %43 = vector.load %arg6[%c3, %c0_33, %c0_34] : memref<9x4x4xbf16, #tpu.memory_space<vmem>>, vector<1x4x4xbf16>
    %44 = vector.shape_cast %43 : vector<1x4x4xbf16> to vector<4x4xbf16>
    %cst_35 = arith.constant dense<0.000000e+00> : vector<4x256xf32>
    %45 = tpu.matmul %44, %42, %cst_35 {dimension_numbers = #tpu.dot_dimension_numbers<[1], [0], [0], [1], [0, 0, 1, 1], [], []>} : vector<4x4xbf16>, vector<4x256xbf16>, vector<4x256xf32> -> vector<4x256xf32>
    %46 = arith.addf %38, %45 : vector<4x256xf32>
    %c0_36 = arith.constant 0 : index
    %c128_37 = arith.constant 128 : index
    %47 = vector.load %arg10[%c0_36, %c128_37] : memref<4x512xbf16, #tpu.memory_space<vmem>>, vector<4x256xbf16>
    %c4 = arith.constant 4 : index
    %c0_38 = arith.constant 0 : index
    %c0_39 = arith.constant 0 : index
    %48 = vector.load %arg6[%c4, %c0_38, %c0_39] : memref<9x4x4xbf16, #tpu.memory_space<vmem>>, vector<1x4x4xbf16>
    %49 = vector.shape_cast %48 : vector<1x4x4xbf16> to vector<4x4xbf16>
    %cst_40 = arith.constant dense<0.000000e+00> : vector<4x256xf32>
    %50 = tpu.matmul %49, %47, %cst_40 {dimension_numbers = #tpu.dot_dimension_numbers<[1], [0], [0], [1], [0, 0, 1, 1], [], []>} : vector<4x4xbf16>, vector<4x256xbf16>, vector<4x256xf32> -> vector<4x256xf32>
    %51 = arith.addf %46, %50 : vector<4x256xf32>
    %c0_41 = arith.constant 0 : index
    %c129 = arith.constant 129 : index
    %52 = vector.load %arg10[%c0_41, %c129] : memref<4x512xbf16, #tpu.memory_space<vmem>>, vector<4x256xbf16>
    %c0_42 = arith.constant 0 : index
    %c0_43 = arith.constant 0 : index
    %53 = vector.load %arg5[%c0_42, %c0_43] : memref<1x256xbf16, #tpu.memory_space<vmem>>, vector<1x256xbf16>
    %54 = vector.broadcast %53 : vector<1x256xbf16> to vector<4x256xbf16>
    %55 = arith.mulf %52, %54 : vector<4x256xbf16>
    %c5 = arith.constant 5 : index
    %c0_44 = arith.constant 0 : index
    %c0_45 = arith.constant 0 : index
    %56 = vector.load %arg6[%c5, %c0_44, %c0_45] : memref<9x4x4xbf16, #tpu.memory_space<vmem>>, vector<1x4x4xbf16>
    %57 = vector.shape_cast %56 : vector<1x4x4xbf16> to vector<4x4xbf16>
    %cst_46 = arith.constant dense<0.000000e+00> : vector<4x256xf32>
    %58 = tpu.matmul %57, %55, %cst_46 {dimension_numbers = #tpu.dot_dimension_numbers<[1], [0], [0], [1], [0, 0, 1, 1], [], []>} : vector<4x4xbf16>, vector<4x256xbf16>, vector<4x256xf32> -> vector<4x256xf32>
    %59 = arith.addf %51, %58 : vector<4x256xf32>
    %c0_47 = arith.constant 0 : index
    %c143 = arith.constant 143 : index
    %60 = vector.load %arg10[%c0_47, %c143] : memref<4x512xbf16, #tpu.memory_space<vmem>>, vector<4x256xbf16>
    %c0_48 = arith.constant 0 : index
    %c0_49 = arith.constant 0 : index
    %61 = vector.load %arg4[%c0_48, %c0_49] : memref<1x256xbf16, #tpu.memory_space<vmem>>, vector<1x256xbf16>
    %62 = vector.broadcast %61 : vector<1x256xbf16> to vector<4x256xbf16>
    %63 = arith.mulf %60, %62 : vector<4x256xbf16>
    %c6 = arith.constant 6 : index
    %c0_50 = arith.constant 0 : index
    %c0_51 = arith.constant 0 : index
    %64 = vector.load %arg6[%c6, %c0_50, %c0_51] : memref<9x4x4xbf16, #tpu.memory_space<vmem>>, vector<1x4x4xbf16>
    %65 = vector.shape_cast %64 : vector<1x4x4xbf16> to vector<4x4xbf16>
    %cst_52 = arith.constant dense<0.000000e+00> : vector<4x256xf32>
    %66 = tpu.matmul %65, %63, %cst_52 {dimension_numbers = #tpu.dot_dimension_numbers<[1], [0], [0], [1], [0, 0, 1, 1], [], []>} : vector<4x4xbf16>, vector<4x256xbf16>, vector<4x256xf32> -> vector<4x256xf32>
    %67 = arith.addf %59, %66 : vector<4x256xf32>
    %c0_53 = arith.constant 0 : index
    %c144 = arith.constant 144 : index
    %68 = vector.load %arg10[%c0_53, %c144] : memref<4x512xbf16, #tpu.memory_space<vmem>>, vector<4x256xbf16>
    %c7 = arith.constant 7 : index
    %c0_54 = arith.constant 0 : index
    %c0_55 = arith.constant 0 : index
    %69 = vector.load %arg6[%c7, %c0_54, %c0_55] : memref<9x4x4xbf16, #tpu.memory_space<vmem>>, vector<1x4x4xbf16>
    %70 = vector.shape_cast %69 : vector<1x4x4xbf16> to vector<4x4xbf16>
    %cst_56 = arith.constant dense<0.000000e+00> : vector<4x256xf32>
    %71 = tpu.matmul %70, %68, %cst_56 {dimension_numbers = #tpu.dot_dimension_numbers<[1], [0], [0], [1], [0, 0, 1, 1], [], []>} : vector<4x4xbf16>, vector<4x256xbf16>, vector<4x256xf32> -> vector<4x256xf32>
    %72 = arith.addf %67, %71 : vector<4x256xf32>
    %c0_57 = arith.constant 0 : index
    %c145 = arith.constant 145 : index
    %73 = vector.load %arg10[%c0_57, %c145] : memref<4x512xbf16, #tpu.memory_space<vmem>>, vector<4x256xbf16>
    %c0_58 = arith.constant 0 : index
    %c0_59 = arith.constant 0 : index
    %74 = vector.load %arg5[%c0_58, %c0_59] : memref<1x256xbf16, #tpu.memory_space<vmem>>, vector<1x256xbf16>
    %75 = vector.broadcast %74 : vector<1x256xbf16> to vector<4x256xbf16>
    %76 = arith.mulf %73, %75 : vector<4x256xbf16>
    %c8 = arith.constant 8 : index
    %c0_60 = arith.constant 0 : index
    %c0_61 = arith.constant 0 : index
    %77 = vector.load %arg6[%c8, %c0_60, %c0_61] : memref<9x4x4xbf16, #tpu.memory_space<vmem>>, vector<1x4x4xbf16>
    %78 = vector.shape_cast %77 : vector<1x4x4xbf16> to vector<4x4xbf16>
    %cst_62 = arith.constant dense<0.000000e+00> : vector<4x256xf32>
    %79 = tpu.matmul %78, %76, %cst_62 {dimension_numbers = #tpu.dot_dimension_numbers<[1], [0], [0], [1], [0, 0, 1, 1], [], []>} : vector<4x4xbf16>, vector<4x256xbf16>, vector<4x256xf32> -> vector<4x256xf32>
    %80 = arith.addf %72, %79 : vector<4x256xf32>
    %81 = arith.truncf %80 : vector<4x256xf32> to vector<4x256xbf16>
    %c0_63 = arith.constant 0 : index
    %c0_64 = arith.constant 0 : index
    %c0_65 = arith.constant 0 : index
    %82 = vector.load %arg7[%c0_63, %c0_64, %c0_65] : memref<1x4x256xbf16, #tpu.memory_space<vmem>>, vector<1x4x256xbf16>
    %83 = vector.shape_cast %82 : vector<1x4x256xbf16> to vector<4x256xbf16>
    %84 = vector.shape_cast %81 : vector<4x256xbf16> to vector<1x4x256xbf16>
    tpu.vector_store %arg7[%c0_63, %c0_64, %c0_65], %84 {strides = array<i32>} : memref<1x4x256xbf16, #tpu.memory_space<vmem>>, vector<1x4x256xbf16>,
    %cst_66 = arith.constant dense<0.000000e+00> : vector<4xf32>
    %85 = vector.multi_reduction <add>, %80, %cst_66 [1] : vector<4x256xf32> to vector<4xf32>
    %86 = vector.shape_cast %85 : vector<4xf32> to vector<4x1xf32>
    %c0_67 = arith.constant 0 : index
    %c0_68 = arith.constant 0 : index
    %c0_69 = arith.constant 0 : index
    %87 = vector.load %arg8[%c0_67, %c0_68, %c0_69] : memref<1x4x1xf32, #tpu.memory_space<vmem>>, vector<1x4x1xf32>
    %88 = vector.shape_cast %87 : vector<1x4x1xf32> to vector<4x1xf32>
    %89 = vector.shape_cast %86 : vector<4x1xf32> to vector<1x4x1xf32>
    tpu.vector_store %arg8[%c0_67, %c0_68, %c0_69], %89 {strides = array<i32>} : memref<1x4x1xf32, #tpu.memory_space<vmem>>, vector<1x4x1xf32>,
    %90 = arith.mulf %80, %80 : vector<4x256xf32>
    %cst_70 = arith.constant dense<0.000000e+00> : vector<4xf32>
    %91 = vector.multi_reduction <add>, %90, %cst_70 [1] : vector<4x256xf32> to vector<4xf32>
    %92 = vector.shape_cast %91 : vector<4xf32> to vector<4x1xf32>
    %c0_71 = arith.constant 0 : index
    %c0_72 = arith.constant 0 : index
    %c0_73 = arith.constant 0 : index
    %93 = vector.load %arg9[%c0_71, %c0_72, %c0_73] : memref<1x4x1xf32, #tpu.memory_space<vmem>>, vector<1x4x1xf32>
    %94 = vector.shape_cast %93 : vector<1x4x1xf32> to vector<4x1xf32>
    %95 = vector.shape_cast %92 : vector<4x1xf32> to vector<1x4x1xf32>
    tpu.vector_store %arg9[%c0_71, %c0_72, %c0_73], %95 {strides = array<i32>} : memref<1x4x1xf32, #tpu.memory_space<vmem>>, vector<1x4x1xf32>,
    return
  }
  func.func @transform_0(%arg0: i32) -> (i32, i32, i32) {
    %c0_i32 = arith.constant 0 : i32
    %c0_i32_0 = arith.constant 0 : i32
    %c0_i32_1 = arith.constant 0 : i32
    return %arg0, %c0_i32, %c0_i32_0 : i32, i32, i32
  }
  func.func @transform_1(%arg0: i32) -> (i32, i32) {
    %c0_i32 = arith.constant 0 : i32
    %c0_i32_0 = arith.constant 0 : i32
    %c0_i32_1 = arith.constant 0 : i32
    return %c0_i32, %c0_i32_0 : i32, i32
  }
  func.func @transform_2(%arg0: i32) -> (i32, i32) {
    %c0_i32 = arith.constant 0 : i32
    %c0_i32_0 = arith.constant 0 : i32
    %c0_i32_1 = arith.constant 0 : i32
    return %c0_i32, %c0_i32_0 : i32, i32
  }
  func.func @transform_3(%arg0: i32) -> (i32, i32) {
    %c0_i32 = arith.constant 0 : i32
    %c0_i32_0 = arith.constant 0 : i32
    %c0_i32_1 = arith.constant 0 : i32
    return %c0_i32, %c0_i32_0 : i32, i32
  }
  func.func @transform_4(%arg0: i32) -> (i32, i32) {
    %c0_i32 = arith.constant 0 : i32
    %c0_i32_0 = arith.constant 0 : i32
    %c0_i32_1 = arith.constant 0 : i32
    return %c0_i32, %c0_i32_0 : i32, i32
  }
  func.func @transform_5(%arg0: i32) -> (i32, i32, i32) {
    %c0_i32 = arith.constant 0 : i32
    %c0_i32_0 = arith.constant 0 : i32
    %c0_i32_1 = arith.constant 0 : i32
    %c0_i32_2 = arith.constant 0 : i32
    return %c0_i32, %c0_i32_0, %c0_i32_1 : i32, i32, i32
  }
  func.func @transform_6(%arg0: i32) -> (i32, i32, i32) {
    %c0_i32 = arith.constant 0 : i32
    %c0_i32_0 = arith.constant 0 : i32
    %c0_i32_1 = arith.constant 0 : i32
    return %arg0, %c0_i32, %c0_i32_0 : i32, i32, i32
  }
  func.func @transform_7(%arg0: i32) -> (i32, i32, i32) {
    %c0_i32 = arith.constant 0 : i32
    %c0_i32_0 = arith.constant 0 : i32
    %c0_i32_1 = arith.constant 0 : i32
    return %arg0, %c0_i32, %c0_i32_0 : i32, i32, i32
  }
  func.func @transform_8(%arg0: i32) -> (i32, i32, i32) {
    %c0_i32 = arith.constant 0 : i32
    %c0_i32_0 = arith.constant 0 : i32
    %c0_i32_1 = arith.constant 0 : i32
    return %arg0, %c0_i32, %c0_i32_0 : i32, i32, i32
  }
}

module attributes {stable_mosaic.version = 11 : i64} {
  func.func @kernel(%arg0: i32, %arg1: i32, %arg2: memref<1x4x256xbf16, #tpu.memory_space<vmem>>, %arg3: memref<4x1xf32, #tpu.memory_space<vmem>>, %arg4: memref<4x1xf32, #tpu.memory_space<vmem>>, %arg5: memref<16x4xbf16, #tpu.memory_space<vmem>>, %arg6: memref<1x16x256xbf16, #tpu.memory_space<vmem>>, %arg7: memref<1x16x1xf32, #tpu.memory_space<vmem>>, %arg8: memref<1x16x1xf32, #tpu.memory_space<vmem>>) attributes {dimension_semantics = [#tpu.dimension_semantics<parallel>, #tpu.dimension_semantics<arbitrary>], iteration_bounds = array<i64: 2, 1>, scalar_prefetch = 0 : i64, scratch_operands = 0 : i64, tpu.core_type = #tpu.core_type<tc>, window_params = [{transform_indices = @transform_0, window_bounds = array<i64: 1, 4, 256>}, {pipeline_mode = #tpu.pipeline_mode<synchronous>, transform_indices = @transform_1, window_bounds = array<i64: 4, 1>}, {pipeline_mode = #tpu.pipeline_mode<synchronous>, transform_indices = @transform_2, window_bounds = array<i64: 4, 1>}, {pipeline_mode = #tpu.pipeline_mode<synchronous>, transform_indices = @transform_3, window_bounds = array<i64: 16, 4>}, {transform_indices = @transform_4, window_bounds = array<i64: 1, 16, 256>}, {transform_indices = @transform_5, window_bounds = array<i64: 1, 16, 1>}, {transform_indices = @transform_6, window_bounds = array<i64: 1, 16, 1>}]} {
    %c0 = arith.constant 0 : index
    %c0_0 = arith.constant 0 : index
    %c0_1 = arith.constant 0 : index
    %0 = vector.load %arg2[%c0, %c0_0, %c0_1] : memref<1x4x256xbf16, #tpu.memory_space<vmem>>, vector<1x4x256xbf16>
    %1 = vector.shape_cast %0 : vector<1x4x256xbf16> to vector<4x256xbf16>
    %2 = arith.extf %1 : vector<4x256xbf16> to vector<4x256xf32>
    %c0_2 = arith.constant 0 : index
    %c0_3 = arith.constant 0 : index
    %3 = vector.load %arg3[%c0_2, %c0_3] : memref<4x1xf32, #tpu.memory_space<vmem>>, vector<4x1xf32>
    %4 = vector.broadcast %3 : vector<4x1xf32> to vector<4x256xf32>
    %5 = arith.mulf %2, %4 : vector<4x256xf32>
    %c0_4 = arith.constant 0 : index
    %c0_5 = arith.constant 0 : index
    %6 = vector.load %arg4[%c0_4, %c0_5] : memref<4x1xf32, #tpu.memory_space<vmem>>, vector<4x1xf32>
    %7 = vector.broadcast %6 : vector<4x1xf32> to vector<4x256xf32>
    %8 = arith.addf %5, %7 : vector<4x256xf32>
    %cst = arith.constant 0.000000e+00 : f32
    %9 = vector.broadcast %cst : f32 to vector<4x256xf32>
    %10 = arith.maximumf %8, %9 : vector<4x256xf32>
    %c0_6 = arith.constant 0 : index
    %c0_7 = arith.constant 0 : index
    %11 = vector.load %arg5[%c0_6, %c0_7] : memref<16x4xbf16, #tpu.memory_space<vmem>>, vector<16x4xbf16>
    %12 = arith.truncf %10 : vector<4x256xf32> to vector<4x256xbf16>
    %cst_8 = arith.constant dense<0.000000e+00> : vector<16x256xf32>
    %13 = tpu.matmul %11, %12, %cst_8 {dimension_numbers = #tpu.dot_dimension_numbers<[1], [0], [0], [1], [0, 0, 1, 1], [], []>} : vector<16x4xbf16>, vector<4x256xbf16>, vector<16x256xf32> -> vector<16x256xf32>
    %14 = arith.truncf %13 : vector<16x256xf32> to vector<16x256xbf16>
    %c0_9 = arith.constant 0 : index
    %c0_10 = arith.constant 0 : index
    %c0_11 = arith.constant 0 : index
    %15 = vector.load %arg6[%c0_9, %c0_10, %c0_11] : memref<1x16x256xbf16, #tpu.memory_space<vmem>>, vector<1x16x256xbf16>
    %16 = vector.shape_cast %15 : vector<1x16x256xbf16> to vector<16x256xbf16>
    %17 = vector.shape_cast %14 : vector<16x256xbf16> to vector<1x16x256xbf16>
    tpu.vector_store %arg6[%c0_9, %c0_10, %c0_11], %17 {strides = array<i32>} : memref<1x16x256xbf16, #tpu.memory_space<vmem>>, vector<1x16x256xbf16>,
    %cst_12 = arith.constant dense<0.000000e+00> : vector<16xf32>
    %18 = vector.multi_reduction <add>, %13, %cst_12 [1] : vector<16x256xf32> to vector<16xf32>
    %19 = vector.shape_cast %18 : vector<16xf32> to vector<16x1xf32>
    %20 = arith.mulf %13, %13 : vector<16x256xf32>
    %cst_13 = arith.constant dense<0.000000e+00> : vector<16xf32>
    %21 = vector.multi_reduction <add>, %20, %cst_13 [1] : vector<16x256xf32> to vector<16xf32>
    %22 = vector.shape_cast %21 : vector<16xf32> to vector<16x1xf32>
    %c0_i32 = arith.constant 0 : i32
    %23 = arith.cmpi eq, %arg1, %c0_i32 : i32
    %24 = arith.extui %23 : i1 to i32
    %c0_i32_14 = arith.constant 0 : i32
    %25 = arith.cmpi ne, %24, %c0_i32_14 : i32
    scf.if %25 {
      %c0_17 = arith.constant 0 : index
      %c0_18 = arith.constant 0 : index
      %c0_19 = arith.constant 0 : index
      %29 = vector.load %arg7[%c0_17, %c0_18, %c0_19] : memref<1x16x1xf32, #tpu.memory_space<vmem>>, vector<1x16x1xf32>
      %30 = vector.shape_cast %29 : vector<1x16x1xf32> to vector<16x1xf32>
      %31 = vector.shape_cast %19 : vector<16x1xf32> to vector<1x16x1xf32>
      tpu.vector_store %arg7[%c0_17, %c0_18, %c0_19], %31 {strides = array<i32>} : memref<1x16x1xf32, #tpu.memory_space<vmem>>, vector<1x16x1xf32>,
      %c0_20 = arith.constant 0 : index
      %c0_21 = arith.constant 0 : index
      %c0_22 = arith.constant 0 : index
      %32 = vector.load %arg8[%c0_20, %c0_21, %c0_22] : memref<1x16x1xf32, #tpu.memory_space<vmem>>, vector<1x16x1xf32>
      %33 = vector.shape_cast %32 : vector<1x16x1xf32> to vector<16x1xf32>
      %34 = vector.shape_cast %22 : vector<16x1xf32> to vector<1x16x1xf32>
      tpu.vector_store %arg8[%c0_20, %c0_21, %c0_22], %34 {strides = array<i32>} : memref<1x16x1xf32, #tpu.memory_space<vmem>>, vector<1x16x1xf32>,
    } else {
    }
    %c0_i32_15 = arith.constant 0 : i32
    %26 = arith.cmpi sgt, %arg1, %c0_i32_15 : i32
    %27 = arith.extui %26 : i1 to i32
    %c0_i32_16 = arith.constant 0 : i32
    %28 = arith.cmpi ne, %27, %c0_i32_16 : i32
    scf.if %28 {
      %c0_17 = arith.constant 0 : index
      %c0_18 = arith.constant 0 : index
      %c0_19 = arith.constant 0 : index
      %29 = vector.load %arg7[%c0_17, %c0_18, %c0_19] : memref<1x16x1xf32, #tpu.memory_space<vmem>>, vector<1x16x1xf32>
      %30 = vector.shape_cast %29 : vector<1x16x1xf32> to vector<16x1xf32>
      %31 = arith.addf %30, %19 : vector<16x1xf32>
      %c0_20 = arith.constant 0 : index
      %c0_21 = arith.constant 0 : index
      %c0_22 = arith.constant 0 : index
      %32 = vector.load %arg7[%c0_20, %c0_21, %c0_22] : memref<1x16x1xf32, #tpu.memory_space<vmem>>, vector<1x16x1xf32>
      %33 = vector.shape_cast %32 : vector<1x16x1xf32> to vector<16x1xf32>
      %34 = vector.shape_cast %31 : vector<16x1xf32> to vector<1x16x1xf32>
      tpu.vector_store %arg7[%c0_20, %c0_21, %c0_22], %34 {strides = array<i32>} : memref<1x16x1xf32, #tpu.memory_space<vmem>>, vector<1x16x1xf32>,
      %c0_23 = arith.constant 0 : index
      %c0_24 = arith.constant 0 : index
      %c0_25 = arith.constant 0 : index
      %35 = vector.load %arg8[%c0_23, %c0_24, %c0_25] : memref<1x16x1xf32, #tpu.memory_space<vmem>>, vector<1x16x1xf32>
      %36 = vector.shape_cast %35 : vector<1x16x1xf32> to vector<16x1xf32>
      %37 = arith.addf %36, %22 : vector<16x1xf32>
      %c0_26 = arith.constant 0 : index
      %c0_27 = arith.constant 0 : index
      %c0_28 = arith.constant 0 : index
      %38 = vector.load %arg8[%c0_26, %c0_27, %c0_28] : memref<1x16x1xf32, #tpu.memory_space<vmem>>, vector<1x16x1xf32>
      %39 = vector.shape_cast %38 : vector<1x16x1xf32> to vector<16x1xf32>
      %40 = vector.shape_cast %37 : vector<16x1xf32> to vector<1x16x1xf32>
      tpu.vector_store %arg8[%c0_26, %c0_27, %c0_28], %40 {strides = array<i32>} : memref<1x16x1xf32, #tpu.memory_space<vmem>>, vector<1x16x1xf32>,
    } else {
    }
    return
  }
  func.func @transform_0(%arg0: i32, %arg1: i32) -> (i32, i32, i32) {
    %c0_i32 = arith.constant 0 : i32
    %c0_i32_0 = arith.constant 0 : i32
    return %arg0, %c0_i32, %arg1 : i32, i32, i32
  }
  func.func @transform_1(%arg0: i32, %arg1: i32) -> (i32, i32) {
    %c0_i32 = arith.constant 0 : i32
    %c0_i32_0 = arith.constant 0 : i32
    %c0_i32_1 = arith.constant 0 : i32
    return %c0_i32, %c0_i32_0 : i32, i32
  }
  func.func @transform_2(%arg0: i32, %arg1: i32) -> (i32, i32) {
    %c0_i32 = arith.constant 0 : i32
    %c0_i32_0 = arith.constant 0 : i32
    %c0_i32_1 = arith.constant 0 : i32
    return %c0_i32, %c0_i32_0 : i32, i32
  }
  func.func @transform_3(%arg0: i32, %arg1: i32) -> (i32, i32) {
    %c0_i32 = arith.constant 0 : i32
    %c0_i32_0 = arith.constant 0 : i32
    %c0_i32_1 = arith.constant 0 : i32
    return %c0_i32, %c0_i32_0 : i32, i32
  }
  func.func @transform_4(%arg0: i32, %arg1: i32) -> (i32, i32, i32) {
    %c0_i32 = arith.constant 0 : i32
    %c0_i32_0 = arith.constant 0 : i32
    return %arg0, %c0_i32, %arg1 : i32, i32, i32
  }
  func.func @transform_5(%arg0: i32, %arg1: i32) -> (i32, i32, i32) {
    %c0_i32 = arith.constant 0 : i32
    %c0_i32_0 = arith.constant 0 : i32
    %c0_i32_1 = arith.constant 0 : i32
    return %arg0, %c0_i32, %c0_i32_0 : i32, i32, i32
  }
  func.func @transform_6(%arg0: i32, %arg1: i32) -> (i32, i32, i32) {
    %c0_i32 = arith.constant 0 : i32
    %c0_i32_0 = arith.constant 0 : i32
    %c0_i32_1 = arith.constant 0 : i32
    return %arg0, %c0_i32, %c0_i32_0 : i32, i32, i32
  }
}

module attributes {stable_mosaic.version = 11 : i64} {
  func.func @_bn_add_relu_kernel(%arg0: i32, %arg1: i32, %arg2: memref<1x16x256xbf16, #tpu.memory_space<vmem>>, %arg3: memref<16x1xf32, #tpu.memory_space<vmem>>, %arg4: memref<16x1xf32, #tpu.memory_space<vmem>>, %arg5: memref<1x16x256xbf16, #tpu.memory_space<vmem>>, %arg6: memref<1x16x256xbf16, #tpu.memory_space<vmem>>) attributes {dimension_semantics = [#tpu.dimension_semantics<parallel>, #tpu.dimension_semantics<parallel>], iteration_bounds = array<i64: 2, 1>, scalar_prefetch = 0 : i64, scratch_operands = 0 : i64, tpu.core_type = #tpu.core_type<tc>, window_params = [{transform_indices = @transform_0, window_bounds = array<i64: 1, 16, 256>}, {pipeline_mode = #tpu.pipeline_mode<synchronous>, transform_indices = @transform_1, window_bounds = array<i64: 16, 1>}, {pipeline_mode = #tpu.pipeline_mode<synchronous>, transform_indices = @transform_2, window_bounds = array<i64: 16, 1>}, {transform_indices = @transform_3, window_bounds = array<i64: 1, 16, 256>}, {transform_indices = @transform_4, window_bounds = array<i64: 1, 16, 256>}]} {
    %c0 = arith.constant 0 : index
    %c0_0 = arith.constant 0 : index
    %c0_1 = arith.constant 0 : index
    %0 = vector.load %arg2[%c0, %c0_0, %c0_1] : memref<1x16x256xbf16, #tpu.memory_space<vmem>>, vector<1x16x256xbf16>
    %1 = vector.shape_cast %0 : vector<1x16x256xbf16> to vector<16x256xbf16>
    %2 = arith.extf %1 : vector<16x256xbf16> to vector<16x256xf32>
    %c0_2 = arith.constant 0 : index
    %c0_3 = arith.constant 0 : index
    %3 = vector.load %arg3[%c0_2, %c0_3] : memref<16x1xf32, #tpu.memory_space<vmem>>, vector<16x1xf32>
    %4 = vector.broadcast %3 : vector<16x1xf32> to vector<16x256xf32>
    %5 = arith.mulf %2, %4 : vector<16x256xf32>
    %c0_4 = arith.constant 0 : index
    %c0_5 = arith.constant 0 : index
    %6 = vector.load %arg4[%c0_4, %c0_5] : memref<16x1xf32, #tpu.memory_space<vmem>>, vector<16x1xf32>
    %7 = vector.broadcast %6 : vector<16x1xf32> to vector<16x256xf32>
    %8 = arith.addf %5, %7 : vector<16x256xf32>
    %c0_6 = arith.constant 0 : index
    %c0_7 = arith.constant 0 : index
    %c0_8 = arith.constant 0 : index
    %9 = vector.load %arg5[%c0_6, %c0_7, %c0_8] : memref<1x16x256xbf16, #tpu.memory_space<vmem>>, vector<1x16x256xbf16>
    %10 = vector.shape_cast %9 : vector<1x16x256xbf16> to vector<16x256xbf16>
    %11 = arith.extf %10 : vector<16x256xbf16> to vector<16x256xf32>
    %12 = arith.addf %8, %11 : vector<16x256xf32>
    %cst = arith.constant 0.000000e+00 : f32
    %13 = vector.broadcast %cst : f32 to vector<16x256xf32>
    %14 = arith.maximumf %12, %13 : vector<16x256xf32>
    %15 = arith.truncf %14 : vector<16x256xf32> to vector<16x256xbf16>
    %c0_9 = arith.constant 0 : index
    %c0_10 = arith.constant 0 : index
    %c0_11 = arith.constant 0 : index
    %16 = vector.load %arg6[%c0_9, %c0_10, %c0_11] : memref<1x16x256xbf16, #tpu.memory_space<vmem>>, vector<1x16x256xbf16>
    %17 = vector.shape_cast %16 : vector<1x16x256xbf16> to vector<16x256xbf16>
    %18 = vector.shape_cast %15 : vector<16x256xbf16> to vector<1x16x256xbf16>
    tpu.vector_store %arg6[%c0_9, %c0_10, %c0_11], %18 {strides = array<i32>} : memref<1x16x256xbf16, #tpu.memory_space<vmem>>, vector<1x16x256xbf16>,
    return
  }
  func.func @transform_0(%arg0: i32, %arg1: i32) -> (i32, i32, i32) {
    %c0_i32 = arith.constant 0 : i32
    %c0_i32_0 = arith.constant 0 : i32
    return %arg0, %c0_i32, %arg1 : i32, i32, i32
  }
  func.func @transform_1(%arg0: i32, %arg1: i32) -> (i32, i32) {
    %c0_i32 = arith.constant 0 : i32
    %c0_i32_0 = arith.constant 0 : i32
    %c0_i32_1 = arith.constant 0 : i32
    return %c0_i32, %c0_i32_0 : i32, i32
  }
  func.func @transform_2(%arg0: i32, %arg1: i32) -> (i32, i32) {
    %c0_i32 = arith.constant 0 : i32
    %c0_i32_0 = arith.constant 0 : i32
    %c0_i32_1 = arith.constant 0 : i32
    return %c0_i32, %c0_i32_0 : i32, i32
  }
  func.func @transform_3(%arg0: i32, %arg1: i32) -> (i32, i32, i32) {
    %c0_i32 = arith.constant 0 : i32
    %c0_i32_0 = arith.constant 0 : i32
    return %arg0, %c0_i32, %arg1 : i32, i32, i32
  }
  func.func @transform_4(%arg0: i32, %arg1: i32) -> (i32, i32, i32) {
    %c0_i32 = arith.constant 0 : i32
    %c0_i32_0 = arith.constant 0 : i32
    return %arg0, %c0_i32, %arg1 : i32, i32, i32
  }
}

</mosaic_0001>

<llo_original>
// kernel: _lambda_.4
$region0: #{_lambda_.4}
  #allocation0 [shape = 'u32[]', space=smem, size = 0x4, offset = 0x4, fixed_abs, tag = 'smem constant byte address 0x4 - core index']
  #allocation1 [shape = 'u32[144,128]{1,0:T(1,128)}', space=vmem, size = 0x12000, scoped, tag = 'internal scratch']
  %s0 = inlined_call_operand.vmem [shape: bf16[2,16,256], index: 0, kind: input, shape index: {}]
  %s1 = inlined_call_operand.vmem [shape: bf16[4,16], index: 1, kind: input, shape index: {}]
  %s2 = inlined_call_operand.vmem [shape: bf16[2,4,256], index: 2, kind: output, shape index: {0}]
  %s3 = inlined_call_operand.vmem [shape: f32[2,4,1], index: 3, kind: output, shape index: {1}]
  %s4 = inlined_call_operand.vmem [shape: f32[2,4,1], index: 4, kind: output, shape index: {2}]
  %5 = xla_tuple %s2, %s3, %s4
  %s6 = sld [smem:[#allocation0]]
  $region65: #{_lambda_.4} parent=0
    _
  %s8 = ssub.s32 1, %s6
  %s9 = scalar_select 0, %s8, %s6
  loop: start=0, step=1, limit=4
  $region2: #{_lambda_.4} parent=0 // loop_pre_header
    _
  $region3: #{_lambda_.4} parent=0 // loop_header
    %s11 = sphi 0, %s15
    %p12 = scmp.ge.s32.totalorder %s11, 4
    %s18 = sphi 0, %s30
    %s19 = sphi 0, %s26
    %s20 = sphi 0, %s18
    %s21 = sphi 0, %s19
    %s22 = sphi 0, %s20
    %s23 = sphi 0, %s21
    %s35 = sphi 0, %s37
    %s38 = sphi 0, %s35
    %s39 = sphi 0, %s38
    %s55 = sphi 0, %s39
    %s59 = sphi 0, %s59
    %s61 = sphi 0, %s59
    %s62 = sphi 0, %s61
    %s76 = sphi 0, %s62
    %s84 = sphi 0, %s86
    %s87 = sphi 0, %s84
    %s88 = sphi 0, %s87
    %s104 = sphi 0, %s88
    %s110 = sphi 0, %s112
    %s113 = sphi 0, %s110
    %s114 = sphi 0, %s113
    %s130 = sphi 0, %s114
    %s136 = sphi 0, %s138
    %s139 = sphi 0, %s136
    %s140 = sphi 0, %s139
    %s156 = sphi 0, %s140
  $region4: #{_lambda_.4} parent=0 // loop_header_branch
    %14 = sbr.rel (%p12) target = $region8
  $region5: #{_lambda_.4} parent=0 // loop_body
    %s16 = ssub.s32 %s11, 1
    %s17 = ssub.s32 %s11, 2
    %s24 = sadd.s32 1, %s19
    %p25 = scmp.ge.s32.totalorder %s24, 1
    %s26 = scalar_select %p25, 0, %s24
    %s27 = sadd.s32 1, %s18
    %s28 = scalar_select %p25, %s27, %s18
    %p29 = scmp.ge.s32.totalorder %s28, 2
    %s30 = scalar_select %p29, 0, %s28
    %s31 = ssub.s32 %s18, %s30
    %s32 = ssub.s32 %s19, %s26
    %s33 = sor.u32 %s31, %s32
    %p34 = scmp.eq.s32.totalorder %s33, 0
    %s36 = sadd.s32 %s35, 1
    %s37 = scalar_select %p34, %s35, %s36
    %p40 = pneg %p34
    %p41 = scmp.eq.s32.totalorder %s11, 1
    %p42 = por %p40, %p41
    %p43 = scmp.ne.s32.totalorder %s35, %s38
    %p44 = scmp.eq.s32.totalorder %s11, 0
    %p45 = por %p43, %p44
    %p46 = scmp.ne.s32.totalorder %s35, %s38
    %p47 = scmp.eq.s32.totalorder %s16, 1
    %p48 = por %p46, %p47
    %p49 = scmp.ne.s32.totalorder %s38, %s39
    %p50 = scmp.eq.s32.totalorder %s16, 0
    %p51 = por %p49, %p50
    %p52 = scmp.ne.s32.totalorder %s38, %s39
    %p53 = scmp.eq.s32.totalorder %s17, 1
    %p54 = por %p52, %p53
    %p56 = scmp.ne.s32.totalorder %s39, %s55
    %p57 = scmp.eq.s32.totalorder %s17, 0
    %p58 = por %p56, %p57
    %s60 = sadd.s32 %s59, 1
    %p63 = scmp.eq.s32.totalorder %s11, 1
    %p64 = scmp.ne.s32.totalorder %s59, %s61
    %p65 = scmp.eq.s32.totalorder %s11, 0
    %p66 = por %p64, %p65
    %p67 = scmp.ne.s32.totalorder %s59, %s61
    %p68 = scmp.eq.s32.totalorder %s16, 1
    %p69 = por %p67, %p68
    %p70 = scmp.ne.s32.totalorder %s61, %s62
    %p71 = scmp.eq.s32.totalorder %s16, 0
    %p72 = por %p70, %p71
    %p73 = scmp.ne.s32.totalorder %s61, %s62
    %p74 = scmp.eq.s32.totalorder %s17, 1
    %p75 = por %p73, %p74
    %p77 = scmp.ne.s32.totalorder %s62, %s76
    %p78 = scmp.eq.s32.totalorder %s17, 0
    %p79 = por %p77, %p78
    %s80 = ssub.s32 %s18, %s30
    %s81 = ssub.s32 %s19, %s26
    %s82 = sor.u32 %s80, %s81
    %p83 = scmp.eq.s32.totalorder %s82, 0
    %s85 = sadd.s32 %s84, 1
    %s86 = scalar_select %p83, %s84, %s85
    %p89 = pneg %p83
    %p90 = scmp.eq.s32.totalorder %s11, 1
    %p91 = por %p89, %p90
    %p92 = scmp.ne.s32.totalorder %s84, %s87
    %p93 = scmp.eq.s32.totalorder %s11, 0
    %p94 = por %p92, %p93
    %p95 = scmp.ne.s32.totalorder %s84, %s87
    %p96 = scmp.eq.s32.totalorder %s16, 1
    %p97 = por %p95, %p96
    %p98 = scmp.ne.s32.totalorder %s87, %s88
    %p99 = scmp.eq.s32.totalorder %s16, 0
    %p100 = por %p98, %p99
    %p101 = scmp.ne.s32.totalorder %s87, %s88
    %p102 = scmp.eq.s32.totalorder %s17, 1
    %p103 = por %p101, %p102
    %p105 = scmp.ne.s32.totalorder %s88, %s104
    %p106 = scmp.eq.s32.totalorder %s17, 0
    %p107 = por %p105, %p106
    %s108 = ssub.s32 %s18, %s30
    %p109 = scmp.eq.s32.totalorder %s108, 0
    %s111 = sadd.s32 %s110, 1
    %s112 = scalar_select %p109, %s110, %s111
    %p115 = pneg %p109
    %p116 = scmp.eq.s32.totalorder %s11, 1
    %p117 = por %p115, %p116
    %p118 = scmp.ne.s32.totalorder %s110, %s113
    %p119 = scmp.eq.s32.totalorder %s11, 0
    %p120 = por %p118, %p119
    %p121 = scmp.ne.s32.totalorder %s110, %s113
    %p122 = scmp.eq.s32.totalorder %s16, 1
    %p123 = por %p121, %p122
    %p124 = scmp.ne.s32.totalorder %s113, %s114
    %p125 = scmp.eq.s32.totalorder %s16, 0
    %p126 = por %p124, %p125
    %p127 = scmp.ne.s32.totalorder %s113, %s114
    %p128 = scmp.eq.s32.totalorder %s17, 1
    %p129 = por %p127, %p128
    %p131 = scmp.ne.s32.totalorder %s114, %s130
    %p132 = scmp.eq.s32.totalorder %s17, 0
    %p133 = por %p131, %p132
    %s134 = ssub.s32 %s18, %s30
    %p135 = scmp.eq.s32.totalorder %s134, 0
    %s137 = sadd.s32 %s136, 1
    %s138 = scalar_select %p135, %s136, %s137
    %p141 = pneg %p135
    %p142 = scmp.eq.s32.totalorder %s11, 1
    %p143 = por %p141, %p142
    %p144 = scmp.ne.s32.totalorder %s136, %s139
    %p145 = scmp.eq.s32.totalorder %s11, 0
    %p146 = por %p144, %p145
    %p147 = scmp.ne.s32.totalorder %s136, %s139
    %p148 = scmp.eq.s32.totalorder %s16, 1
    %p149 = por %p147, %p148
    %p150 = scmp.ne.s32.totalorder %s139, %s140
    %p151 = scmp.eq.s32.totalorder %s16, 0
    %p152 = por %p150, %p151
    %p153 = scmp.ne.s32.totalorder %s139, %s140
    %p154 = scmp.eq.s32.totalorder %s17, 1
    %p155 = por %p153, %p154
    %p157 = scmp.ne.s32.totalorder %s140, %s156
    %p158 = scmp.eq.s32.totalorder %s17, 0
    %p159 = por %p157, %p158
    %p160 = scmp.le.s32.totalorder 1, %s11
    %p161 = scmp.lt.s32.totalorder %s11, 3
    %p162 = pnand %p160, %p161
    %p163 = pneg %p162
    // Predicated region
    $region9: #{_lambda_.4} parent=5 // pred_check
      _
    $region10: #{_lambda_.4} parent=5 // pred_check_branch
      %165 = sbr.rel (%p162) target = $region12
    $region11: #{_lambda_.4} parent=5 // pred_region
      %s166 = ssub.s32 %s11, 1
      // Predicated region
      $region13: #{_lambda_.4} parent=11 // pred_check
        %p167 = pneg %p72
      $region14: #{_lambda_.4} parent=11 // pred_check_branch
        %169 = sbr.rel (%p167) target = $region16
      $region15: #{_lambda_.4} parent=11 // pred_region
        _
      $region16: #{_lambda_.4} parent=11 // pred_fallthru
        _
    $region12: #{_lambda_.4} parent=5 // pred_fallthru
      _
    %p170 = scmp.lt.s32.totalorder %s11, 2
    // Predicated region
    $region17: #{_lambda_.4} parent=5 // pred_check
      %p171 = pneg %p170
    $region18: #{_lambda_.4} parent=5 // pred_check_branch
      %173 = sbr.rel (%p171) target = $region20
    $region19: #{_lambda_.4} parent=5 // pred_region
      // Predicated region
      $region21: #{_lambda_.4} parent=19 // pred_check
        %p174 = pneg %p45
      $region22: #{_lambda_.4} parent=19 // pred_check_branch
        %176 = sbr.rel (%p174) target = $region24
      $region23: #{_lambda_.4} parent=19 // pred_region
        %s177 = smul.u32 2, %s19
        %p178 = scmp.lt.s32.totalorder %s18, 1
        %s179 = scalar_select %p178, %s18, 1
        %p180 = scmp.lt.s32.totalorder %s177, 1
        %s181 = scalar_select %p180, %s177, 1
        %s182 = smul.addr %s179, 4
        %s183 = sadd.s32 %s181, %s182
        %s184 = smul.addr %s183, 4
        %s185 = scalar_lea.vmem %s0, %s184
        %s186 = smul.u32 2, %s19
      $region24: #{_lambda_.4} parent=19 // pred_fallthru
        _
    $region20: #{_lambda_.4} parent=5 // pred_fallthru
      _
    %p187 = scmp.le.s32.totalorder 1, %s11
    %p188 = scmp.lt.s32.totalorder %s11, 3
    %p189 = pnand %p187, %p188
    %p190 = pneg %p189
    // Predicated region
    $region25: #{_lambda_.4} parent=5 // pred_check
      _
    $region26: #{_lambda_.4} parent=5 // pred_check_branch
      %192 = sbr.rel (%p189) target = $region28
    $region27: #{_lambda_.4} parent=5 // pred_region
      %s193 = ssub.s32 %s11, 1
      %s194 = smul.u32 2, %s21
      %p195 = scmp.lt.s32.totalorder %s20, 1
      %s196 = scalar_select %p195, %s20, 1
      %p197 = scmp.lt.s32.totalorder %s194, 1
      %s198 = scalar_select %p197, %s194, 1
      %s199 = smul.addr %s196, 4
      %s200 = sadd.s32 %s198, %s199
      %s201 = smul.addr %s200, 4
      %s202 = scalar_lea.vmem %s0, %s201
      %p203 = pneg %p51
      %p204 = pneg %p48
      %p205 = pneg %p72
      %p206 = pneg %p69
      %p207 = pneg %p100
      %p208 = pneg %p97
      %s209 = smul.u32 2, %s21
      %p210 = scmp.lt.s32.totalorder %s20, 1
      %s211 = scalar_select %p210, %s20, 1
      %p212 = scmp.lt.s32.totalorder %s209, 1
      %s213 = scalar_select %p212, %s209, 1
      %s214 = smul.addr %s211, 2
      %s215 = sadd.s32 %s213, %s214
      %s216 = smul.addr %s215, 2
      %s217 = scalar_lea.vmem %s2, %s216
      %p218 = pneg %p126
      %p219 = pneg %p123
      %p220 = scmp.lt.s32.totalorder %s20, 1
      %s221 = scalar_select %p220, %s20, 1
      %s222 = smul.addr %s221, 4
      %s223 = scalar_lea.vmem %s3, %s222
      %p224 = pneg %p152
      %p225 = pneg %p149
      %p226 = scmp.lt.s32.totalorder %s20, 1
      %s227 = scalar_select %p226, %s20, 1
      %s228 = smul.addr %s227, 4
      %s229 = scalar_lea.vmem %s4, %s228
      %s230 = smul.u32 2, %s21
      %p231 = scmp.lt.s32.totalorder %s20, 1
      %s232 = scalar_select %p231, %s20, 1
      %p233 = scmp.lt.s32.totalorder %s230, 1
      %s234 = scalar_select %p233, %s230, 1
      %s235 = smul.addr %s232, 4
      %s236 = sadd.s32 %s234, %s235
      %s237 = smul.addr %s236, 4
      %s238 = scalar_lea.vmem %s0, %s237
      %s239 = smul.u32 2, %s21
      %s240 = smul.u32 2, %s21
      %p241 = scmp.lt.s32.totalorder %s20, 1
      %s242 = scalar_select %p241, %s20, 1
      %p243 = scmp.lt.s32.totalorder %s240, 1
      %s244 = scalar_select %p243, %s240, 1
      %s245 = smul.addr %s242, 2
      %s246 = sadd.s32 %s244, %s245
      %s247 = smul.addr %s246, 2
      %s248 = scalar_lea.vmem %s2, %s247
      %s249 = smul.u32 2, %s21
      %p250 = scmp.lt.s32.totalorder %s20, 1
      %s251 = scalar_select %p250, %s20, 1
      %s252 = smul.addr %s251, 4
      %s253 = scalar_lea.vmem %s3, %s252
      %p254 = scmp.lt.s32.totalorder %s20, 1
      %s255 = scalar_select %p254, %s20, 1
      %s256 = smul.addr %s255, 4
      %s257 = scalar_lea.vmem %s4, %s256
      %v259 = vld [vmem:[%s238] sm:$0xff]
      %v260 = vld [vmem:[%s238 + $0x8] sm:$0xff]
      %v261 = vld [vmem:[%s1] sm:$0x3]
      %v264 = vunpack.c.l.b16 %v259
      %v265 = vunpack.c.h.b16 %v259
      %v266 = vunpack.c.l.b16 %v260
      %v267 = vunpack.c.h.b16 %v260
      %v268 = vpack.c.b16 %v266, %v264
      %v269 = vpack.c.b16 %v267, %v265
      %vm272 = vcmask 130048
      %v274 = vsel %vm272, %v261, 0
      %276 = vmatprep.subr.bf16.mxu0 0
      %277 = vmatpush1.bf16.msra.mxu0 0
      %278 = vmatprep.subr.bf16.mxu0 0
      %279 = vmatpush1.bf16.msra.mxu0 0
      %280 = vmatprep.subr.bf16.mxu0 0
      %281 = vmatpush1.bf16.msra.mxu0 0
      %282 = vmatprep.subr.bf16.mxu0 0
      %283 = vmatpush1.bf16.msra.mxu0 0
      %284 = vmatprep.subr.bf16.mxu0 0
      %285 = vmatpush1.bf16.msra.mxu0 0
      %286 = vmatprep.subr.bf16.mxu0 0
      %287 = vmatpush1.bf16.msra.mxu0 0
      %288 = vmatprep.subr.bf16.mxu0 0
      %289 = vmatpush1.bf16.msra.mxu0 0
      %290 = vmatprep.subr.bf16.mxu0 %v269
      %291 = vmatpush1.bf16.msra.mxu0 %v268
      %292 = vmatprep.subr.bf16.mxu0 0
      %293 = vmatpush2.bf16.msra.mxu0 0
      %294 = vmatprep.subr.bf16.mxu0 0
      %295 = vmatpush2.bf16.msra.mxu0 0
      %296 = vmatprep.subr.bf16.mxu0 0
      %297 = vmatpush2.bf16.msra.mxu0 0
      %298 = vmatprep.subr.bf16.mxu0 0
      %299 = vmatpush2.bf16.msra.mxu0 0
      %300 = vmatprep.subr.bf16.mxu0 0
      %301 = vmatpush2.bf16.msra.mxu0 0
      %302 = vmatprep.subr.bf16.mxu0 0
      %303 = vmatpush2.bf16.msra.mxu0 0
      %304 = vmatprep.subr.bf16.mxu0 0
      %305 = vmatpush2.bf16.msra.mxu0 0
      %306 = vmatprep.subr.bf16.mxu0 0
      %307 = vmatpush2.bf16.msra.mxu0 0
      %308 = vmatprep.mubr.bf16.mxu0 0
      %309 = vmatmul.mubr.bf16.gmra.mxu0 %v274
      %v310 = vpop.f32.mrf.mxu0
      %v311 = vadd.f32 0.0, %v310
      %v312 = vpop.f32.mrf.mxu0
      %v313 = vadd.f32 0.0, %v312
      %v314 = vpop.f32.mrf.mxu0
      %v315 = vpop.f32.mrf.mxu0
      %316 = vdwg.mxu0
      %v317 = vpack.c.bf16 %v311, %v311
      %v318 = vpack.c.bf16 %v313, %v313
      %v321 = vcombine.low %v317, %v318
      %v323 = vunpack.c.l.s4 1983009808
      %v324 = vunpack.c.0.s8 %v323
      %v325 = vlaneseq
      %v326 = vshrl.u32 %v325, 7
      %v327 = vsub.s32 %v324, %v326
      %v328 = vrot.slane %v321, %v327
      %330 = vst [vmem:[%s248] sm:$0xf] %v328
      %vm331 = vcmask 1043456
      %v332 = vsel %vm331, %v311, 0.0
      %v333 = vsel %vm331, %v313, 0.0
      %v334 = vadd.f32 %v332, %v333
      %335 = vadd.xlane.f32.xlu0 %v334
      %v336 = vpop.xlane.xlu0 %335
      %v337 = vmul.f32 %v311, %v311
      %v338 = vmul.f32 %v313, %v313
      %v339 = vsel %vm331, %v337, 0.0
      %v340 = vsel %vm331, %v338, 0.0
      %v341 = vadd.f32 %v339, %v340
      %342 = vadd.xlane.f32.xlu0 %v341
      %v343 = vpop.xlane.xlu0 %342
      %p344 = scmp.eq.s32.totalorder %s21, 0
      // Predicated region
      $region29: #{_lambda_.4} parent=27 // pred_check
        %p345 = pneg %p344
      $region30: #{_lambda_.4} parent=27 // pred_check_branch
        %347 = sbr.rel (%p345) target = $region32
      $region31: #{_lambda_.4} parent=27 // pred_region
        %vm348 = vcmask 3072
        %349 = vst.msk [vmem:[%s253] sm:$0xf] %vm348, %v336
        %350 = vst.msk [vmem:[%s257] sm:$0xf] %vm348, %v343
      $region32: #{_lambda_.4} parent=27 // pred_fallthru
        _
      %p351 = scmp.gt.s32.totalorder %s21, 0
      // Predicated region
      $region33: #{_lambda_.4} parent=27 // pred_check
        %p352 = pneg %p351
      $region34: #{_lambda_.4} parent=27 // pred_check_branch
        %354 = sbr.rel (%p352) target = $region36
      $region35: #{_lambda_.4} parent=27 // pred_region
        %v355 = vld [vmem:[%s253] sm:$0xf]
        %v356 = vadd.f32 %v355, %v336
        %vm357 = vcmask 3072
        %358 = vst.msk [vmem:[%s253] sm:$0xf] %vm357, %v356
        %v359 = vld [vmem:[%s257] sm:$0xf]
        %v360 = vadd.f32 %v359, %v343
        %361 = vst.msk [vmem:[%s257] sm:$0xf] %vm357, %v360
      $region36: #{_lambda_.4} parent=27 // pred_fallthru
        _
      %s362 = smul.u32 2, %s21
      %p363 = scmp.lt.s32.totalorder %s20, 1
      %s364 = scalar_select %p363, %s20, 1
      %p365 = scmp.lt.s32.totalorder %s362, 1
      %s366 = scalar_select %p365, %s362, 1
      %s367 = smul.addr %s364, 2
      %s368 = sadd.s32 %s366, %s367
      %s369 = smul.addr %s368, 2
      %s370 = scalar_lea.vmem %s2, %s369
      %p371 = scmp.lt.s32.totalorder %s20, 1
      %s372 = scalar_select %p371, %s20, 1
      %s373 = smul.addr %s372, 4
      %s374 = scalar_lea.vmem %s3, %s373
      %p375 = scmp.lt.s32.totalorder %s20, 1
      %s376 = scalar_select %p375, %s20, 1
      %s377 = smul.addr %s376, 4
      %s378 = scalar_lea.vmem %s4, %s377
      // Predicated region
      $region37: #{_lambda_.4} parent=27 // pred_check
        %p379 = pneg %p97
      $region38: #{_lambda_.4} parent=27 // pred_check_branch
        %381 = sbr.rel (%p379) target = $region40
      $region39: #{_lambda_.4} parent=27 // pred_region
        %s382 = smul.u32 2, %s21
      $region40: #{_lambda_.4} parent=27 // pred_fallthru
        _
      // Predicated region
      $region41: #{_lambda_.4} parent=27 // pred_check
        %p383 = pneg %p123
      $region42: #{_lambda_.4} parent=27 // pred_check_branch
        %385 = sbr.rel (%p383) target = $region44
      $region43: #{_lambda_.4} parent=27 // pred_region
        _
      $region44: #{_lambda_.4} parent=27 // pred_fallthru
        _
      // Predicated region
      $region45: #{_lambda_.4} parent=27 // pred_check
        %p386 = pneg %p149
      $region46: #{_lambda_.4} parent=27 // pred_check_branch
        %388 = sbr.rel (%p386) target = $region48
      $region47: #{_lambda_.4} parent=27 // pred_region
        _
      $region48: #{_lambda_.4} parent=27 // pred_fallthru
        _
    $region28: #{_lambda_.4} parent=5 // pred_fallthru
      _
    %p389 = scmp.le.s32.totalorder 2, %s11
    // Predicated region
    $region49: #{_lambda_.4} parent=5 // pred_check
      %p390 = pneg %p389
    $region50: #{_lambda_.4} parent=5 // pred_check_branch
      %392 = sbr.rel (%p390) target = $region52
    $region51: #{_lambda_.4} parent=5 // pred_region
      %s393 = ssub.s32 %s11, 2
      // Predicated region
      $region53: #{_lambda_.4} parent=51 // pred_check
        %p394 = pneg %p103
      $region54: #{_lambda_.4} parent=51 // pred_check_branch
        %396 = sbr.rel (%p394) target = $region56
      $region55: #{_lambda_.4} parent=51 // pred_region
        %s397 = smul.u32 2, %s23
        %p398 = scmp.lt.s32.totalorder %s22, 1
        %s399 = scalar_select %p398, %s22, 1
        %p400 = scmp.lt.s32.totalorder %s397, 1
        %s401 = scalar_select %p400, %s397, 1
        %s402 = smul.addr %s399, 2
        %s403 = sadd.s32 %s401, %s402
        %s404 = smul.addr %s403, 2
        %s405 = scalar_lea.vmem %s2, %s404
      $region56: #{_lambda_.4} parent=51 // pred_fallthru
        _
      // Predicated region
      $region57: #{_lambda_.4} parent=51 // pred_check
        %p406 = pneg %p129
      $region58: #{_lambda_.4} parent=51 // pred_check_branch
        %408 = sbr.rel (%p406) target = $region60
      $region59: #{_lambda_.4} parent=51 // pred_region
        %p409 = scmp.lt.s32.totalorder %s22, 1
        %s410 = scalar_select %p409, %s22, 1
        %s411 = smul.addr %s410, 4
        %s412 = scalar_lea.vmem %s3, %s411
      $region60: #{_lambda_.4} parent=51 // pred_fallthru
        _
      // Predicated region
      $region61: #{_lambda_.4} parent=51 // pred_check
        %p413 = pneg %p155
      $region62: #{_lambda_.4} parent=51 // pred_check_branch
        %415 = sbr.rel (%p413) target = $region64
      $region63: #{_lambda_.4} parent=51 // pred_region
        %p416 = scmp.lt.s32.totalorder %s22, 1
        %s417 = scalar_select %p416, %s22, 1
        %s418 = smul.addr %s417, 4
        %s419 = scalar_lea.vmem %s4, %s418
      $region64: #{_lambda_.4} parent=51 // pred_fallthru
        _
    $region52: #{_lambda_.4} parent=5 // pred_fallthru
      _
  $region6: #{_lambda_.4} parent=0 // loop_footer
    %s15 = sadd.s32 1, %s11
  $region7: #{_lambda_.4} parent=0 // loop_footer_branch
    %10 = sbr.rel target = $region3
  $region8: #{_lambda_.4} parent=0 // loop_exit
    _

// kernel: _lambda_.6
$region0: #{_lambda_.6}
  #allocation0 [shape = 'u32[]', space=smem, size = 0x4, offset = 0x4, fixed_abs, tag = 'smem constant byte address 0x4 - core index']
  #allocation1 [shape = 'u32[144,128]{1,0:T(1,128)}', space=vmem, size = 0x12000, scoped, tag = 'internal scratch']
  %s0 = inlined_call_operand.vmem [shape: bf16[2,4,256], index: 0, kind: input, shape index: {}]
  %s1 = inlined_call_operand.vmem [shape: f32[4,1], index: 1, kind: input, shape index: {}]
  %s2 = inlined_call_operand.vmem [shape: f32[4,1], index: 2, kind: input, shape index: {}]
  %s3 = inlined_call_operand.vmem [shape: bf16[16,4], index: 3, kind: input, shape index: {}]
  %s4 = inlined_call_operand.vmem [shape: bf16[2,16,256], index: 4, kind: output, shape index: {0}]
  %s5 = inlined_call_operand.vmem [shape: f32[2,16,1], index: 5, kind: output, shape index: {1}]
  %s6 = inlined_call_operand.vmem [shape: f32[2,16,1], index: 6, kind: output, shape index: {2}]
  %7 = xla_tuple %s4, %s5, %s6
  %s8 = sld [smem:[#allocation0]]
  $region73: #{_lambda_.6} parent=0
    _
  %s10 = ssub.s32 1, %s8
  %s11 = scalar_select 0, %s10, %s8
  loop: start=0, step=1, limit=4
  $region2: #{_lambda_.6} parent=0 // loop_pre_header
    _
  $region3: #{_lambda_.6} parent=0 // loop_header
    %s13 = sphi 0, %s17
    %p14 = scmp.ge.s32.totalorder %s13, 4
    %s20 = sphi 0, %s32
    %s21 = sphi 0, %s28
    %s22 = sphi 0, %s20
    %s23 = sphi 0, %s21
    %s24 = sphi 0, %s22
    %s25 = sphi 0, %s23
    %s37 = sphi 0, %s39
    %s40 = sphi 0, %s37
    %s41 = sphi 0, %s40
    %s57 = sphi 0, %s41
    %s61 = sphi 0, %s61
    %s63 = sphi 0, %s61
    %s64 = sphi 0, %s63
    %s78 = sphi 0, %s64
    %s82 = sphi 0, %s82
    %s84 = sphi 0, %s82
    %s85 = sphi 0, %s84
    %s99 = sphi 0, %s85
    %s103 = sphi 0, %s103
    %s105 = sphi 0, %s103
    %s106 = sphi 0, %s105
    %s120 = sphi 0, %s106
    %s128 = sphi 0, %s130
    %s131 = sphi 0, %s128
    %s132 = sphi 0, %s131
    %s148 = sphi 0, %s132
    %s154 = sphi 0, %s156
    %s157 = sphi 0, %s154
    %s158 = sphi 0, %s157
    %s174 = sphi 0, %s158
    %s180 = sphi 0, %s182
    %s183 = sphi 0, %s180
    %s184 = sphi 0, %s183
    %s200 = sphi 0, %s184
  $region4: #{_lambda_.6} parent=0 // loop_header_branch
    %16 = sbr.rel (%p14) target = $region8
  $region5: #{_lambda_.6} parent=0 // loop_body
    %s18 = ssub.s32 %s13, 1
    %s19 = ssub.s32 %s13, 2
    %s26 = sadd.s32 1, %s21
    %p27 = scmp.ge.s32.totalorder %s26, 1
    %s28 = scalar_select %p27, 0, %s26
    %s29 = sadd.s32 1, %s20
    %s30 = scalar_select %p27, %s29, %s20
    %p31 = scmp.ge.s32.totalorder %s30, 2
    %s32 = scalar_select %p31, 0, %s30
    %s33 = ssub.s32 %s20, %s32
    %s34 = ssub.s32 %s21, %s28
    %s35 = sor.u32 %s33, %s34
    %p36 = scmp.eq.s32.totalorder %s35, 0
    %s38 = sadd.s32 %s37, 1
    %s39 = scalar_select %p36, %s37, %s38
    %p42 = pneg %p36
    %p43 = scmp.eq.s32.totalorder %s13, 1
    %p44 = por %p42, %p43
    %p45 = scmp.ne.s32.totalorder %s37, %s40
    %p46 = scmp.eq.s32.totalorder %s13, 0
    %p47 = por %p45, %p46
    %p48 = scmp.ne.s32.totalorder %s37, %s40
    %p49 = scmp.eq.s32.totalorder %s18, 1
    %p50 = por %p48, %p49
    %p51 = scmp.ne.s32.totalorder %s40, %s41
    %p52 = scmp.eq.s32.totalorder %s18, 0
    %p53 = por %p51, %p52
    %p54 = scmp.ne.s32.totalorder %s40, %s41
    %p55 = scmp.eq.s32.totalorder %s19, 1
    %p56 = por %p54, %p55
    %p58 = scmp.ne.s32.totalorder %s41, %s57
    %p59 = scmp.eq.s32.totalorder %s19, 0
    %p60 = por %p58, %p59
    %s62 = sadd.s32 %s61, 1
    %p65 = scmp.eq.s32.totalorder %s13, 1
    %p66 = scmp.ne.s32.totalorder %s61, %s63
    %p67 = scmp.eq.s32.totalorder %s13, 0
    %p68 = por %p66, %p67
    %p69 = scmp.ne.s32.totalorder %s61, %s63
    %p70 = scmp.eq.s32.totalorder %s18, 1
    %p71 = por %p69, %p70
    %p72 = scmp.ne.s32.totalorder %s63, %s64
    %p73 = scmp.eq.s32.totalorder %s18, 0
    %p74 = por %p72, %p73
    %p75 = scmp.ne.s32.totalorder %s63, %s64
    %p76 = scmp.eq.s32.totalorder %s19, 1
    %p77 = por %p75, %p76
    %p79 = scmp.ne.s32.totalorder %s64, %s78
    %p80 = scmp.eq.s32.totalorder %s19, 0
    %p81 = por %p79, %p80
    %s83 = sadd.s32 %s82, 1
    %p86 = scmp.eq.s32.totalorder %s13, 1
    %p87 = scmp.ne.s32.totalorder %s82, %s84
    %p88 = scmp.eq.s32.totalorder %s13, 0
    %p89 = por %p87, %p88
    %p90 = scmp.ne.s32.totalorder %s82, %s84
    %p91 = scmp.eq.s32.totalorder %s18, 1
    %p92 = por %p90, %p91
    %p93 = scmp.ne.s32.totalorder %s84, %s85
    %p94 = scmp.eq.s32.totalorder %s18, 0
    %p95 = por %p93, %p94
    %p96 = scmp.ne.s32.totalorder %s84, %s85
    %p97 = scmp.eq.s32.totalorder %s19, 1
    %p98 = por %p96, %p97
    %p100 = scmp.ne.s32.totalorder %s85, %s99
    %p101 = scmp.eq.s32.totalorder %s19, 0
    %p102 = por %p100, %p101
    %s104 = sadd.s32 %s103, 1
    %p107 = scmp.eq.s32.totalorder %s13, 1
    %p108 = scmp.ne.s32.totalorder %s103, %s105
    %p109 = scmp.eq.s32.totalorder %s13, 0
    %p110 = por %p108, %p109
    %p111 = scmp.ne.s32.totalorder %s103, %s105
    %p112 = scmp.eq.s32.totalorder %s18, 1
    %p113 = por %p111, %p112
    %p114 = scmp.ne.s32.totalorder %s105, %s106
    %p115 = scmp.eq.s32.totalorder %s18, 0
    %p116 = por %p114, %p115
    %p117 = scmp.ne.s32.totalorder %s105, %s106
    %p118 = scmp.eq.s32.totalorder %s19, 1
    %p119 = por %p117, %p118
    %p121 = scmp.ne.s32.totalorder %s106, %s120
    %p122 = scmp.eq.s32.totalorder %s19, 0
    %p123 = por %p121, %p122
    %s124 = ssub.s32 %s20, %s32
    %s125 = ssub.s32 %s21, %s28
    %s126 = sor.u32 %s124, %s125
    %p127 = scmp.eq.s32.totalorder %s126, 0
    %s129 = sadd.s32 %s128, 1
    %s130 = scalar_select %p127, %s128, %s129
    %p133 = pneg %p127
    %p134 = scmp.eq.s32.totalorder %s13, 1
    %p135 = por %p133, %p134
    %p136 = scmp.ne.s32.totalorder %s128, %s131
    %p137 = scmp.eq.s32.totalorder %s13, 0
    %p138 = por %p136, %p137
    %p139 = scmp.ne.s32.totalorder %s128, %s131
    %p140 = scmp.eq.s32.totalorder %s18, 1
    %p141 = por %p139, %p140
    %p142 = scmp.ne.s32.totalorder %s131, %s132
    %p143 = scmp.eq.s32.totalorder %s18, 0
    %p144 = por %p142, %p143
    %p145 = scmp.ne.s32.totalorder %s131, %s132
    %p146 = scmp.eq.s32.totalorder %s19, 1
    %p147 = por %p145, %p146
    %p149 = scmp.ne.s32.totalorder %s132, %s148
    %p150 = scmp.eq.s32.totalorder %s19, 0
    %p151 = por %p149, %p150
    %s152 = ssub.s32 %s20, %s32
    %p153 = scmp.eq.s32.totalorder %s152, 0
    %s155 = sadd.s32 %s154, 1
    %s156 = scalar_select %p153, %s154, %s155
    %p159 = pneg %p153
    %p160 = scmp.eq.s32.totalorder %s13, 1
    %p161 = por %p159, %p160
    %p162 = scmp.ne.s32.totalorder %s154, %s157
    %p163 = scmp.eq.s32.totalorder %s13, 0
    %p164 = por %p162, %p163
    %p165 = scmp.ne.s32.totalorder %s154, %s157
    %p166 = scmp.eq.s32.totalorder %s18, 1
    %p167 = por %p165, %p166
    %p168 = scmp.ne.s32.totalorder %s157, %s158
    %p169 = scmp.eq.s32.totalorder %s18, 0
    %p170 = por %p168, %p169
    %p171 = scmp.ne.s32.totalorder %s157, %s158
    %p172 = scmp.eq.s32.totalorder %s19, 1
    %p173 = por %p171, %p172
    %p175 = scmp.ne.s32.totalorder %s158, %s174
    %p176 = scmp.eq.s32.totalorder %s19, 0
    %p177 = por %p175, %p176
    %s178 = ssub.s32 %s20, %s32
    %p179 = scmp.eq.s32.totalorder %s178, 0
    %s181 = sadd.s32 %s180, 1
    %s182 = scalar_select %p179, %s180, %s181
    %p185 = pneg %p179
    %p186 = scmp.eq.s32.totalorder %s13, 1
    %p187 = por %p185, %p186
    %p188 = scmp.ne.s32.totalorder %s180, %s183
    %p189 = scmp.eq.s32.totalorder %s13, 0
    %p190 = por %p188, %p189
    %p191 = scmp.ne.s32.totalorder %s180, %s183
    %p192 = scmp.eq.s32.totalorder %s18, 1
    %p193 = por %p191, %p192
    %p194 = scmp.ne.s32.totalorder %s183, %s184
    %p195 = scmp.eq.s32.totalorder %s18, 0
    %p196 = por %p194, %p195
    %p197 = scmp.ne.s32.totalorder %s183, %s184
    %p198 = scmp.eq.s32.totalorder %s19, 1
    %p199 = por %p197, %p198
    %p201 = scmp.ne.s32.totalorder %s184, %s200
    %p202 = scmp.eq.s32.totalorder %s19, 0
    %p203 = por %p201, %p202
    %p204 = scmp.le.s32.totalorder 1, %s13
    %p205 = scmp.lt.s32.totalorder %s13, 3
    %p206 = pnand %p204, %p205
    %p207 = pneg %p206
    // Predicated region
    $region9: #{_lambda_.6} parent=5 // pred_check
      _
    $region10: #{_lambda_.6} parent=5 // pred_check_branch
      %209 = sbr.rel (%p206) target = $region12
    $region11: #{_lambda_.6} parent=5 // pred_region
      %s210 = ssub.s32 %s13, 1
      // Predicated region
      $region13: #{_lambda_.6} parent=11 // pred_check
        %p211 = pneg %p74
      $region14: #{_lambda_.6} parent=11 // pred_check_branch
        %213 = sbr.rel (%p211) target = $region16
      $region15: #{_lambda_.6} parent=11 // pred_region
        _
      $region16: #{_lambda_.6} parent=11 // pred_fallthru
        _
      // Predicated region
      $region17: #{_lambda_.6} parent=11 // pred_check
        %p214 = pneg %p95
      $region18: #{_lambda_.6} parent=11 // pred_check_branch
        %216 = sbr.rel (%p214) target = $region20
      $region19: #{_lambda_.6} parent=11 // pred_region
        _
      $region20: #{_lambda_.6} parent=11 // pred_fallthru
        _
      // Predicated region
      $region21: #{_lambda_.6} parent=11 // pred_check
        %p217 = pneg %p116
      $region22: #{_lambda_.6} parent=11 // pred_check_branch
        %219 = sbr.rel (%p217) target = $region24
      $region23: #{_lambda_.6} parent=11 // pred_region
        _
      $region24: #{_lambda_.6} parent=11 // pred_fallthru
        _
    $region12: #{_lambda_.6} parent=5 // pred_fallthru
      _
    %p220 = scmp.lt.s32.totalorder %s13, 2
    // Predicated region
    $region25: #{_lambda_.6} parent=5 // pred_check
      %p221 = pneg %p220
    $region26: #{_lambda_.6} parent=5 // pred_check_branch
      %223 = sbr.rel (%p221) target = $region28
    $region27: #{_lambda_.6} parent=5 // pred_region
      // Predicated region
      $region29: #{_lambda_.6} parent=27 // pred_check
        %p224 = pneg %p47
      $region30: #{_lambda_.6} parent=27 // pred_check_branch
        %226 = sbr.rel (%p224) target = $region32
      $region31: #{_lambda_.6} parent=27 // pred_region
        %s227 = smul.u32 2, %s21
        %p228 = scmp.lt.s32.totalorder %s20, 1
        %s229 = scalar_select %p228, %s20, 1
        %p230 = scmp.lt.s32.totalorder %s227, 1
        %s231 = scalar_select %p230, %s227, 1
        %s232 = smul.addr %s229, 2
        %s233 = sadd.s32 %s231, %s232
        %s234 = smul.addr %s233, 2
        %s235 = scalar_lea.vmem %s0, %s234
        %s236 = smul.u32 2, %s21
      $region32: #{_lambda_.6} parent=27 // pred_fallthru
        _
    $region28: #{_lambda_.6} parent=5 // pred_fallthru
      _
    %p237 = scmp.le.s32.totalorder 1, %s13
    %p238 = scmp.lt.s32.totalorder %s13, 3
    %p239 = pnand %p237, %p238
    %p240 = pneg %p239
    // Predicated region
    $region33: #{_lambda_.6} parent=5 // pred_check
      _
    $region34: #{_lambda_.6} parent=5 // pred_check_branch
      %242 = sbr.rel (%p239) target = $region36
    $region35: #{_lambda_.6} parent=5 // pred_region
      %s243 = ssub.s32 %s13, 1
      %s244 = smul.u32 2, %s23
      %p245 = scmp.lt.s32.totalorder %s22, 1
      %s246 = scalar_select %p245, %s22, 1
      %p247 = scmp.lt.s32.totalorder %s244, 1
      %s248 = scalar_select %p247, %s244, 1
      %s249 = smul.addr %s246, 2
      %s250 = sadd.s32 %s248, %s249
      %s251 = smul.addr %s250, 2
      %s252 = scalar_lea.vmem %s0, %s251
      %p253 = pneg %p53
      %p254 = pneg %p50
      %p255 = pneg %p74
      %p256 = pneg %p71
      %p257 = pneg %p95
      %p258 = pneg %p92
      %p259 = pneg %p116
      %p260 = pneg %p113
      %p261 = pneg %p144
      %p262 = pneg %p141
      %s263 = smul.u32 2, %s23
      %p264 = scmp.lt.s32.totalorder %s22, 1
      %s265 = scalar_select %p264, %s22, 1
      %p266 = scmp.lt.s32.totalorder %s263, 1
      %s267 = scalar_select %p266, %s263, 1
      %s268 = smul.addr %s265, 4
      %s269 = sadd.s32 %s267, %s268
      %s270 = smul.addr %s269, 4
      %s271 = scalar_lea.vmem %s4, %s270
      %p272 = pneg %p170
      %p273 = pneg %p167
      %p274 = scmp.lt.s32.totalorder %s22, 1
      %s275 = scalar_select %p274, %s22, 1
      %s276 = smul.addr %s275, 2
      %s277 = smul.addr %s276, 8
      %s278 = scalar_lea.vmem %s5, %s277
      %p279 = pneg %p196
      %p280 = pneg %p193
      %p281 = scmp.lt.s32.totalorder %s22, 1
      %s282 = scalar_select %p281, %s22, 1
      %s283 = smul.addr %s282, 2
      %s284 = smul.addr %s283, 8
      %s285 = scalar_lea.vmem %s6, %s284
      %s286 = smul.u32 2, %s23
      %p287 = scmp.lt.s32.totalorder %s22, 1
      %s288 = scalar_select %p287, %s22, 1
      %p289 = scmp.lt.s32.totalorder %s286, 1
      %s290 = scalar_select %p289, %s286, 1
      %s291 = smul.addr %s288, 2
      %s292 = sadd.s32 %s290, %s291
      %s293 = smul.addr %s292, 2
      %s294 = scalar_lea.vmem %s0, %s293
      %s295 = smul.u32 2, %s23
      %s296 = smul.u32 2, %s23
      %p297 = scmp.lt.s32.totalorder %s22, 1
      %s298 = scalar_select %p297, %s22, 1
      %p299 = scmp.lt.s32.totalorder %s296, 1
      %s300 = scalar_select %p299, %s296, 1
      %s301 = smul.addr %s298, 4
      %s302 = sadd.s32 %s300, %s301
      %s303 = smul.addr %s302, 4
      %s304 = scalar_lea.vmem %s4, %s303
      %s305 = smul.u32 2, %s23
      %p306 = scmp.lt.s32.totalorder %s22, 1
      %s307 = scalar_select %p306, %s22, 1
      %s308 = smul.addr %s307, 2
      %s309 = smul.addr %s308, 8
      %s310 = scalar_lea.vmem %s5, %s309
      %p311 = scmp.lt.s32.totalorder %s22, 1
      %s312 = scalar_select %p311, %s22, 1
      %s313 = smul.addr %s312, 2
      %s314 = smul.addr %s313, 8
      %s315 = scalar_lea.vmem %s6, %s314
      %v317 = vld [vmem:[%s294] sm:$0xf]
      %v318 = vunpack.c.l.bf16 %v317
      %v319 = vld [vmem:[%s1] sm:$0xf]
      %321 = vset.pattern.permute.xlu0 0
      %322 = vperm.xlu0 %321, %v319
      %v323 = vpop.permute.xlu0 %322
      %v325 = vunpack.c.l.s4 839922192
      %v326 = vunpack.c.0.s8 %v325
      %v327 = vlaneseq
      %v328 = vshrl.u32 %v327, 7
      %v329 = vsub.s32 %v326, %v328
      %v330 = vrot.slane %v323, %v329
      %v332 = vmul.f32 %v318, %v330
      %v333 = vld [vmem:[%s2] sm:$0xf]
      %335 = vset.pattern.permute.xlu0 0
      %336 = vperm.xlu0 %335, %v333
      %v337 = vpop.permute.xlu0 %336
      %v339 = vunpack.c.l.s4 839922192
      %v340 = vunpack.c.0.s8 %v339
      %v341 = vlaneseq
      %v342 = vshrl.u32 %v341, 7
      %v343 = vsub.s32 %v340, %v342
      %v344 = vrot.slane %v337, %v343
      %v346 = vadd.f32 %v332, %v344
      %v347 = vmax.f32 %v346, 0.0
      %v348 = vld [vmem:[%s3] sm:$0xf]
      %v349 = vld [vmem:[%s3 + $0x4] sm:$0xf]
      %v351 = vcombine.high %v347, %v347
      %v353 = vpack.c.bf16 %v347, %v347
      %v354 = vpack.c.bf16 %v351, %v351
      %v357 = vunpack.c.l.b16 %v348
      %v358 = vunpack.c.l.b16 %v349
      %v359 = vpack.c.b16 %v358, %v357
      %vm360 = vcmask 31744
      %v362 = vsel %vm360, %v359, 0
      %vm364 = vcmask 1041408
      %v366 = vsel %vm364, %v353, 0
      %v369 = vsel %vm364, %v354, 0
      %371 = vmatprep.subr.bf16.mxu0 0
      %372 = vmatpush1.bf16.msra.mxu0 0
      %373 = vmatprep.subr.bf16.mxu0 0
      %374 = vmatpush1.bf16.msra.mxu0 0
      %375 = vmatprep.subr.bf16.mxu0 0
      %376 = vmatpush1.bf16.msra.mxu0 0
      %377 = vmatprep.subr.bf16.mxu0 0
      %378 = vmatpush1.bf16.msra.mxu0 0
      %379 = vmatprep.subr.bf16.mxu0 0
      %380 = vmatpush1.bf16.msra.mxu0 0
      %381 = vmatprep.subr.bf16.mxu0 0
      %382 = vmatpush1.bf16.msra.mxu0 0
      %383 = vmatprep.subr.bf16.mxu0 0
      %384 = vmatpush1.bf16.msra.mxu0 0
      %385 = vmatprep.subr.bf16.mxu0 %v369
      %386 = vmatpush1.bf16.msra.mxu0 %v366
      %387 = vmatprep.subr.bf16.mxu0 0
      %388 = vmatpush2.bf16.msra.mxu0 0
      %389 = vmatprep.subr.bf16.mxu0 0
      %390 = vmatpush2.bf16.msra.mxu0 0
      %391 = vmatprep.subr.bf16.mxu0 0
      %392 = vmatpush2.bf16.msra.mxu0 0
      %393 = vmatprep.subr.bf16.mxu0 0
      %394 = vmatpush2.bf16.msra.mxu0 0
      %395 = vmatprep.subr.bf16.mxu0 0
      %396 = vmatpush2.bf16.msra.mxu0 0
      %397 = vmatprep.subr.bf16.mxu0 0
      %398 = vmatpush2.bf16.msra.mxu0 0
      %399 = vmatprep.subr.bf16.mxu0 0
      %400 = vmatpush2.bf16.msra.mxu0 0
      %401 = vmatprep.subr.bf16.mxu0 0
      %402 = vmatpush2.bf16.msra.mxu0 0
      %403 = vmatprep.mubr.bf16.mxu0 0
      %404 = vmatmul.mubr.bf16.gmra.mxu0 %v362
      %v405 = vpop.f32.mrf.mxu0
      %v406 = vadd.f32 0.0, %v405
      %v407 = vpop.f32.mrf.mxu0
      %v408 = vadd.f32 0.0, %v407
      %v409 = vpop.f32.mrf.mxu0
      %v410 = vadd.f32 0.0, %v409
      %v411 = vpop.f32.mrf.mxu0
      %v412 = vadd.f32 0.0, %v411
      %413 = vdwg.mxu0
      %v414 = vpack.c.bf16 %v410, %v406
      %v415 = vpack.c.bf16 %v412, %v408
      %v418 = vunpack.c.l.b16 %v414
      %v419 = vunpack.c.l.b16 %v415
      %v420 = vunpack.c.h.b16 %v414
      %v421 = vunpack.c.h.b16 %v415
      %v422 = vpack.c.b16 %v419, %v418
      %v423 = vpack.c.b16 %v421, %v420
      %426 = vst [vmem:[%s304] sm:$0xff] %v422
      %427 = vst [vmem:[%s304 + $0x8] sm:$0xff] %v423
      %v428 = vadd.f32 %v406, %v408
      %429 = vadd.xlane.f32.xlu0 %v428
      %v430 = vpop.xlane.xlu0 %429
      %v431 = vadd.f32 %v410, %v412
      %432 = vadd.xlane.f32.xlu0 %v431
      %v433 = vpop.xlane.xlu0 %432
      %v434 = vmul.f32 %v406, %v406
      %v435 = vmul.f32 %v408, %v408
      %v436 = vmul.f32 %v410, %v410
      %v437 = vmul.f32 %v412, %v412
      %v438 = vadd.f32 %v434, %v435
      %439 = vadd.xlane.f32.xlu0 %v438
      %v440 = vpop.xlane.xlu0 %439
      %v441 = vadd.f32 %v436, %v437
      %442 = vadd.xlane.f32.xlu0 %v441
      %v443 = vpop.xlane.xlu0 %442
      %p444 = scmp.eq.s32.totalorder %s23, 0
      // Predicated region
      $region37: #{_lambda_.6} parent=35 // pred_check
        %p445 = pneg %p444
      $region38: #{_lambda_.6} parent=35 // pred_check_branch
        %447 = sbr.rel (%p445) target = $region40
      $region39: #{_lambda_.6} parent=35 // pred_region
        %vm448 = vcmask 7168
        %449 = vst.msk [vmem:[%s310] sm:$0xff] %vm448, %v430
        %450 = vst.msk [vmem:[%s310 + $0x8] sm:$0xff] %vm448, %v433
        %451 = vst.msk [vmem:[%s315] sm:$0xff] %vm448, %v440
        %452 = vst.msk [vmem:[%s315 + $0x8] sm:$0xff] %vm448, %v443
      $region40: #{_lambda_.6} parent=35 // pred_fallthru
        _
      %p453 = scmp.gt.s32.totalorder %s23, 0
      // Predicated region
      $region41: #{_lambda_.6} parent=35 // pred_check
        %p454 = pneg %p453
      $region42: #{_lambda_.6} parent=35 // pred_check_branch
        %456 = sbr.rel (%p454) target = $region44
      $region43: #{_lambda_.6} parent=35 // pred_region
        %v457 = vld [vmem:[%s310] sm:$0xff]
        %v458 = vld [vmem:[%s310 + $0x8] sm:$0xff]
        %v459 = vadd.f32 %v457, %v430
        %v460 = vadd.f32 %v458, %v433
        %vm461 = vcmask 7168
        %462 = vst.msk [vmem:[%s310] sm:$0xff] %vm461, %v459
        %463 = vst.msk [vmem:[%s310 + $0x8] sm:$0xff] %vm461, %v460
        %v464 = vld [vmem:[%s315] sm:$0xff]
        %v465 = vld [vmem:[%s315 + $0x8] sm:$0xff]
        %v466 = vadd.f32 %v464, %v440
        %v467 = vadd.f32 %v465, %v443
        %468 = vst.msk [vmem:[%s315] sm:$0xff] %vm461, %v466
        %469 = vst.msk [vmem:[%s315 + $0x8] sm:$0xff] %vm461, %v467
      $region44: #{_lambda_.6} parent=35 // pred_fallthru
        _
      %s470 = smul.u32 2, %s23
      %p471 = scmp.lt.s32.totalorder %s22, 1
      %s472 = scalar_select %p471, %s22, 1
      %p473 = scmp.lt.s32.totalorder %s470, 1
      %s474 = scalar_select %p473, %s470, 1
      %s475 = smul.addr %s472, 4
      %s476 = sadd.s32 %s474, %s475
      %s477 = smul.addr %s476, 4
      %s478 = scalar_lea.vmem %s4, %s477
      %p479 = scmp.lt.s32.totalorder %s22, 1
      %s480 = scalar_select %p479, %s22, 1
      %s481 = smul.addr %s480, 2
      %s482 = smul.addr %s481, 8
      %s483 = scalar_lea.vmem %s5, %s482
      %p484 = scmp.lt.s32.totalorder %s22, 1
      %s485 = scalar_select %p484, %s22, 1
      %s486 = smul.addr %s485, 2
      %s487 = smul.addr %s486, 8
      %s488 = scalar_lea.vmem %s6, %s487
      // Predicated region
      $region45: #{_lambda_.6} parent=35 // pred_check
        %p489 = pneg %p141
      $region46: #{_lambda_.6} parent=35 // pred_check_branch
        %491 = sbr.rel (%p489) target = $region48
      $region47: #{_lambda_.6} parent=35 // pred_region
        %s492 = smul.u32 2, %s23
      $region48: #{_lambda_.6} parent=35 // pred_fallthru
        _
      // Predicated region
      $region49: #{_lambda_.6} parent=35 // pred_check
        %p493 = pneg %p167
      $region50: #{_lambda_.6} parent=35 // pred_check_branch
        %495 = sbr.rel (%p493) target = $region52
      $region51: #{_lambda_.6} parent=35 // pred_region
        _
      $region52: #{_lambda_.6} parent=35 // pred_fallthru
        _
      // Predicated region
      $region53: #{_lambda_.6} parent=35 // pred_check
        %p496 = pneg %p193
      $region54: #{_lambda_.6} parent=35 // pred_check_branch
        %498 = sbr.rel (%p496) target = $region56
      $region55: #{_lambda_.6} parent=35 // pred_region
        _
      $region56: #{_lambda_.6} parent=35 // pred_fallthru
        _
    $region36: #{_lambda_.6} parent=5 // pred_fallthru
      _
    %p499 = scmp.le.s32.totalorder 2, %s13
    // Predicated region
    $region57: #{_lambda_.6} parent=5 // pred_check
      %p500 = pneg %p499
    $region58: #{_lambda_.6} parent=5 // pred_check_branch
      %502 = sbr.rel (%p500) target = $region60
    $region59: #{_lambda_.6} parent=5 // pred_region
      %s503 = ssub.s32 %s13, 2
      // Predicated region
      $region61: #{_lambda_.6} parent=59 // pred_check
        %p504 = pneg %p147
      $region62: #{_lambda_.6} parent=59 // pred_check_branch
        %506 = sbr.rel (%p504) target = $region64
      $region63: #{_lambda_.6} parent=59 // pred_region
        %s507 = smul.u32 2, %s25
        %p508 = scmp.lt.s32.totalorder %s24, 1
        %s509 = scalar_select %p508, %s24, 1
        %p510 = scmp.lt.s32.totalorder %s507, 1
        %s511 = scalar_select %p510, %s507, 1
        %s512 = smul.addr %s509, 4
        %s513 = sadd.s32 %s511, %s512
        %s514 = smul.addr %s513, 4
        %s515 = scalar_lea.vmem %s4, %s514
      $region64: #{_lambda_.6} parent=59 // pred_fallthru
        _
      // Predicated region
      $region65: #{_lambda_.6} parent=59 // pred_check
        %p516 = pneg %p173
      $region66: #{_lambda_.6} parent=59 // pred_check_branch
        %518 = sbr.rel (%p516) target = $region68
      $region67: #{_lambda_.6} parent=59 // pred_region
        %p519 = scmp.lt.s32.totalorder %s24, 1
        %s520 = scalar_select %p519, %s24, 1
        %s521 = smul.addr %s520, 2
        %s522 = smul.addr %s521, 8
        %s523 = scalar_lea.vmem %s5, %s522
      $region68: #{_lambda_.6} parent=59 // pred_fallthru
        _
      // Predicated region
      $region69: #{_lambda_.6} parent=59 // pred_check
        %p524 = pneg %p199
      $region70: #{_lambda_.6} parent=59 // pred_check_branch
        %526 = sbr.rel (%p524) target = $region72
      $region71: #{_lambda_.6} parent=59 // pred_region
        %p527 = scmp.lt.s32.totalorder %s24, 1
        %s528 = scalar_select %p527, %s24, 1
        %s529 = smul.addr %s528, 2
        %s530 = smul.addr %s529, 8
        %s531 = scalar_lea.vmem %s6, %s530
      $region72: #{_lambda_.6} parent=59 // pred_fallthru
        _
    $region60: #{_lambda_.6} parent=5 // pred_fallthru
      _
  $region6: #{_lambda_.6} parent=0 // loop_footer
    %s17 = sadd.s32 1, %s13
  $region7: #{_lambda_.6} parent=0 // loop_footer_branch
    %12 = sbr.rel target = $region3
  $region8: #{_lambda_.6} parent=0 // loop_exit
    _

// kernel: _lambda_.7
$region0: #{_lambda_.7}
  #allocation0 [shape = 'u32[]', space=smem, size = 0x4, offset = 0x4, fixed_abs, tag = 'smem constant byte address 0x4 - core index']
  #allocation1 [shape = 'u32[144,128]{1,0:T(1,128)}', space=vmem, size = 0x12000, scoped, tag = 'internal scratch']
  %s0 = inlined_call_operand.vmem [shape: bf16[2,16,256], index: 0, kind: input, shape index: {}, may-alias: {0,4}]
  %s1 = inlined_call_operand.vmem [shape: f32[16,1], index: 1, kind: input, shape index: {}]
  %s2 = inlined_call_operand.vmem [shape: f32[16,1], index: 2, kind: input, shape index: {}]
  %s3 = inlined_call_operand.vmem [shape: bf16[2,16,256], index: 3, kind: input, shape index: {}]
  %s4 = inlined_call_operand.vmem [shape: bf16[2,16,256], index: 4, kind: output, shape index: {}, may-alias: {0,4}]
  %s5 = sld [smem:[#allocation0]]
  $region49: #{_lambda_.7} parent=0
    _
  %s7 = ssub.s32 1, %s5
  %s8 = scalar_select 0, %s7, %s5
  loop: start=0, step=1, limit=4
  $region2: #{_lambda_.7} parent=0 // loop_pre_header
    _
  $region3: #{_lambda_.7} parent=0 // loop_header
    %s10 = sphi 0, %s14
    %p11 = scmp.ge.s32.totalorder %s10, 4
    %s17 = sphi 0, %s29
    %s18 = sphi 0, %s25
    %s19 = sphi 0, %s17
    %s20 = sphi 0, %s18
    %s21 = sphi 0, %s19
    %s22 = sphi 0, %s20
    %s34 = sphi 0, %s36
    %s37 = sphi 0, %s34
    %s38 = sphi 0, %s37
    %s54 = sphi 0, %s38
    %s58 = sphi 0, %s58
    %s60 = sphi 0, %s58
    %s61 = sphi 0, %s60
    %s75 = sphi 0, %s61
    %s79 = sphi 0, %s79
    %s81 = sphi 0, %s79
    %s82 = sphi 0, %s81
    %s96 = sphi 0, %s82
    %s104 = sphi 0, %s106
    %s107 = sphi 0, %s104
    %s108 = sphi 0, %s107
    %s124 = sphi 0, %s108
    %s132 = sphi 0, %s134
    %s135 = sphi 0, %s132
    %s136 = sphi 0, %s135
    %s152 = sphi 0, %s136
  $region4: #{_lambda_.7} parent=0 // loop_header_branch
    %13 = sbr.rel (%p11) target = $region8
  $region5: #{_lambda_.7} parent=0 // loop_body
    %s15 = ssub.s32 %s10, 1
    %s16 = ssub.s32 %s10, 2
    %s23 = sadd.s32 1, %s18
    %p24 = scmp.ge.s32.totalorder %s23, 1
    %s25 = scalar_select %p24, 0, %s23
    %s26 = sadd.s32 1, %s17
    %s27 = scalar_select %p24, %s26, %s17
    %p28 = scmp.ge.s32.totalorder %s27, 2
    %s29 = scalar_select %p28, 0, %s27
    %s30 = ssub.s32 %s17, %s29
    %s31 = ssub.s32 %s18, %s25
    %s32 = sor.u32 %s30, %s31
    %p33 = scmp.eq.s32.totalorder %s32, 0
    %s35 = sadd.s32 %s34, 1
    %s36 = scalar_select %p33, %s34, %s35
    %p39 = pneg %p33
    %p40 = scmp.eq.s32.totalorder %s10, 1
    %p41 = por %p39, %p40
    %p42 = scmp.ne.s32.totalorder %s34, %s37
    %p43 = scmp.eq.s32.totalorder %s10, 0
    %p44 = por %p42, %p43
    %p45 = scmp.ne.s32.totalorder %s34, %s37
    %p46 = scmp.eq.s32.totalorder %s15, 1
    %p47 = por %p45, %p46
    %p48 = scmp.ne.s32.totalorder %s37, %s38
    %p49 = scmp.eq.s32.totalorder %s15, 0
    %p50 = por %p48, %p49
    %p51 = scmp.ne.s32.totalorder %s37, %s38
    %p52 = scmp.eq.s32.totalorder %s16, 1
    %p53 = por %p51, %p52
    %p55 = scmp.ne.s32.totalorder %s38, %s54
    %p56 = scmp.eq.s32.totalorder %s16, 0
    %p57 = por %p55, %p56
    %s59 = sadd.s32 %s58, 1
    %p62 = scmp.eq.s32.totalorder %s10, 1
    %p63 = scmp.ne.s32.totalorder %s58, %s60
    %p64 = scmp.eq.s32.totalorder %s10, 0
    %p65 = por %p63, %p64
    %p66 = scmp.ne.s32.totalorder %s58, %s60
    %p67 = scmp.eq.s32.totalorder %s15, 1
    %p68 = por %p66, %p67
    %p69 = scmp.ne.s32.totalorder %s60, %s61
    %p70 = scmp.eq.s32.totalorder %s15, 0
    %p71 = por %p69, %p70
    %p72 = scmp.ne.s32.totalorder %s60, %s61
    %p73 = scmp.eq.s32.totalorder %s16, 1
    %p74 = por %p72, %p73
    %p76 = scmp.ne.s32.totalorder %s61, %s75
    %p77 = scmp.eq.s32.totalorder %s16, 0
    %p78 = por %p76, %p77
    %s80 = sadd.s32 %s79, 1
    %p83 = scmp.eq.s32.totalorder %s10, 1
    %p84 = scmp.ne.s32.totalorder %s79, %s81
    %p85 = scmp.eq.s32.totalorder %s10, 0
    %p86 = por %p84, %p85
    %p87 = scmp.ne.s32.totalorder %s79, %s81
    %p88 = scmp.eq.s32.totalorder %s15, 1
    %p89 = por %p87, %p88
    %p90 = scmp.ne.s32.totalorder %s81, %s82
    %p91 = scmp.eq.s32.totalorder %s15, 0
    %p92 = por %p90, %p91
    %p93 = scmp.ne.s32.totalorder %s81, %s82
    %p94 = scmp.eq.s32.totalorder %s16, 1
    %p95 = por %p93, %p94
    %p97 = scmp.ne.s32.totalorder %s82, %s96
    %p98 = scmp.eq.s32.totalorder %s16, 0
    %p99 = por %p97, %p98
    %s100 = ssub.s32 %s17, %s29
    %s101 = ssub.s32 %s18, %s25
    %s102 = sor.u32 %s100, %s101
    %p103 = scmp.eq.s32.totalorder %s102, 0
    %s105 = sadd.s32 %s104, 1
    %s106 = scalar_select %p103, %s104, %s105
    %p109 = pneg %p103
    %p110 = scmp.eq.s32.totalorder %s10, 1
    %p111 = por %p109, %p110
    %p112 = scmp.ne.s32.totalorder %s104, %s107
    %p113 = scmp.eq.s32.totalorder %s10, 0
    %p114 = por %p112, %p113
    %p115 = scmp.ne.s32.totalorder %s104, %s107
    %p116 = scmp.eq.s32.totalorder %s15, 1
    %p117 = por %p115, %p116
    %p118 = scmp.ne.s32.totalorder %s107, %s108
    %p119 = scmp.eq.s32.totalorder %s15, 0
    %p120 = por %p118, %p119
    %p121 = scmp.ne.s32.totalorder %s107, %s108
    %p122 = scmp.eq.s32.totalorder %s16, 1
    %p123 = por %p121, %p122
    %p125 = scmp.ne.s32.totalorder %s108, %s124
    %p126 = scmp.eq.s32.totalorder %s16, 0
    %p127 = por %p125, %p126
    %s128 = ssub.s32 %s17, %s29
    %s129 = ssub.s32 %s18, %s25
    %s130 = sor.u32 %s128, %s129
    %p131 = scmp.eq.s32.totalorder %s130, 0
    %s133 = sadd.s32 %s132, 1
    %s134 = scalar_select %p131, %s132, %s133
    %p137 = pneg %p131
    %p138 = scmp.eq.s32.totalorder %s10, 1
    %p139 = por %p137, %p138
    %p140 = scmp.ne.s32.totalorder %s132, %s135
    %p141 = scmp.eq.s32.totalorder %s10, 0
    %p142 = por %p140, %p141
    %p143 = scmp.ne.s32.totalorder %s132, %s135
    %p144 = scmp.eq.s32.totalorder %s15, 1
    %p145 = por %p143, %p144
    %p146 = scmp.ne.s32.totalorder %s135, %s136
    %p147 = scmp.eq.s32.totalorder %s15, 0
    %p148 = por %p146, %p147
    %p149 = scmp.ne.s32.totalorder %s135, %s136
    %p150 = scmp.eq.s32.totalorder %s16, 1
    %p151 = por %p149, %p150
    %p153 = scmp.ne.s32.totalorder %s136, %s152
    %p154 = scmp.eq.s32.totalorder %s16, 0
    %p155 = por %p153, %p154
    %p156 = scmp.le.s32.totalorder 1, %s10
    %p157 = scmp.lt.s32.totalorder %s10, 3
    %p158 = pnand %p156, %p157
    %p159 = pneg %p158
    // Predicated region
    $region9: #{_lambda_.7} parent=5 // pred_check
      _
    $region10: #{_lambda_.7} parent=5 // pred_check_branch
      %161 = sbr.rel (%p158) target = $region12
    $region11: #{_lambda_.7} parent=5 // pred_region
      %s162 = ssub.s32 %s10, 1
      // Predicated region
      $region13: #{_lambda_.7} parent=11 // pred_check
        %p163 = pneg %p71
      $region14: #{_lambda_.7} parent=11 // pred_check_branch
        %165 = sbr.rel (%p163) target = $region16
      $region15: #{_lambda_.7} parent=11 // pred_region
        _
      $region16: #{_lambda_.7} parent=11 // pred_fallthru
        _
      // Predicated region
      $region17: #{_lambda_.7} parent=11 // pred_check
        %p166 = pneg %p92
      $region18: #{_lambda_.7} parent=11 // pred_check_branch
        %168 = sbr.rel (%p166) target = $region20
      $region19: #{_lambda_.7} parent=11 // pred_region
        _
      $region20: #{_lambda_.7} parent=11 // pred_fallthru
        _
    $region12: #{_lambda_.7} parent=5 // pred_fallthru
      _
    %p169 = scmp.lt.s32.totalorder %s10, 2
    // Predicated region
    $region21: #{_lambda_.7} parent=5 // pred_check
      %p170 = pneg %p169
    $region22: #{_lambda_.7} parent=5 // pred_check_branch
      %172 = sbr.rel (%p170) target = $region24
    $region23: #{_lambda_.7} parent=5 // pred_region
      // Predicated region
      $region25: #{_lambda_.7} parent=23 // pred_check
        %p173 = pneg %p44
      $region26: #{_lambda_.7} parent=23 // pred_check_branch
        %175 = sbr.rel (%p173) target = $region28
      $region27: #{_lambda_.7} parent=23 // pred_region
        %s176 = smul.u32 2, %s18
        %p177 = scmp.lt.s32.totalorder %s17, 1
        %s178 = scalar_select %p177, %s17, 1
        %p179 = scmp.lt.s32.totalorder %s176, 1
        %s180 = scalar_select %p179, %s176, 1
        %s181 = smul.addr %s178, 4
        %s182 = sadd.s32 %s180, %s181
        %s183 = smul.addr %s182, 4
        %s184 = scalar_lea.vmem %s0, %s183
        %s185 = smul.u32 2, %s18
      $region28: #{_lambda_.7} parent=23 // pred_fallthru
        _
      // Predicated region
      $region29: #{_lambda_.7} parent=23 // pred_check
        %p186 = pneg %p114
      $region30: #{_lambda_.7} parent=23 // pred_check_branch
        %188 = sbr.rel (%p186) target = $region32
      $region31: #{_lambda_.7} parent=23 // pred_region
        %s189 = smul.u32 2, %s18
        %p190 = scmp.lt.s32.totalorder %s17, 1
        %s191 = scalar_select %p190, %s17, 1
        %p192 = scmp.lt.s32.totalorder %s189, 1
        %s193 = scalar_select %p192, %s189, 1
        %s194 = smul.addr %s191, 4
        %s195 = sadd.s32 %s193, %s194
        %s196 = smul.addr %s195, 4
        %s197 = scalar_lea.vmem %s3, %s196
        %s198 = smul.u32 2, %s18
      $region32: #{_lambda_.7} parent=23 // pred_fallthru
        _
    $region24: #{_lambda_.7} parent=5 // pred_fallthru
      _
    %p199 = scmp.le.s32.totalorder 1, %s10
    %p200 = scmp.lt.s32.totalorder %s10, 3
    %p201 = pnand %p199, %p200
    %p202 = pneg %p201
    // Predicated region
    $region33: #{_lambda_.7} parent=5 // pred_check
      _
    $region34: #{_lambda_.7} parent=5 // pred_check_branch
      %204 = sbr.rel (%p201) target = $region36
    $region35: #{_lambda_.7} parent=5 // pred_region
      %s205 = ssub.s32 %s10, 1
      %s206 = smul.u32 2, %s20
      %p207 = scmp.lt.s32.totalorder %s19, 1
      %s208 = scalar_select %p207, %s19, 1
      %p209 = scmp.lt.s32.totalorder %s206, 1
      %s210 = scalar_select %p209, %s206, 1
      %s211 = smul.addr %s208, 4
      %s212 = sadd.s32 %s210, %s211
      %s213 = smul.addr %s212, 4
      %s214 = scalar_lea.vmem %s0, %s213
      %p215 = pneg %p50
      %p216 = pneg %p47
      %p217 = pneg %p71
      %p218 = pneg %p68
      %p219 = pneg %p92
      %p220 = pneg %p89
      %s221 = smul.u32 2, %s20
      %p222 = scmp.lt.s32.totalorder %s19, 1
      %s223 = scalar_select %p222, %s19, 1
      %p224 = scmp.lt.s32.totalorder %s221, 1
      %s225 = scalar_select %p224, %s221, 1
      %s226 = smul.addr %s223, 4
      %s227 = sadd.s32 %s225, %s226
      %s228 = smul.addr %s227, 4
      %s229 = scalar_lea.vmem %s3, %s228
      %p230 = pneg %p120
      %p231 = pneg %p117
      %p232 = pneg %p148
      %p233 = pneg %p145
      %s234 = smul.u32 2, %s20
      %p235 = scmp.lt.s32.totalorder %s19, 1
      %s236 = scalar_select %p235, %s19, 1
      %p237 = scmp.lt.s32.totalorder %s234, 1
      %s238 = scalar_select %p237, %s234, 1
      %s239 = smul.addr %s236, 4
      %s240 = sadd.s32 %s238, %s239
      %s241 = smul.addr %s240, 4
      %s242 = scalar_lea.vmem %s4, %s241
      %s243 = smul.u32 2, %s20
      %p244 = scmp.lt.s32.totalorder %s19, 1
      %s245 = scalar_select %p244, %s19, 1
      %p246 = scmp.lt.s32.totalorder %s243, 1
      %s247 = scalar_select %p246, %s243, 1
      %s248 = smul.addr %s245, 4
      %s249 = sadd.s32 %s247, %s248
      %s250 = smul.addr %s249, 4
      %s251 = scalar_lea.vmem %s0, %s250
      %s252 = smul.u32 2, %s20
      %s253 = smul.u32 2, %s20
      %p254 = scmp.lt.s32.totalorder %s19, 1
      %s255 = scalar_select %p254, %s19, 1
      %p256 = scmp.lt.s32.totalorder %s253, 1
      %s257 = scalar_select %p256, %s253, 1
      %s258 = smul.addr %s255, 4
      %s259 = sadd.s32 %s257, %s258
      %s260 = smul.addr %s259, 4
      %s261 = scalar_lea.vmem %s3, %s260
      %s262 = smul.u32 2, %s20
      %s263 = smul.u32 2, %s20
      %p264 = scmp.lt.s32.totalorder %s19, 1
      %s265 = scalar_select %p264, %s19, 1
      %p266 = scmp.lt.s32.totalorder %s263, 1
      %s267 = scalar_select %p266, %s263, 1
      %s268 = smul.addr %s265, 4
      %s269 = sadd.s32 %s267, %s268
      %s270 = smul.addr %s269, 4
      %s271 = scalar_lea.vmem %s4, %s270
      %s272 = smul.u32 2, %s20
      %v273 = vld [vmem:[%s251] sm:$0xff]
      %v274 = vld [vmem:[%s251 + $0x8] sm:$0xff]
      %v275 = vunpack.c.l.bf16 %v273
      %v276 = vunpack.c.h.bf16 %v273
      %v277 = vunpack.c.l.bf16 %v274
      %v278 = vunpack.c.h.bf16 %v274
      %v279 = vld [vmem:[%s1] sm:$0xff]
      %v280 = vld [vmem:[%s1 + $0x8] sm:$0xff]
      %282 = vset.pattern.permute.xlu0 0
      %283 = vperm.xlu0 %282, %v279
      %v284 = vpop.permute.xlu0 %283
      %287 = vset.pattern.permute.xlu0 0
      %288 = vperm.xlu0 %287, %v280
      %v289 = vpop.permute.xlu0 %288
      %v291 = vmul.f32 %v275, %v284
      %v292 = vmul.f32 %v276, %v284
      %v293 = vmul.f32 %v277, %v289
      %v294 = vmul.f32 %v278, %v289
      %v295 = vld [vmem:[%s2] sm:$0xff]
      %v296 = vld [vmem:[%s2 + $0x8] sm:$0xff]
      %298 = vset.pattern.permute.xlu0 0
      %299 = vperm.xlu0 %298, %v295
      %v300 = vpop.permute.xlu0 %299
      %303 = vset.pattern.permute.xlu0 0
      %304 = vperm.xlu0 %303, %v296
      %v305 = vpop.permute.xlu0 %304
      %v307 = vadd.f32 %v291, %v300
      %v308 = vadd.f32 %v292, %v300
      %v309 = vadd.f32 %v293, %v305
      %v310 = vadd.f32 %v294, %v305
      %v311 = vld [vmem:[%s261] sm:$0xff]
      %v312 = vld [vmem:[%s261 + $0x8] sm:$0xff]
      %v313 = vunpack.c.l.bf16 %v311
      %v314 = vunpack.c.h.bf16 %v311
      %v315 = vunpack.c.l.bf16 %v312
      %v316 = vunpack.c.h.bf16 %v312
      %v317 = vadd.f32 %v307, %v313
      %v318 = vadd.f32 %v308, %v314
      %v319 = vadd.f32 %v309, %v315
      %v320 = vadd.f32 %v310, %v316
      %v321 = vmax.f32 %v317, 0.0
      %v322 = vmax.f32 %v318, 0.0
      %v323 = vmax.f32 %v319, 0.0
      %v324 = vmax.f32 %v320, 0.0
      %v325 = vpack.c.bf16 %v323, %v321
      %v326 = vpack.c.bf16 %v324, %v322
      %v329 = vunpack.c.l.b16 %v325
      %v330 = vunpack.c.l.b16 %v326
      %v331 = vunpack.c.h.b16 %v325
      %v332 = vunpack.c.h.b16 %v326
      %v333 = vpack.c.b16 %v330, %v329
      %v334 = vpack.c.b16 %v332, %v331
      %337 = vst [vmem:[%s271] sm:$0xff] %v333
      %338 = vst [vmem:[%s271 + $0x8] sm:$0xff] %v334
      %s339 = smul.u32 2, %s20
      %p340 = scmp.lt.s32.totalorder %s19, 1
      %s341 = scalar_select %p340, %s19, 1
      %p342 = scmp.lt.s32.totalorder %s339, 1
      %s343 = scalar_select %p342, %s339, 1
      %s344 = smul.addr %s341, 4
      %s345 = sadd.s32 %s343, %s344
      %s346 = smul.addr %s345, 4
      %s347 = scalar_lea.vmem %s4, %s346
      // Predicated region
      $region37: #{_lambda_.7} parent=35 // pred_check
        %p348 = pneg %p145
      $region38: #{_lambda_.7} parent=35 // pred_check_branch
        %350 = sbr.rel (%p348) target = $region40
      $region39: #{_lambda_.7} parent=35 // pred_region
        %s351 = smul.u32 2, %s20
      $region40: #{_lambda_.7} parent=35 // pred_fallthru
        _
    $region36: #{_lambda_.7} parent=5 // pred_fallthru
      _
    %p352 = scmp.le.s32.totalorder 2, %s10
    // Predicated region
    $region41: #{_lambda_.7} parent=5 // pred_check
      %p353 = pneg %p352
    $region42: #{_lambda_.7} parent=5 // pred_check_branch
      %355 = sbr.rel (%p353) target = $region44
    $region43: #{_lambda_.7} parent=5 // pred_region
      %s356 = ssub.s32 %s10, 2
      // Predicated region
      $region45: #{_lambda_.7} parent=43 // pred_check
        %p357 = pneg %p151
      $region46: #{_lambda_.7} parent=43 // pred_check_branch
        %359 = sbr.rel (%p357) target = $region48
      $region47: #{_lambda_.7} parent=43 // pred_region
        %s360 = smul.u32 2, %s22
        %p361 = scmp.lt.s32.totalorder %s21, 1
        %s362 = scalar_select %p361, %s21, 1
        %p363 = scmp.lt.s32.totalorder %s360, 1
        %s364 = scalar_select %p363, %s360, 1
        %s365 = smul.addr %s362, 4
        %s366 = sadd.s32 %s364, %s365
        %s367 = smul.addr %s366, 4
        %s368 = scalar_lea.vmem %s4, %s367
      $region48: #{_lambda_.7} parent=43 // pred_fallthru
        _
    $region44: #{_lambda_.7} parent=5 // pred_fallthru
      _
  $region6: #{_lambda_.7} parent=0 // loop_footer
    %s14 = sadd.s32 1, %s10
  $region7: #{_lambda_.7} parent=0 // loop_footer_branch
    %9 = sbr.rel target = $region3
  $region8: #{_lambda_.7} parent=0 // loop_exit
    _

// kernel: _lambda_.5
$region0: #{_lambda_.5}
  #allocation0 [shape = 'u32[]', space=smem, size = 0x4, offset = 0x4, fixed_abs, tag = 'smem constant byte address 0x4 - core index']
  #allocation1 [shape = 'u32[144,128]{1,0:T(1,128)}', space=vmem, size = 0x12000, scoped, tag = 'internal scratch']
  #allocation2 [shape = 'bf16[4,512]{1,0:T(4,128)(2,1)}', space=vmem, size = 0x1000, scoped, tag = 'scratch operand']
  %s0 = inlined_call_operand.vmem [shape: bf16[2,4,256], index: 0, kind: input, shape index: {}]
  %s1 = inlined_call_operand.vmem [shape: f32[4,1], index: 1, kind: input, shape index: {}]
  %s2 = inlined_call_operand.vmem [shape: f32[4,1], index: 2, kind: input, shape index: {}]
  %s3 = inlined_call_operand.vmem [shape: bf16[1,256], index: 3, kind: input, shape index: {}]
  %s4 = inlined_call_operand.vmem [shape: bf16[1,256], index: 4, kind: input, shape index: {}]
  %s5 = inlined_call_operand.vmem [shape: bf16[9,4,4], index: 5, kind: input, shape index: {}]
  %s6 = inlined_call_operand.vmem [shape: bf16[2,4,256], index: 6, kind: output, shape index: {0}]
  %s7 = inlined_call_operand.vmem [shape: f32[2,4,1], index: 7, kind: output, shape index: {1}]
  %s8 = inlined_call_operand.vmem [shape: f32[2,4,1], index: 8, kind: output, shape index: {2}]
  %9 = xla_tuple %s6, %s7, %s8
  %s10 = sld [smem:[#allocation0]]
  $region73: #{_lambda_.5} parent=0
    _
  %s12 = ssub.s32 1, %s10
  %s13 = scalar_select 0, %s12, %s10
  loop: start=0, step=1, limit=4
  $region2: #{_lambda_.5} parent=0 // loop_pre_header
    _
  $region3: #{_lambda_.5} parent=0 // loop_header
    %s15 = sphi 0, %s19
    %p16 = scmp.ge.s32.totalorder %s15, 4
    %s25 = sphi 0, %s27
    %s28 = sphi 0, %s25
    %s29 = sphi 0, %s28
    %s45 = sphi 0, %s29
    %s49 = sphi 0, %s49
    %s51 = sphi 0, %s49
    %s52 = sphi 0, %s51
    %s66 = sphi 0, %s52
    %s70 = sphi 0, %s70
    %s72 = sphi 0, %s70
    %s73 = sphi 0, %s72
    %s87 = sphi 0, %s73
    %s91 = sphi 0, %s91
    %s93 = sphi 0, %s91
    %s94 = sphi 0, %s93
    %s108 = sphi 0, %s94
    %s112 = sphi 0, %s112
    %s114 = sphi 0, %s112
    %s115 = sphi 0, %s114
    %s129 = sphi 0, %s115
    %s133 = sphi 0, %s133
    %s135 = sphi 0, %s133
    %s136 = sphi 0, %s135
    %s150 = sphi 0, %s136
    %s156 = sphi 0, %s158
    %s159 = sphi 0, %s156
    %s160 = sphi 0, %s159
    %s176 = sphi 0, %s160
    %s182 = sphi 0, %s184
    %s185 = sphi 0, %s182
    %s186 = sphi 0, %s185
    %s202 = sphi 0, %s186
    %s208 = sphi 0, %s210
    %s211 = sphi 0, %s208
    %s212 = sphi 0, %s211
    %s228 = sphi 0, %s212
  $region4: #{_lambda_.5} parent=0 // loop_header_branch
    %18 = sbr.rel (%p16) target = $region8
  $region5: #{_lambda_.5} parent=0 // loop_body
    %s20 = ssub.s32 %s15, 1
    %s21 = ssub.s32 %s15, 2
    %s22 = sadd.s32 %s15, 1
    %s23 = ssub.s32 %s15, %s22
    %p24 = scmp.eq.s32.totalorder %s23, 0
    %s26 = sadd.s32 %s25, 1
    %s27 = scalar_select %p24, %s25, %s26
    %p30 = pneg %p24
    %p31 = scmp.eq.s32.totalorder %s15, 1
    %p32 = por %p30, %p31
    %p33 = scmp.ne.s32.totalorder %s25, %s28
    %p34 = scmp.eq.s32.totalorder %s15, 0
    %p35 = por %p33, %p34
    %p36 = scmp.ne.s32.totalorder %s25, %s28
    %p37 = scmp.eq.s32.totalorder %s20, 1
    %p38 = por %p36, %p37
    %p39 = scmp.ne.s32.totalorder %s28, %s29
    %p40 = scmp.eq.s32.totalorder %s20, 0
    %p41 = por %p39, %p40
    %p42 = scmp.ne.s32.totalorder %s28, %s29
    %p43 = scmp.eq.s32.totalorder %s21, 1
    %p44 = por %p42, %p43
    %p46 = scmp.ne.s32.totalorder %s29, %s45
    %p47 = scmp.eq.s32.totalorder %s21, 0
    %p48 = por %p46, %p47
    %s50 = sadd.s32 %s49, 1
    %p53 = scmp.eq.s32.totalorder %s15, 1
    %p54 = scmp.ne.s32.totalorder %s49, %s51
    %p55 = scmp.eq.s32.totalorder %s15, 0
    %p56 = por %p54, %p55
    %p57 = scmp.ne.s32.totalorder %s49, %s51
    %p58 = scmp.eq.s32.totalorder %s20, 1
    %p59 = por %p57, %p58
    %p60 = scmp.ne.s32.totalorder %s51, %s52
    %p61 = scmp.eq.s32.totalorder %s20, 0
    %p62 = por %p60, %p61
    %p63 = scmp.ne.s32.totalorder %s51, %s52
    %p64 = scmp.eq.s32.totalorder %s21, 1
    %p65 = por %p63, %p64
    %p67 = scmp.ne.s32.totalorder %s52, %s66
    %p68 = scmp.eq.s32.totalorder %s21, 0
    %p69 = por %p67, %p68
    %s71 = sadd.s32 %s70, 1
    %p74 = scmp.eq.s32.totalorder %s15, 1
    %p75 = scmp.ne.s32.totalorder %s70, %s72
    %p76 = scmp.eq.s32.totalorder %s15, 0
    %p77 = por %p75, %p76
    %p78 = scmp.ne.s32.totalorder %s70, %s72
    %p79 = scmp.eq.s32.totalorder %s20, 1
    %p80 = por %p78, %p79
    %p81 = scmp.ne.s32.totalorder %s72, %s73
    %p82 = scmp.eq.s32.totalorder %s20, 0
    %p83 = por %p81, %p82
    %p84 = scmp.ne.s32.totalorder %s72, %s73
    %p85 = scmp.eq.s32.totalorder %s21, 1
    %p86 = por %p84, %p85
    %p88 = scmp.ne.s32.totalorder %s73, %s87
    %p89 = scmp.eq.s32.totalorder %s21, 0
    %p90 = por %p88, %p89
    %s92 = sadd.s32 %s91, 1
    %p95 = scmp.eq.s32.totalorder %s15, 1
    %p96 = scmp.ne.s32.totalorder %s91, %s93
    %p97 = scmp.eq.s32.totalorder %s15, 0
    %p98 = por %p96, %p97
    %p99 = scmp.ne.s32.totalorder %s91, %s93
    %p100 = scmp.eq.s32.totalorder %s20, 1
    %p101 = por %p99, %p100
    %p102 = scmp.ne.s32.totalorder %s93, %s94
    %p103 = scmp.eq.s32.totalorder %s20, 0
    %p104 = por %p102, %p103
    %p105 = scmp.ne.s32.totalorder %s93, %s94
    %p106 = scmp.eq.s32.totalorder %s21, 1
    %p107 = por %p105, %p106
    %p109 = scmp.ne.s32.totalorder %s94, %s108
    %p110 = scmp.eq.s32.totalorder %s21, 0
    %p111 = por %p109, %p110
    %s113 = sadd.s32 %s112, 1
    %p116 = scmp.eq.s32.totalorder %s15, 1
    %p117 = scmp.ne.s32.totalorder %s112, %s114
    %p118 = scmp.eq.s32.totalorder %s15, 0
    %p119 = por %p117, %p118
    %p120 = scmp.ne.s32.totalorder %s112, %s114
    %p121 = scmp.eq.s32.totalorder %s20, 1
    %p122 = por %p120, %p121
    %p123 = scmp.ne.s32.totalorder %s114, %s115
    %p124 = scmp.eq.s32.totalorder %s20, 0
    %p125 = por %p123, %p124
    %p126 = scmp.ne.s32.totalorder %s114, %s115
    %p127 = scmp.eq.s32.totalorder %s21, 1
    %p128 = por %p126, %p127
    %p130 = scmp.ne.s32.totalorder %s115, %s129
    %p131 = scmp.eq.s32.totalorder %s21, 0
    %p132 = por %p130, %p131
    %s134 = sadd.s32 %s133, 1
    %p137 = scmp.eq.s32.totalorder %s15, 1
    %p138 = scmp.ne.s32.totalorder %s133, %s135
    %p139 = scmp.eq.s32.totalorder %s15, 0
    %p140 = por %p138, %p139
    %p141 = scmp.ne.s32.totalorder %s133, %s135
    %p142 = scmp.eq.s32.totalorder %s20, 1
    %p143 = por %p141, %p142
    %p144 = scmp.ne.s32.totalorder %s135, %s136
    %p145 = scmp.eq.s32.totalorder %s20, 0
    %p146 = por %p144, %p145
    %p147 = scmp.ne.s32.totalorder %s135, %s136
    %p148 = scmp.eq.s32.totalorder %s21, 1
    %p149 = por %p147, %p148
    %p151 = scmp.ne.s32.totalorder %s136, %s150
    %p152 = scmp.eq.s32.totalorder %s21, 0
    %p153 = por %p151, %p152
    %s154 = ssub.s32 %s15, %s22
    %p155 = scmp.eq.s32.totalorder %s154, 0
    %s157 = sadd.s32 %s156, 1
    %s158 = scalar_select %p155, %s156, %s157
    %p161 = pneg %p155
    %p162 = scmp.eq.s32.totalorder %s15, 1
    %p163 = por %p161, %p162
    %p164 = scmp.ne.s32.totalorder %s156, %s159
    %p165 = scmp.eq.s32.totalorder %s15, 0
    %p166 = por %p164, %p165
    %p167 = scmp.ne.s32.totalorder %s156, %s159
    %p168 = scmp.eq.s32.totalorder %s20, 1
    %p169 = por %p167, %p168
    %p170 = scmp.ne.s32.totalorder %s159, %s160
    %p171 = scmp.eq.s32.totalorder %s20, 0
    %p172 = por %p170, %p171
    %p173 = scmp.ne.s32.totalorder %s159, %s160
    %p174 = scmp.eq.s32.totalorder %s21, 1
    %p175 = por %p173, %p174
    %p177 = scmp.ne.s32.totalorder %s160, %s176
    %p178 = scmp.eq.s32.totalorder %s21, 0
    %p179 = por %p177, %p178
    %s180 = ssub.s32 %s15, %s22
    %p181 = scmp.eq.s32.totalorder %s180, 0
    %s183 = sadd.s32 %s182, 1
    %s184 = scalar_select %p181, %s182, %s183
    %p187 = pneg %p181
    %p188 = scmp.eq.s32.totalorder %s15, 1
    %p189 = por %p187, %p188
    %p190 = scmp.ne.s32.totalorder %s182, %s185
    %p191 = scmp.eq.s32.totalorder %s15, 0
    %p192 = por %p190, %p191
    %p193 = scmp.ne.s32.totalorder %s182, %s185
    %p194 = scmp.eq.s32.totalorder %s20, 1
    %p195 = por %p193, %p194
    %p196 = scmp.ne.s32.totalorder %s185, %s186
    %p197 = scmp.eq.s32.totalorder %s20, 0
    %p198 = por %p196, %p197
    %p199 = scmp.ne.s32.totalorder %s185, %s186
    %p200 = scmp.eq.s32.totalorder %s21, 1
    %p201 = por %p199, %p200
    %p203 = scmp.ne.s32.totalorder %s186, %s202
    %p204 = scmp.eq.s32.totalorder %s21, 0
    %p205 = por %p203, %p204
    %s206 = ssub.s32 %s15, %s22
    %p207 = scmp.eq.s32.totalorder %s206, 0
    %s209 = sadd.s32 %s208, 1
    %s210 = scalar_select %p207, %s208, %s209
    %p213 = pneg %p207
    %p214 = scmp.eq.s32.totalorder %s15, 1
    %p215 = por %p213, %p214
    %p216 = scmp.ne.s32.totalorder %s208, %s211
    %p217 = scmp.eq.s32.totalorder %s15, 0
    %p218 = por %p216, %p217
    %p219 = scmp.ne.s32.totalorder %s208, %s211
    %p220 = scmp.eq.s32.totalorder %s20, 1
    %p221 = por %p219, %p220
    %p222 = scmp.ne.s32.totalorder %s211, %s212
    %p223 = scmp.eq.s32.totalorder %s20, 0
    %p224 = por %p222, %p223
    %p225 = scmp.ne.s32.totalorder %s211, %s212
    %p226 = scmp.eq.s32.totalorder %s21, 1
    %p227 = por %p225, %p226
    %p229 = scmp.ne.s32.totalorder %s212, %s228
    %p230 = scmp.eq.s32.totalorder %s21, 0
    %p231 = por %p229, %p230
    %p232 = scmp.le.s32.totalorder 1, %s15
    %p233 = scmp.lt.s32.totalorder %s15, 3
    %p234 = pnand %p232, %p233
    %p235 = pneg %p234
    // Predicated region
    $region9: #{_lambda_.5} parent=5 // pred_check
      _
    $region10: #{_lambda_.5} parent=5 // pred_check_branch
      %237 = sbr.rel (%p234) target = $region12
    $region11: #{_lambda_.5} parent=5 // pred_region
      %s238 = ssub.s32 %s15, 1
      // Predicated region
      $region13: #{_lambda_.5} parent=11 // pred_check
        %p239 = pneg %p62
      $region14: #{_lambda_.5} parent=11 // pred_check_branch
        %241 = sbr.rel (%p239) target = $region16
      $region15: #{_lambda_.5} parent=11 // pred_region
        _
      $region16: #{_lambda_.5} parent=11 // pred_fallthru
        _
      // Predicated region
      $region17: #{_lambda_.5} parent=11 // pred_check
        %p242 = pneg %p83
      $region18: #{_lambda_.5} parent=11 // pred_check_branch
        %244 = sbr.rel (%p242) target = $region20
      $region19: #{_lambda_.5} parent=11 // pred_region
        _
      $region20: #{_lambda_.5} parent=11 // pred_fallthru
        _
      // Predicated region
      $region21: #{_lambda_.5} parent=11 // pred_check
        %p245 = pneg %p104
      $region22: #{_lambda_.5} parent=11 // pred_check_branch
        %247 = sbr.rel (%p245) target = $region24
      $region23: #{_lambda_.5} parent=11 // pred_region
        _
      $region24: #{_lambda_.5} parent=11 // pred_fallthru
        _
      // Predicated region
      $region25: #{_lambda_.5} parent=11 // pred_check
        %p248 = pneg %p125
      $region26: #{_lambda_.5} parent=11 // pred_check_branch
        %250 = sbr.rel (%p248) target = $region28
      $region27: #{_lambda_.5} parent=11 // pred_region
        _
      $region28: #{_lambda_.5} parent=11 // pred_fallthru
        _
      // Predicated region
      $region29: #{_lambda_.5} parent=11 // pred_check
        %p251 = pneg %p146
      $region30: #{_lambda_.5} parent=11 // pred_check_branch
        %253 = sbr.rel (%p251) target = $region32
      $region31: #{_lambda_.5} parent=11 // pred_region
        _
      $region32: #{_lambda_.5} parent=11 // pred_fallthru
        _
    $region12: #{_lambda_.5} parent=5 // pred_fallthru
      _
    %p254 = scmp.lt.s32.totalorder %s15, 2
    // Predicated region
    $region33: #{_lambda_.5} parent=5 // pred_check
      %p255 = pneg %p254
    $region34: #{_lambda_.5} parent=5 // pred_check_branch
      %257 = sbr.rel (%p255) target = $region36
    $region35: #{_lambda_.5} parent=5 // pred_region
      // Predicated region
      $region37: #{_lambda_.5} parent=35 // pred_check
        %p258 = pneg %p35
      $region38: #{_lambda_.5} parent=35 // pred_check_branch
        %260 = sbr.rel (%p258) target = $region40
      $region39: #{_lambda_.5} parent=35 // pred_region
        %p261 = scmp.lt.s32.totalorder %s15, 1
        %s262 = scalar_select %p261, %s15, 1
        %s263 = smul.addr %s262, 2
        %s264 = smul.addr %s263, 2
        %s265 = scalar_lea.vmem %s0, %s264
      $region40: #{_lambda_.5} parent=35 // pred_fallthru
        _
    $region36: #{_lambda_.5} parent=5 // pred_fallthru
      _
    %p266 = scmp.le.s32.totalorder 1, %s15
    %p267 = scmp.lt.s32.totalorder %s15, 3
    %p268 = pnand %p266, %p267
    %p269 = pneg %p268
    // Predicated region
    $region41: #{_lambda_.5} parent=5 // pred_check
      _
    $region42: #{_lambda_.5} parent=5 // pred_check_branch
      %271 = sbr.rel (%p268) target = $region44
    $region43: #{_lambda_.5} parent=5 // pred_region
      %s272 = ssub.s32 %s15, 1
      %p273 = scmp.lt.s32.totalorder %s20, 1
      %s274 = scalar_select %p273, %s20, 1
      %s275 = smul.addr %s274, 2
      %s276 = smul.addr %s275, 2
      %s277 = scalar_lea.vmem %s0, %s276
      %p278 = pneg %p41
      %p279 = pneg %p38
      %p280 = pneg %p62
      %p281 = pneg %p59
      %p282 = pneg %p83
      %p283 = pneg %p80
      %p284 = pneg %p104
      %p285 = pneg %p101
      %p286 = pneg %p125
      %p287 = pneg %p122
      %p288 = pneg %p146
      %p289 = pneg %p143
      %p290 = pneg %p172
      %p291 = pneg %p169
      %p292 = scmp.lt.s32.totalorder %s20, 1
      %s293 = scalar_select %p292, %s20, 1
      %s294 = smul.addr %s293, 2
      %s295 = smul.addr %s294, 2
      %s296 = scalar_lea.vmem %s6, %s295
      %p297 = pneg %p198
      %p298 = pneg %p195
      %p299 = scmp.lt.s32.totalorder %s20, 1
      %s300 = scalar_select %p299, %s20, 1
      %s301 = smul.addr %s300, 4
      %s302 = scalar_lea.vmem %s7, %s301
      %p303 = pneg %p224
      %p304 = pneg %p221
      %p305 = scmp.lt.s32.totalorder %s20, 1
      %s306 = scalar_select %p305, %s20, 1
      %s307 = smul.addr %s306, 4
      %s308 = scalar_lea.vmem %s8, %s307
      %p309 = scmp.lt.s32.totalorder %s20, 1
      %s310 = scalar_select %p309, %s20, 1
      %s311 = smul.addr %s310, 2
      %s312 = smul.addr %s311, 2
      %s313 = scalar_lea.vmem %s0, %s312
      %p314 = scmp.lt.s32.totalorder %s20, 1
      %s315 = scalar_select %p314, %s20, 1
      %s316 = smul.addr %s315, 2
      %s317 = smul.addr %s316, 2
      %s318 = scalar_lea.vmem %s6, %s317
      %p319 = scmp.lt.s32.totalorder %s20, 1
      %s320 = scalar_select %p319, %s20, 1
      %s321 = smul.addr %s320, 4
      %s322 = scalar_lea.vmem %s7, %s321
      %p323 = scmp.lt.s32.totalorder %s20, 1
      %s324 = scalar_select %p323, %s20, 1
      %s325 = smul.addr %s324, 4
      %s326 = scalar_lea.vmem %s8, %s325
      %328 = vst [vmem:[#allocation2] sm:$0x3] 0
      %329 = vst [vmem:[#allocation2 + $0x6] sm:$0x3] 0
      %v330 = vld [vmem:[%s313] sm:$0xf]
      %v331 = vunpack.c.l.bf16 %v330
      %v332 = vld [vmem:[%s1] sm:$0xf]
      %334 = vset.pattern.permute.xlu0 0
      %335 = vperm.xlu0 %334, %v332
      %v336 = vpop.permute.xlu0 %335
      %v338 = vunpack.c.l.s4 839922192
      %v339 = vunpack.c.0.s8 %v338
      %v340 = vlaneseq
      %v341 = vshrl.u32 %v340, 7
      %v342 = vsub.s32 %v339, %v341
      %v343 = vrot.slane %v336, %v342
      %v345 = vmul.f32 %v331, %v343
      %v346 = vld [vmem:[%s2] sm:$0xf]
      %348 = vset.pattern.permute.xlu0 0
      %349 = vperm.xlu0 %348, %v346
      %v350 = vpop.permute.xlu0 %349
      %v352 = vunpack.c.l.s4 839922192
      %v353 = vunpack.c.0.s8 %v352
      %v354 = vlaneseq
      %v355 = vshrl.u32 %v354, 7
      %v356 = vsub.s32 %v353, %v355
      %v357 = vrot.slane %v350, %v356
      %v359 = vadd.f32 %v345, %v357
      %v360 = vmax.f32 %v359, 0.0
      %v362 = vcombine.high %v360, %v360
      %v364 = vpack.c.bf16 %v360, %v360
      %v365 = vpack.c.bf16 %v362, %v362
      %v368 = vcombine.low %v364, %v365
      %v370 = vunpack.c.l.s4 1983009808
      %v371 = vunpack.c.0.s8 %v370
      %v372 = vlaneseq
      %v373 = vshrl.u32 %v372, 7
      %v374 = vsub.s32 %v371, %v373
      %v375 = vrot.slane %v368, %v374
      %377 = vst [vmem:[#allocation2 + $0x2] sm:$0xf] %v375
      %v378 = vld [vmem:[#allocation2] sm:$0x3f]
      %v379 = vld [vmem:[%s3] sm:$0x3]
      %v382 = vunpack.c.l.s4 1966171168
      %v383 = vunpack.c.0.s8 %v382
      %v384 = vlaneseq
      %v385 = vshrl.u32 %v384, 7
      %v386 = vsub.s32 %v383, %v385
      %v387 = vrot.slane %v379, %v386
      %v388 = vcombine.high %v387, %v387
      %v390 = vunpack.c.l.s4 1966171168
      %v391 = vunpack.c.0.s8 %v390
      %v392 = vlaneseq
      %v393 = vshrl.u32 %v392, 7
      %v394 = vsub.s32 %v391, %v393
      %v395 = vrot.slane %v387, %v394
      %v397 = vunpack.c.l.s4 1966171168
      %v398 = vunpack.c.0.s8 %v397
      %v399 = vlaneseq
      %v400 = vshrl.u32 %v399, 7
      %v401 = vsub.s32 %v398, %v400
      %v402 = vrot.slane %v388, %v401
      %v404 = vpack.i.b16 %v395, %v395
      %v406 = vlaneseq
      %v407 = vshrl.u32 %v406, 7
      %v408 = vsub.s32 0, %v407
      %v409 = vrot.slane %v404, %v408
      %v411 = vpack.i.b16 %v402, %v402
      %v413 = vlaneseq
      %v414 = vshrl.u32 %v413, 7
      %v415 = vsub.s32 0, %v414
      %v416 = vrot.slane %v411, %v415
      %v419 = vcombine.low %v409, %v416
      %v421 = vunpack.c.l.s4 1983009808
      %v422 = vunpack.c.0.s8 %v421
      %v423 = vlaneseq
      %v424 = vshrl.u32 %v423, 7
      %v425 = vsub.s32 %v422, %v424
      %v426 = vrot.slane %v419, %v425
      %427 = vrot.lane.b32.xlu0 %v426, 111
      %v428 = vpop.permute.xlu0 %427
      %v429 = vrot.slane %v428, 6
      %vm430 = vcmask 908288
      %v431 = vsel %vm430, %v429, %v428
      %v433 = vmul.bf16 %v378, %v431
      %v434 = vld [vmem:[%s5] sm:$0x3]
      %s435 = scalar_lea.vmem %s5, 2
      %v436 = vld [vmem:[%s435] sm:$0x3]
      %v438 = vcombine.high %v378, %v378
      %v440 = vunpack.c.l.s4 1983009808
      %v441 = vunpack.c.0.s8 %v440
      %v442 = vlaneseq
      %v443 = vshrl.u32 %v442, 7
      %v444 = vsub.s32 %v441, %v443
      %v445 = vrot.slane %v378, %v444
      %v447 = vunpack.c.l.s4 1983009808
      %v448 = vunpack.c.0.s8 %v447
      %v449 = vlaneseq
      %v450 = vshrl.u32 %v449, 7
      %v451 = vsub.s32 %v448, %v450
      %v452 = vrot.slane %v438, %v451
      %v453 = vcombine.high %v445, %v445
      %454 = vrot.lane.b32.xlu0 %v445, 16
      %v455 = vpop.permute.xlu0 %454
      %456 = vrot.lane.b32.xlu0 %v453, 16
      %v457 = vpop.permute.xlu0 %456
      %458 = vrot.lane.b32.xlu0 %v452, 16
      %v459 = vpop.permute.xlu0 %458
      %vm460 = vcmask 130048
      %v461 = vsel %vm460, %v455, %v457
      %v462 = vsel %vm460, %v457, %v459
      %vm463 = vcmask 31744
      %v465 = vsel %vm463, %v436, 0
      %vm467 = vcmask 1041408
      %v469 = vsel %vm467, %v461, 0
      %v472 = vsel %vm467, %v462, 0
      %474 = vmatprep.subr.bf16.mxu0 0
      %475 = vmatpush1.bf16.msra.mxu0 0
      %476 = vmatprep.subr.bf16.mxu0 0
      %477 = vmatpush1.bf16.msra.mxu0 0
      %478 = vmatprep.subr.bf16.mxu0 0
      %479 = vmatpush1.bf16.msra.mxu0 0
      %480 = vmatprep.subr.bf16.mxu0 0
      %481 = vmatpush1.bf16.msra.mxu0 0
      %482 = vmatprep.subr.bf16.mxu0 0
      %483 = vmatpush1.bf16.msra.mxu0 0
      %484 = vmatprep.subr.bf16.mxu0 0
      %485 = vmatpush1.bf16.msra.mxu0 0
      %486 = vmatprep.subr.bf16.mxu0 0
      %487 = vmatpush1.bf16.msra.mxu0 0
      %488 = vmatprep.subr.bf16.mxu0 %v472
      %489 = vmatpush1.bf16.msra.mxu0 %v469
      %490 = vmatprep.subr.bf16.mxu0 0
      %491 = vmatpush2.bf16.msra.mxu0 0
      %492 = vmatprep.subr.bf16.mxu0 0
      %493 = vmatpush2.bf16.msra.mxu0 0
      %494 = vmatprep.subr.bf16.mxu0 0
      %495 = vmatpush2.bf16.msra.mxu0 0
      %496 = vmatprep.subr.bf16.mxu0 0
      %497 = vmatpush2.bf16.msra.mxu0 0
      %498 = vmatprep.subr.bf16.mxu0 0
      %499 = vmatpush2.bf16.msra.mxu0 0
      %500 = vmatprep.subr.bf16.mxu0 0
      %501 = vmatpush2.bf16.msra.mxu0 0
      %502 = vmatprep.subr.bf16.mxu0 0
      %503 = vmatpush2.bf16.msra.mxu0 0
      %504 = vmatprep.subr.bf16.mxu0 0
      %505 = vmatpush2.bf16.msra.mxu0 0
      %506 = vmatprep.mubr.bf16.mxu0 0
      %507 = vmatmul.mubr.bf16.gmra.mxu0 %v465
      %v508 = vpop.f32.mrf.mxu0
      %v509 = vadd.f32 0.0, %v508
      %v510 = vpop.f32.mrf.mxu0
      %v511 = vadd.f32 0.0, %v510
      %v512 = vpop.f32.mrf.mxu0
      %v513 = vpop.f32.mrf.mxu0
      %514 = vdwg.mxu0
      %v516 = vcombine.high %v433, %v433
      %v518 = vunpack.c.l.s4 1983009808
      %v519 = vunpack.c.0.s8 %v518
      %v520 = vlaneseq
      %v521 = vshrl.u32 %v520, 7
      %v522 = vsub.s32 %v519, %v521
      %v523 = vrot.slane %v433, %v522
      %v525 = vunpack.c.l.s4 1983009808
      %v526 = vunpack.c.0.s8 %v525
      %v527 = vlaneseq
      %v528 = vshrl.u32 %v527, 7
      %v529 = vsub.s32 %v526, %v528
      %v530 = vrot.slane %v516, %v529
      %v531 = vcombine.high %v523, %v523
      %532 = vrot.lane.b32.xlu0 %v523, 17
      %v533 = vpop.permute.xlu0 %532
      %534 = vrot.lane.b32.xlu0 %v531, 17
      %v535 = vpop.permute.xlu0 %534
      %536 = vrot.lane.b32.xlu0 %v530, 17
      %v537 = vpop.permute.xlu0 %536
      %vm538 = vcmask 138240
      %v539 = vsel %vm538, %v533, %v535
      %v540 = vsel %vm538, %v535, %v537
      %v542 = vsel %vm463, %v434, 0
      %v545 = vsel %vm467, %v539, 0
      %v548 = vsel %vm467, %v540, 0
      %550 = vmatprep.subr.bf16.mxu0 0
      %551 = vmatpush1.bf16.msra.mxu0 0
      %552 = vmatprep.subr.bf16.mxu0 0
      %553 = vmatpush1.bf16.msra.mxu0 0
      %554 = vmatprep.subr.bf16.mxu0 0
      %555 = vmatpush1.bf16.msra.mxu0 0
      %556 = vmatprep.subr.bf16.mxu0 0
      %557 = vmatpush1.bf16.msra.mxu0 0
      %558 = vmatprep.subr.bf16.mxu0 0
      %559 = vmatpush1.bf16.msra.mxu0 0
      %560 = vmatprep.subr.bf16.mxu0 0
      %561 = vmatpush1.bf16.msra.mxu0 0
      %562 = vmatprep.subr.bf16.mxu0 0
      %563 = vmatpush1.bf16.msra.mxu0 0
      %564 = vmatprep.subr.bf16.mxu0 %v548
      %565 = vmatpush1.bf16.msra.mxu0 %v545
      %566 = vmatprep.subr.bf16.mxu0 0
      %567 = vmatpush2.bf16.msra.mxu0 0
      %568 = vmatprep.subr.bf16.mxu0 0
      %569 = vmatpush2.bf16.msra.mxu0 0
      %570 = vmatprep.subr.bf16.mxu0 0
      %571 = vmatpush2.bf16.msra.mxu0 0
      %572 = vmatprep.subr.bf16.mxu0 0
      %573 = vmatpush2.bf16.msra.mxu0 0
      %574 = vmatprep.subr.bf16.mxu0 0
      %575 = vmatpush2.bf16.msra.mxu0 0
      %576 = vmatprep.subr.bf16.mxu0 0
      %577 = vmatpush2.bf16.msra.mxu0 0
      %578 = vmatprep.subr.bf16.mxu0 0
      %579 = vmatpush2.bf16.msra.mxu0 0
      %580 = vmatprep.subr.bf16.mxu0 0
      %581 = vmatpush2.bf16.msra.mxu0 0
      %582 = vmatprep.mubr.bf16.mxu0 0
      %583 = vmatmul.mubr.bf16.gmra.mxu0 %v542
      %v584 = vpop.f32.mrf.mxu0
      %v585 = vadd.f32 %v509, %v584
      %v586 = vpop.f32.mrf.mxu0
      %v587 = vadd.f32 %v511, %v586
      %v588 = vpop.f32.mrf.mxu0
      %v589 = vpop.f32.mrf.mxu0
      %590 = vdwg.mxu0
      %v591 = vld [vmem:[#allocation2] sm:$0x3f]
      %v592 = vld [vmem:[%s4] sm:$0x3]
      %v595 = vunpack.c.l.s4 1966171168
      %v596 = vunpack.c.0.s8 %v595
      %v597 = vlaneseq
      %v598 = vshrl.u32 %v597, 7
      %v599 = vsub.s32 %v596, %v598
      %v600 = vrot.slane %v592, %v599
      %v601 = vcombine.high %v600, %v600
      %v603 = vunpack.c.l.s4 1966171168
      %v604 = vunpack.c.0.s8 %v603
      %v605 = vlaneseq
      %v606 = vshrl.u32 %v605, 7
      %v607 = vsub.s32 %v604, %v606
      %v608 = vrot.slane %v600, %v607
      %v610 = vunpack.c.l.s4 1966171168
      %v611 = vunpack.c.0.s8 %v610
      %v612 = vlaneseq
      %v613 = vshrl.u32 %v612, 7
      %v614 = vsub.s32 %v611, %v613
      %v615 = vrot.slane %v601, %v614
      %v617 = vpack.i.b16 %v608, %v608
      %v619 = vlaneseq
      %v620 = vshrl.u32 %v619, 7
      %v621 = vsub.s32 0, %v620
      %v622 = vrot.slane %v617, %v621
      %v624 = vpack.i.b16 %v615, %v615
      %v626 = vlaneseq
      %v627 = vshrl.u32 %v626, 7
      %v628 = vsub.s32 0, %v627
      %v629 = vrot.slane %v624, %v628
      %v632 = vcombine.low %v622, %v629
      %v634 = vunpack.c.l.s4 1983009808
      %v635 = vunpack.c.0.s8 %v634
      %v636 = vlaneseq
      %v637 = vshrl.u32 %v636, 7
      %v638 = vsub.s32 %v635, %v637
      %v639 = vrot.slane %v632, %v638
      %640 = vrot.lane.b32.xlu0 %v639, 113
      %v641 = vpop.permute.xlu0 %640
      %v642 = vrot.slane %v641, 6
      %vm643 = vcmask 924672
      %v644 = vsel %vm643, %v642, %v641
      %v646 = vmul.bf16 %v591, %v644
      %s647 = scalar_lea.vmem %s5, 4
      %v648 = vld [vmem:[%s647] sm:$0x3]
      %v650 = vcombine.high %v646, %v646
      %v652 = vunpack.c.l.s4 1983009808
      %v653 = vunpack.c.0.s8 %v652
      %v654 = vlaneseq
      %v655 = vshrl.u32 %v654, 7
      %v656 = vsub.s32 %v653, %v655
      %v657 = vrot.slane %v646, %v656
      %v659 = vunpack.c.l.s4 1983009808
      %v660 = vunpack.c.0.s8 %v659
      %v661 = vlaneseq
      %v662 = vshrl.u32 %v661, 7
      %v663 = vsub.s32 %v660, %v662
      %v664 = vrot.slane %v650, %v663
      %v665 = vcombine.high %v657, %v657
      %666 = vrot.lane.b32.xlu0 %v657, 15
      %v667 = vpop.permute.xlu0 %666
      %668 = vrot.lane.b32.xlu0 %v665, 15
      %v669 = vpop.permute.xlu0 %668
      %670 = vrot.lane.b32.xlu0 %v664, 15
      %v671 = vpop.permute.xlu0 %670
      %vm672 = vcmask 121856
      %v673 = vsel %vm672, %v667, %v669
      %v674 = vsel %vm672, %v669, %v671
      %v676 = vsel %vm463, %v648, 0
      %v679 = vsel %vm467, %v673, 0
      %v682 = vsel %vm467, %v674, 0
      %684 = vmatprep.subr.bf16.mxu0 0
      %685 = vmatpush1.bf16.msra.mxu0 0
      %686 = vmatprep.subr.bf16.mxu0 0
      %687 = vmatpush1.bf16.msra.mxu0 0
      %688 = vmatprep.subr.bf16.mxu0 0
      %689 = vmatpush1.bf16.msra.mxu0 0
      %690 = vmatprep.subr.bf16.mxu0 0
      %691 = vmatpush1.bf16.msra.mxu0 0
      %692 = vmatprep.subr.bf16.mxu0 0
      %693 = vmatpush1.bf16.msra.mxu0 0
      %694 = vmatprep.subr.bf16.mxu0 0
      %695 = vmatpush1.bf16.msra.mxu0 0
      %696 = vmatprep.subr.bf16.mxu0 0
      %697 = vmatpush1.bf16.msra.mxu0 0
      %698 = vmatprep.subr.bf16.mxu0 %v682
      %699 = vmatpush1.bf16.msra.mxu0 %v679
      %700 = vmatprep.subr.bf16.mxu0 0
      %701 = vmatpush2.bf16.msra.mxu0 0
      %702 = vmatprep.subr.bf16.mxu0 0
      %703 = vmatpush2.bf16.msra.mxu0 0
      %704 = vmatprep.subr.bf16.mxu0 0
      %705 = vmatpush2.bf16.msra.mxu0 0
      %706 = vmatprep.subr.bf16.mxu0 0
      %707 = vmatpush2.bf16.msra.mxu0 0
      %708 = vmatprep.subr.bf16.mxu0 0
      %709 = vmatpush2.bf16.msra.mxu0 0
      %710 = vmatprep.subr.bf16.mxu0 0
      %711 = vmatpush2.bf16.msra.mxu0 0
      %712 = vmatprep.subr.bf16.mxu0 0
      %713 = vmatpush2.bf16.msra.mxu0 0
      %714 = vmatprep.subr.bf16.mxu0 0
      %715 = vmatpush2.bf16.msra.mxu0 0
      %716 = vmatprep.mubr.bf16.mxu0 0
      %717 = vmatmul.mubr.bf16.gmra.mxu0 %v676
      %v718 = vpop.f32.mrf.mxu0
      %v719 = vadd.f32 0.0, %v718
      %v720 = vpop.f32.mrf.mxu0
      %v721 = vadd.f32 0.0, %v720
      %v722 = vpop.f32.mrf.mxu0
      %v723 = vpop.f32.mrf.mxu0
      %724 = vdwg.mxu0
      %v725 = vadd.f32 %v585, %v719
      %v726 = vadd.f32 %v587, %v721
      %v727 = vld [vmem:[#allocation2] sm:$0x3f]
      %728 = vrot.lane.b32.xlu0 %v426, 127
      %v729 = vpop.permute.xlu0 %728
      %v730 = vrot.slane %v729, 6
      %vm731 = vcmask 1039360
      %v732 = vsel %vm731, %v730, %v729
      %v734 = vmul.bf16 %v727, %v732
      %s735 = scalar_lea.vmem %s5, 6
      %v736 = vld [vmem:[%s735] sm:$0x3]
      %v738 = vcombine.high %v734, %v734
      %v740 = vunpack.c.l.s4 1983009808
      %v741 = vunpack.c.0.s8 %v740
      %v742 = vlaneseq
      %v743 = vshrl.u32 %v742, 7
      %v744 = vsub.s32 %v741, %v743
      %v745 = vrot.slane %v734, %v744
      %v747 = vunpack.c.l.s4 1983009808
      %v748 = vunpack.c.0.s8 %v747
      %v749 = vlaneseq
      %v750 = vshrl.u32 %v749, 7
      %v751 = vsub.s32 %v748, %v750
      %v752 = vrot.slane %v738, %v751
      %v753 = vcombine.high %v745, %v745
      %754 = vrot.lane.b32.xlu0 %v745, 1
      %v755 = vpop.permute.xlu0 %754
      %756 = vrot.lane.b32.xlu0 %v753, 1
      %v757 = vpop.permute.xlu0 %756
      %758 = vrot.lane.b32.xlu0 %v752, 1
      %v759 = vpop.permute.xlu0 %758
      %vm760 = vcmask 7168
      %v761 = vsel %vm760, %v755, %v757
      %v762 = vsel %vm760, %v757, %v759
      %v764 = vsel %vm463, %v736, 0
      %v767 = vsel %vm467, %v761, 0
      %v770 = vsel %vm467, %v762, 0
      %772 = vmatprep.subr.bf16.mxu0 0
      %773 = vmatpush1.bf16.msra.mxu0 0
      %774 = vmatprep.subr.bf16.mxu0 0
      %775 = vmatpush1.bf16.msra.mxu0 0
      %776 = vmatprep.subr.bf16.mxu0 0
      %777 = vmatpush1.bf16.msra.mxu0 0
      %778 = vmatprep.subr.bf16.mxu0 0
      %779 = vmatpush1.bf16.msra.mxu0 0
      %780 = vmatprep.subr.bf16.mxu0 0
      %781 = vmatpush1.bf16.msra.mxu0 0
      %782 = vmatprep.subr.bf16.mxu0 0
      %783 = vmatpush1.bf16.msra.mxu0 0
      %784 = vmatprep.subr.bf16.mxu0 0
      %785 = vmatpush1.bf16.msra.mxu0 0
      %786 = vmatprep.subr.bf16.mxu0 %v770
      %787 = vmatpush1.bf16.msra.mxu0 %v767
      %788 = vmatprep.subr.bf16.mxu0 0
      %789 = vmatpush2.bf16.msra.mxu0 0
      %790 = vmatprep.subr.bf16.mxu0 0
      %791 = vmatpush2.bf16.msra.mxu0 0
      %792 = vmatprep.subr.bf16.mxu0 0
      %793 = vmatpush2.bf16.msra.mxu0 0
      %794 = vmatprep.subr.bf16.mxu0 0
      %795 = vmatpush2.bf16.msra.mxu0 0
      %796 = vmatprep.subr.bf16.mxu0 0
      %797 = vmatpush2.bf16.msra.mxu0 0
      %798 = vmatprep.subr.bf16.mxu0 0
      %799 = vmatpush2.bf16.msra.mxu0 0
      %800 = vmatprep.subr.bf16.mxu0 0
      %801 = vmatpush2.bf16.msra.mxu0 0
      %802 = vmatprep.subr.bf16.mxu0 0
      %803 = vmatpush2.bf16.msra.mxu0 0
      %804 = vmatprep.mubr.bf16.mxu0 0
      %805 = vmatmul.mubr.bf16.gmra.mxu0 %v764
      %v806 = vpop.f32.mrf.mxu0
      %v807 = vadd.f32 0.0, %v806
      %v808 = vpop.f32.mrf.mxu0
      %v809 = vadd.f32 0.0, %v808
      %v810 = vpop.f32.mrf.mxu0
      %v811 = vpop.f32.mrf.mxu0
      %812 = vdwg.mxu0
      %v813 = vadd.f32 %v725, %v807
      %v814 = vadd.f32 %v726, %v809
      %v815 = vld [vmem:[#allocation2 + $0x2] sm:$0xf]
      %s816 = scalar_lea.vmem %s5, 8
      %v817 = vld [vmem:[%s816] sm:$0x3]
      %v820 = vunpack.c.l.s4 1983009808
      %v821 = vunpack.c.0.s8 %v820
      %v822 = vlaneseq
      %v823 = vshrl.u32 %v822, 7
      %v824 = vsub.s32 %v821, %v823
      %v825 = vrot.slane %v815, %v824
      %v826 = vcombine.high %v825, %v825
      %v828 = vsel %vm463, %v817, 0
      %v831 = vsel %vm467, %v825, 0
      %v834 = vsel %vm467, %v826, 0
      %836 = vmatprep.subr.bf16.mxu0 0
      %837 = vmatpush1.bf16.msra.mxu0 0
      %838 = vmatprep.subr.bf16.mxu0 0
      %839 = vmatpush1.bf16.msra.mxu0 0
      %840 = vmatprep.subr.bf16.mxu0 0
      %841 = vmatpush1.bf16.msra.mxu0 0
      %842 = vmatprep.subr.bf16.mxu0 0
      %843 = vmatpush1.bf16.msra.mxu0 0
      %844 = vmatprep.subr.bf16.mxu0 0
      %845 = vmatpush1.bf16.msra.mxu0 0
      %846 = vmatprep.subr.bf16.mxu0 0
      %847 = vmatpush1.bf16.msra.mxu0 0
      %848 = vmatprep.subr.bf16.mxu0 0
      %849 = vmatpush1.bf16.msra.mxu0 0
      %850 = vmatprep.subr.bf16.mxu0 %v834
      %851 = vmatpush1.bf16.msra.mxu0 %v831
      %852 = vmatprep.subr.bf16.mxu0 0
      %853 = vmatpush2.bf16.msra.mxu0 0
      %854 = vmatprep.subr.bf16.mxu0 0
      %855 = vmatpush2.bf16.msra.mxu0 0
      %856 = vmatprep.subr.bf16.mxu0 0
      %857 = vmatpush2.bf16.msra.mxu0 0
      %858 = vmatprep.subr.bf16.mxu0 0
      %859 = vmatpush2.bf16.msra.mxu0 0
      %860 = vmatprep.subr.bf16.mxu0 0
      %861 = vmatpush2.bf16.msra.mxu0 0
      %862 = vmatprep.subr.bf16.mxu0 0
      %863 = vmatpush2.bf16.msra.mxu0 0
      %864 = vmatprep.subr.bf16.mxu0 0
      %865 = vmatpush2.bf16.msra.mxu0 0
      %866 = vmatprep.subr.bf16.mxu0 0
      %867 = vmatpush2.bf16.msra.mxu0 0
      %868 = vmatprep.mubr.bf16.mxu0 0
      %869 = vmatmul.mubr.bf16.gmra.mxu0 %v828
      %v870 = vpop.f32.mrf.mxu0
      %v871 = vadd.f32 0.0, %v870
      %v872 = vpop.f32.mrf.mxu0
      %v873 = vadd.f32 0.0, %v872
      %v874 = vpop.f32.mrf.mxu0
      %v875 = vpop.f32.mrf.mxu0
      %876 = vdwg.mxu0
      %v877 = vadd.f32 %v813, %v871
      %v878 = vadd.f32 %v814, %v873
      %v879 = vld [vmem:[#allocation2 + $0x2] sm:$0x3f]
      %880 = vrot.lane.b32.xlu0 %v639, 1
      %v881 = vpop.permute.xlu0 %880
      %v882 = vrot.slane %v881, 6
      %v883 = vsel %vm760, %v882, %v881
      %v885 = vmul.bf16 %v879, %v883
      %s886 = scalar_lea.vmem %s5, 10
      %v887 = vld [vmem:[%s886] sm:$0x3]
      %v889 = vcombine.high %v885, %v885
      %v891 = vunpack.c.l.s4 1983009808
      %v892 = vunpack.c.0.s8 %v891
      %v893 = vlaneseq
      %v894 = vshrl.u32 %v893, 7
      %v895 = vsub.s32 %v892, %v894
      %v896 = vrot.slane %v885, %v895
      %v898 = vunpack.c.l.s4 1983009808
      %v899 = vunpack.c.0.s8 %v898
      %v900 = vlaneseq
      %v901 = vshrl.u32 %v900, 7
      %v902 = vsub.s32 %v899, %v901
      %v903 = vrot.slane %v889, %v902
      %v904 = vcombine.high %v896, %v896
      %905 = vrot.lane.b32.xlu0 %v896, 127
      %v906 = vpop.permute.xlu0 %905
      %907 = vrot.lane.b32.xlu0 %v904, 127
      %v908 = vpop.permute.xlu0 %907
      %909 = vrot.lane.b32.xlu0 %v903, 127
      %v910 = vpop.permute.xlu0 %909
      %v911 = vsel %vm731, %v906, %v908
      %v912 = vsel %vm731, %v908, %v910
      %v914 = vsel %vm463, %v887, 0
      %v917 = vsel %vm467, %v911, 0
      %v920 = vsel %vm467, %v912, 0
      %922 = vmatprep.subr.bf16.mxu0 0
      %923 = vmatpush1.bf16.msra.mxu0 0
      %924 = vmatprep.subr.bf16.mxu0 0
      %925 = vmatpush1.bf16.msra.mxu0 0
      %926 = vmatprep.subr.bf16.mxu0 0
      %927 = vmatpush1.bf16.msra.mxu0 0
      %928 = vmatprep.subr.bf16.mxu0 0
      %929 = vmatpush1.bf16.msra.mxu0 0
      %930 = vmatprep.subr.bf16.mxu0 0
      %931 = vmatpush1.bf16.msra.mxu0 0
      %932 = vmatprep.subr.bf16.mxu0 0
      %933 = vmatpush1.bf16.msra.mxu0 0
      %934 = vmatprep.subr.bf16.mxu0 0
      %935 = vmatpush1.bf16.msra.mxu0 0
      %936 = vmatprep.subr.bf16.mxu0 %v920
      %937 = vmatpush1.bf16.msra.mxu0 %v917
      %938 = vmatprep.subr.bf16.mxu0 0
      %939 = vmatpush2.bf16.msra.mxu0 0
      %940 = vmatprep.subr.bf16.mxu0 0
      %941 = vmatpush2.bf16.msra.mxu0 0
      %942 = vmatprep.subr.bf16.mxu0 0
      %943 = vmatpush2.bf16.msra.mxu0 0
      %944 = vmatprep.subr.bf16.mxu0 0
      %945 = vmatpush2.bf16.msra.mxu0 0
      %946 = vmatprep.subr.bf16.mxu0 0
      %947 = vmatpush2.bf16.msra.mxu0 0
      %948 = vmatprep.subr.bf16.mxu0 0
      %949 = vmatpush2.bf16.msra.mxu0 0
      %950 = vmatprep.subr.bf16.mxu0 0
      %951 = vmatpush2.bf16.msra.mxu0 0
      %952 = vmatprep.subr.bf16.mxu0 0
      %953 = vmatpush2.bf16.msra.mxu0 0
      %954 = vmatprep.mubr.bf16.mxu0 0
      %955 = vmatmul.mubr.bf16.gmra.mxu0 %v914
      %v956 = vpop.f32.mrf.mxu0
      %v957 = vadd.f32 0.0, %v956
      %v958 = vpop.f32.mrf.mxu0
      %v959 = vadd.f32 0.0, %v958
      %v960 = vpop.f32.mrf.mxu0
      %v961 = vpop.f32.mrf.mxu0
      %962 = vdwg.mxu0
      %v963 = vadd.f32 %v877, %v957
      %v964 = vadd.f32 %v878, %v959
      %v965 = vld [vmem:[#allocation2 + $0x2] sm:$0x3f]
      %966 = vrot.lane.b32.xlu0 %v426, 15
      %v967 = vpop.permute.xlu0 %966
      %v968 = vrot.slane %v967, 6
      %v969 = vsel %vm672, %v968, %v967
      %v971 = vmul.bf16 %v965, %v969
      %s972 = scalar_lea.vmem %s5, 12
      %v973 = vld [vmem:[%s972] sm:$0x3]
      %v975 = vcombine.high %v971, %v971
      %v977 = vunpack.c.l.s4 1983009808
      %v978 = vunpack.c.0.s8 %v977
      %v979 = vlaneseq
      %v980 = vshrl.u32 %v979, 7
      %v981 = vsub.s32 %v978, %v980
      %v982 = vrot.slane %v971, %v981
      %v984 = vunpack.c.l.s4 1983009808
      %v985 = vunpack.c.0.s8 %v984
      %v986 = vlaneseq
      %v987 = vshrl.u32 %v986, 7
      %v988 = vsub.s32 %v985, %v987
      %v989 = vrot.slane %v975, %v988
      %v990 = vcombine.high %v982, %v982
      %991 = vrot.lane.b32.xlu0 %v982, 113
      %v992 = vpop.permute.xlu0 %991
      %993 = vrot.lane.b32.xlu0 %v990, 113
      %v994 = vpop.permute.xlu0 %993
      %995 = vrot.lane.b32.xlu0 %v989, 113
      %v996 = vpop.permute.xlu0 %995
      %v997 = vsel %vm643, %v992, %v994
      %v998 = vsel %vm643, %v994, %v996
      %v1000 = vsel %vm463, %v973, 0
      %v1003 = vsel %vm467, %v997, 0
      %v1006 = vsel %vm467, %v998, 0
      %1008 = vmatprep.subr.bf16.mxu0 0
      %1009 = vmatpush1.bf16.msra.mxu0 0
      %1010 = vmatprep.subr.bf16.mxu0 0
      %1011 = vmatpush1.bf16.msra.mxu0 0
      %1012 = vmatprep.subr.bf16.mxu0 0
      %1013 = vmatpush1.bf16.msra.mxu0 0
      %1014 = vmatprep.subr.bf16.mxu0 0
      %1015 = vmatpush1.bf16.msra.mxu0 0
      %1016 = vmatprep.subr.bf16.mxu0 0
      %1017 = vmatpush1.bf16.msra.mxu0 0
      %1018 = vmatprep.subr.bf16.mxu0 0
      %1019 = vmatpush1.bf16.msra.mxu0 0
      %1020 = vmatprep.subr.bf16.mxu0 0
      %1021 = vmatpush1.bf16.msra.mxu0 0
      %1022 = vmatprep.subr.bf16.mxu0 %v1006
      %1023 = vmatpush1.bf16.msra.mxu0 %v1003
      %1024 = vmatprep.subr.bf16.mxu0 0
      %1025 = vmatpush2.bf16.msra.mxu0 0
      %1026 = vmatprep.subr.bf16.mxu0 0
      %1027 = vmatpush2.bf16.msra.mxu0 0
      %1028 = vmatprep.subr.bf16.mxu0 0
      %1029 = vmatpush2.bf16.msra.mxu0 0
      %1030 = vmatprep.subr.bf16.mxu0 0
      %1031 = vmatpush2.bf16.msra.mxu0 0
      %1032 = vmatprep.subr.bf16.mxu0 0
      %1033 = vmatpush2.bf16.msra.mxu0 0
      %1034 = vmatprep.subr.bf16.mxu0 0
      %1035 = vmatpush2.bf16.msra.mxu0 0
      %1036 = vmatprep.subr.bf16.mxu0 0
      %1037 = vmatpush2.bf16.msra.mxu0 0
      %1038 = vmatprep.subr.bf16.mxu0 0
      %1039 = vmatpush2.bf16.msra.mxu0 0
      %1040 = vmatprep.mubr.bf16.mxu0 0
      %1041 = vmatmul.mubr.bf16.gmra.mxu0 %v1000
      %v1042 = vpop.f32.mrf.mxu0
      %v1043 = vadd.f32 0.0, %v1042
      %v1044 = vpop.f32.mrf.mxu0
      %v1045 = vadd.f32 0.0, %v1044
      %v1046 = vpop.f32.mrf.mxu0
      %v1047 = vpop.f32.mrf.mxu0
      %1048 = vdwg.mxu0
      %v1049 = vadd.f32 %v963, %v1043
      %v1050 = vadd.f32 %v964, %v1045
      %v1051 = vld [vmem:[#allocation2 + $0x2] sm:$0x3f]
      %s1052 = scalar_lea.vmem %s5, 14
      %v1053 = vld [vmem:[%s1052] sm:$0x3]
      %v1055 = vcombine.high %v1051, %v1051
      %v1057 = vunpack.c.l.s4 1983009808
      %v1058 = vunpack.c.0.s8 %v1057
      %v1059 = vlaneseq
      %v1060 = vshrl.u32 %v1059, 7
      %v1061 = vsub.s32 %v1058, %v1060
      %v1062 = vrot.slane %v1051, %v1061
      %v1064 = vunpack.c.l.s4 1983009808
      %v1065 = vunpack.c.0.s8 %v1064
      %v1066 = vlaneseq
      %v1067 = vshrl.u32 %v1066, 7
      %v1068 = vsub.s32 %v1065, %v1067
      %v1069 = vrot.slane %v1055, %v1068
      %v1070 = vcombine.high %v1062, %v1062
      %1071 = vrot.lane.b32.xlu0 %v1062, 112
      %v1072 = vpop.permute.xlu0 %1071
      %1073 = vrot.lane.b32.xlu0 %v1070, 112
      %v1074 = vpop.permute.xlu0 %1073
      %1075 = vrot.lane.b32.xlu0 %v1069, 112
      %v1076 = vpop.permute.xlu0 %1075
      %vm1077 = vcmask 916480
      %v1078 = vsel %vm1077, %v1072, %v1074
      %v1079 = vsel %vm1077, %v1074, %v1076
      %v1081 = vsel %vm463, %v1053, 0
      %v1084 = vsel %vm467, %v1078, 0
      %v1087 = vsel %vm467, %v1079, 0
      %1089 = vmatprep.subr.bf16.mxu0 0
      %1090 = vmatpush1.bf16.msra.mxu0 0
      %1091 = vmatprep.subr.bf16.mxu0 0
      %1092 = vmatpush1.bf16.msra.mxu0 0
      %1093 = vmatprep.subr.bf16.mxu0 0
      %1094 = vmatpush1.bf16.msra.mxu0 0
      %1095 = vmatprep.subr.bf16.mxu0 0
      %1096 = vmatpush1.bf16.msra.mxu0 0
      %1097 = vmatprep.subr.bf16.mxu0 0
      %1098 = vmatpush1.bf16.msra.mxu0 0
      %1099 = vmatprep.subr.bf16.mxu0 0
      %1100 = vmatpush1.bf16.msra.mxu0 0
      %1101 = vmatprep.subr.bf16.mxu0 0
      %1102 = vmatpush1.bf16.msra.mxu0 0
      %1103 = vmatprep.subr.bf16.mxu0 %v1087
      %1104 = vmatpush1.bf16.msra.mxu0 %v1084
      %1105 = vmatprep.subr.bf16.mxu0 0
      %1106 = vmatpush2.bf16.msra.mxu0 0
      %1107 = vmatprep.subr.bf16.mxu0 0
      %1108 = vmatpush2.bf16.msra.mxu0 0
      %1109 = vmatprep.subr.bf16.mxu0 0
      %1110 = vmatpush2.bf16.msra.mxu0 0
      %1111 = vmatprep.subr.bf16.mxu0 0
      %1112 = vmatpush2.bf16.msra.mxu0 0
      %1113 = vmatprep.subr.bf16.mxu0 0
      %1114 = vmatpush2.bf16.msra.mxu0 0
      %1115 = vmatprep.subr.bf16.mxu0 0
      %1116 = vmatpush2.bf16.msra.mxu0 0
      %1117 = vmatprep.subr.bf16.mxu0 0
      %1118 = vmatpush2.bf16.msra.mxu0 0
      %1119 = vmatprep.subr.bf16.mxu0 0
      %1120 = vmatpush2.bf16.msra.mxu0 0
      %1121 = vmatprep.mubr.bf16.mxu0 0
      %1122 = vmatmul.mubr.bf16.gmra.mxu0 %v1081
      %v1123 = vpop.f32.mrf.mxu0
      %v1124 = vadd.f32 0.0, %v1123
      %v1125 = vpop.f32.mrf.mxu0
      %v1126 = vadd.f32 0.0, %v1125
      %v1127 = vpop.f32.mrf.mxu0
      %v1128 = vpop.f32.mrf.mxu0
      %1129 = vdwg.mxu0
      %v1130 = vadd.f32 %v1049, %v1124
      %v1131 = vadd.f32 %v1050, %v1126
      %v1132 = vld [vmem:[#allocation2 + $0x2] sm:$0x3f]
      %1133 = vrot.lane.b32.xlu0 %v639, 17
      %v1134 = vpop.permute.xlu0 %1133
      %v1135 = vrot.slane %v1134, 6
      %v1136 = vsel %vm538, %v1135, %v1134
      %v1138 = vmul.bf16 %v1132, %v1136
      %s1139 = scalar_lea.vmem %s5, 16
      %v1140 = vld [vmem:[%s1139] sm:$0x3]
      %v1142 = vcombine.high %v1138, %v1138
      %v1144 = vunpack.c.l.s4 1983009808
      %v1145 = vunpack.c.0.s8 %v1144
      %v1146 = vlaneseq
      %v1147 = vshrl.u32 %v1146, 7
      %v1148 = vsub.s32 %v1145, %v1147
      %v1149 = vrot.slane %v1138, %v1148
      %v1151 = vunpack.c.l.s4 1983009808
      %v1152 = vunpack.c.0.s8 %v1151
      %v1153 = vlaneseq
      %v1154 = vshrl.u32 %v1153, 7
      %v1155 = vsub.s32 %v1152, %v1154
      %v1156 = vrot.slane %v1142, %v1155
      %v1157 = vcombine.high %v1149, %v1149
      %1158 = vrot.lane.b32.xlu0 %v1149, 111
      %v1159 = vpop.permute.xlu0 %1158
      %1160 = vrot.lane.b32.xlu0 %v1157, 111
      %v1161 = vpop.permute.xlu0 %1160
      %1162 = vrot.lane.b32.xlu0 %v1156, 111
      %v1163 = vpop.permute.xlu0 %1162
      %v1164 = vsel %vm430, %v1159, %v1161
      %v1165 = vsel %vm430, %v1161, %v1163
      %v1167 = vsel %vm463, %v1140, 0
      %v1170 = vsel %vm467, %v1164, 0
      %v1173 = vsel %vm467, %v1165, 0
      %1175 = vmatprep.subr.bf16.mxu0 0
      %1176 = vmatpush1.bf16.msra.mxu0 0
      %1177 = vmatprep.subr.bf16.mxu0 0
      %1178 = vmatpush1.bf16.msra.mxu0 0
      %1179 = vmatprep.subr.bf16.mxu0 0
      %1180 = vmatpush1.bf16.msra.mxu0 0
      %1181 = vmatprep.subr.bf16.mxu0 0
      %1182 = vmatpush1.bf16.msra.mxu0 0
      %1183 = vmatprep.subr.bf16.mxu0 0
      %1184 = vmatpush1.bf16.msra.mxu0 0
      %1185 = vmatprep.subr.bf16.mxu0 0
      %1186 = vmatpush1.bf16.msra.mxu0 0
      %1187 = vmatprep.subr.bf16.mxu0 0
      %1188 = vmatpush1.bf16.msra.mxu0 0
      %1189 = vmatprep.subr.bf16.mxu0 %v1173
      %1190 = vmatpush1.bf16.msra.mxu0 %v1170
      %1191 = vmatprep.subr.bf16.mxu0 0
      %1192 = vmatpush2.bf16.msra.mxu0 0
      %1193 = vmatprep.subr.bf16.mxu0 0
      %1194 = vmatpush2.bf16.msra.mxu0 0
      %1195 = vmatprep.subr.bf16.mxu0 0
      %1196 = vmatpush2.bf16.msra.mxu0 0
      %1197 = vmatprep.subr.bf16.mxu0 0
      %1198 = vmatpush2.bf16.msra.mxu0 0
      %1199 = vmatprep.subr.bf16.mxu0 0
      %1200 = vmatpush2.bf16.msra.mxu0 0
      %1201 = vmatprep.subr.bf16.mxu0 0
      %1202 = vmatpush2.bf16.msra.mxu0 0
      %1203 = vmatprep.subr.bf16.mxu0 0
      %1204 = vmatpush2.bf16.msra.mxu0 0
      %1205 = vmatprep.subr.bf16.mxu0 0
      %1206 = vmatpush2.bf16.msra.mxu0 0
      %1207 = vmatprep.mubr.bf16.mxu0 0
      %1208 = vmatmul.mubr.bf16.gmra.mxu0 %v1167
      %v1209 = vpop.f32.mrf.mxu0
      %v1210 = vadd.f32 0.0, %v1209
      %v1211 = vpop.f32.mrf.mxu0
      %v1212 = vadd.f32 0.0, %v1211
      %v1213 = vpop.f32.mrf.mxu0
      %v1214 = vpop.f32.mrf.mxu0
      %1215 = vdwg.mxu0
      %v1216 = vadd.f32 %v1130, %v1210
      %v1217 = vadd.f32 %v1131, %v1212
      %v1218 = vpack.c.bf16 %v1216, %v1216
      %v1219 = vpack.c.bf16 %v1217, %v1217
      %v1222 = vcombine.low %v1218, %v1219
      %v1224 = vunpack.c.l.s4 1983009808
      %v1225 = vunpack.c.0.s8 %v1224
      %v1226 = vlaneseq
      %v1227 = vshrl.u32 %v1226, 7
      %v1228 = vsub.s32 %v1225, %v1227
      %v1229 = vrot.slane %v1222, %v1228
      %1231 = vst [vmem:[%s318] sm:$0xf] %v1229
      %vm1232 = vcmask 1043456
      %v1233 = vsel %vm1232, %v1216, 0.0
      %v1234 = vsel %vm1232, %v1217, 0.0
      %v1235 = vadd.f32 %v1233, %v1234
      %1236 = vadd.xlane.f32.xlu0 %v1235
      %v1237 = vpop.xlane.xlu0 %1236
      %vm1238 = vcmask 3072
      %1239 = vst.msk [vmem:[%s322] sm:$0xf] %vm1238, %v1237
      %v1240 = vmul.f32 %v1216, %v1216
      %v1241 = vmul.f32 %v1217, %v1217
      %v1242 = vsel %vm1232, %v1240, 0.0
      %v1243 = vsel %vm1232, %v1241, 0.0
      %v1244 = vadd.f32 %v1242, %v1243
      %1245 = vadd.xlane.f32.xlu0 %v1244
      %v1246 = vpop.xlane.xlu0 %1245
      %1247 = vst.msk [vmem:[%s326] sm:$0xf] %vm1238, %v1246
      %p1248 = scmp.lt.s32.totalorder %s20, 1
      %s1249 = scalar_select %p1248, %s20, 1
      %s1250 = smul.addr %s1249, 2
      %s1251 = smul.addr %s1250, 2
      %s1252 = scalar_lea.vmem %s6, %s1251
      %p1253 = scmp.lt.s32.totalorder %s20, 1
      %s1254 = scalar_select %p1253, %s20, 1
      %s1255 = smul.addr %s1254, 4
      %s1256 = scalar_lea.vmem %s7, %s1255
      %p1257 = scmp.lt.s32.totalorder %s20, 1
      %s1258 = scalar_select %p1257, %s20, 1
      %s1259 = smul.addr %s1258, 4
      %s1260 = scalar_lea.vmem %s8, %s1259
      // Predicated region
      $region45: #{_lambda_.5} parent=43 // pred_check
        %p1261 = pneg %p169
      $region46: #{_lambda_.5} parent=43 // pred_check_branch
        %1263 = sbr.rel (%p1261) target = $region48
      $region47: #{_lambda_.5} parent=43 // pred_region
        _
      $region48: #{_lambda_.5} parent=43 // pred_fallthru
        _
      // Predicated region
      $region49: #{_lambda_.5} parent=43 // pred_check
        %p1264 = pneg %p195
      $region50: #{_lambda_.5} parent=43 // pred_check_branch
        %1266 = sbr.rel (%p1264) target = $region52
      $region51: #{_lambda_.5} parent=43 // pred_region
        _
      $region52: #{_lambda_.5} parent=43 // pred_fallthru
        _
      // Predicated region
      $region53: #{_lambda_.5} parent=43 // pred_check
        %p1267 = pneg %p221
      $region54: #{_lambda_.5} parent=43 // pred_check_branch
        %1269 = sbr.rel (%p1267) target = $region56
      $region55: #{_lambda_.5} parent=43 // pred_region
        _
      $region56: #{_lambda_.5} parent=43 // pred_fallthru
        _
    $region44: #{_lambda_.5} parent=5 // pred_fallthru
      _
    %p1270 = scmp.le.s32.totalorder 2, %s15
    // Predicated region
    $region57: #{_lambda_.5} parent=5 // pred_check
      %p1271 = pneg %p1270
    $region58: #{_lambda_.5} parent=5 // pred_check_branch
      %1273 = sbr.rel (%p1271) target = $region60
    $region59: #{_lambda_.5} parent=5 // pred_region
      %s1274 = ssub.s32 %s15, 2
      // Predicated region
      $region61: #{_lambda_.5} parent=59 // pred_check
        %p1275 = pneg %p175
      $region62: #{_lambda_.5} parent=59 // pred_check_branch
        %1277 = sbr.rel (%p1275) target = $region64
      $region63: #{_lambda_.5} parent=59 // pred_region
        %p1278 = scmp.lt.s32.totalorder %s21, 1
        %s1279 = scalar_select %p1278, %s21, 1
        %s1280 = smul.addr %s1279, 2
        %s1281 = smul.addr %s1280, 2
        %s1282 = scalar_lea.vmem %s6, %s1281
      $region64: #{_lambda_.5} parent=59 // pred_fallthru
        _
      // Predicated region
      $region65: #{_lambda_.5} parent=59 // pred_check
        %p1283 = pneg %p201
      $region66: #{_lambda_.5} parent=59 // pred_check_branch
        %1285 = sbr.rel (%p1283) target = $region68
      $region67: #{_lambda_.5} parent=59 // pred_region
        %p1286 = scmp.lt.s32.totalorder %s21, 1
        %s1287 = scalar_select %p1286, %s21, 1
        %s1288 = smul.addr %s1287, 4
        %s1289 = scalar_lea.vmem %s7, %s1288
      $region68: #{_lambda_.5} parent=59 // pred_fallthru
        _
      // Predicated region
      $region69: #{_lambda_.5} parent=59 // pred_check
        %p1290 = pneg %p227
      $region70: #{_lambda_.5} parent=59 // pred_check_branch
        %1292 = sbr.rel (%p1290) target = $region72
      $region71: #{_lambda_.5} parent=59 // pred_region
        %p1293 = scmp.lt.s32.totalorder %s21, 1
        %s1294 = scalar_select %p1293, %s21, 1
        %s1295 = smul.addr %s1294, 4
        %s1296 = scalar_lea.vmem %s8, %s1295
      $region72: #{_lambda_.5} parent=59 // pred_fallthru
        _
    $region60: #{_lambda_.5} parent=5 // pred_fallthru
      _
  $region6: #{_lambda_.5} parent=0 // loop_footer
    %s19 = sadd.s32 1, %s15
  $region7: #{_lambda_.5} parent=0 // loop_footer_branch
    %14 = sbr.rel target = $region3
  $region8: #{_lambda_.5} parent=0 // loop_exit
    _

</llo_original>
